<compile_context>
chip_gen: v5e
topology: v5e:2x2
jax: 0.10.0
libtpu: 0.0.40
codegen_flags: <defaults>
</compile_context>

<pallas_src>
import jax
import jax.numpy as jnp
from jax.experimental import pallas as pl
from jax.experimental.pallas import tpu as pltpu

K = 3          # conv / pool kernel size
PAD = 2        # conv padding
GROUPS = 4     # GroupNorm groups
EPS_GN = 1e-5


# ----------------------------------------------------------------------------
# Fused kernel: conv3x3(p=2) + GroupNorm(4) + ReLU + MaxPool(3, s=2),
# NB samples per grid step, everything lane-dense.
# ----------------------------------------------------------------------------
def _fused_kernel_factory(NB, H, WC, Ho):
    HP = H + 2 * PAD

    def kernel(x_ref, wb_ref, bt_ref, g_ref, tm_ref, gb_ref, r_ref, sw_ref,
               o_ref, xp_ref):
        # H-pad border of the padded-input scratch; the interior is rewritten
        # per sample, the border stays zero (no concatenate copies).
        xp_ref[0:PAD, :] = jnp.zeros((PAD, WC), jnp.float32)
        xp_ref[PAD + H:HP, :] = jnp.zeros((PAD, WC), jnp.float32)

        for nb in range(NB):
            xp_ref[PAD:PAD + H, :] = x_ref[nb]                  # (H, W*Cin)

            # ---- conv 3x3 (pad=2) + bias: 3 banded matmuls; result is the
            # conv map already in lane-dense (Ho, Wo*Cout) layout. ----
            y = jnp.dot(xp_ref[0:Ho, :], wb_ref[0],
                        preferred_element_type=jnp.float32)
            for kh in range(1, K):
                y = y + jnp.dot(xp_ref[kh:kh + Ho, :], wb_ref[kh],
                                preferred_element_type=jnp.float32)
            y = y + bt_ref[...]                                  # (Ho, Wo*Cout)

            # ---- GroupNorm(GROUPS): stats on the MXU ----
            ones_row = jnp.ones((1, Ho), jnp.float32)
            s1 = jnp.dot(ones_row, y, preferred_element_type=jnp.float32)
            s2 = jnp.dot(ones_row, y * y, preferred_element_type=jnp.float32)
            st = jnp.concatenate([s1, s2], axis=0)               # (2, Wo*Cout)
            gm = jnp.dot(st, g_ref[...],
                         preferred_element_type=jnp.float32)     # (2, Cout)
            gmean = gm[0:1, :]
            gvar = jnp.maximum(gm[1:2, :] - gmean * gmean, 0.0)  # clamp >= 0
            # folded affine:  y_norm*gamma + beta  ==  y*a + b
            a = gb_ref[0:1, :] * jax.lax.rsqrt(gvar + EPS_GN)
            b = gb_ref[1:2, :] - gmean * a
            ab = jnp.dot(jnp.concatenate([a, b], axis=0), tm_ref[...],
                         preferred_element_type=jnp.float32)     # (2, Wo*Cout)
            y = y * ab[0:1, :] + ab[1:2, :]

            # ---- MaxPool2d(3, stride=2), separable, via selection matmuls ----
            # H direction: rows 2p+kh selected by r_ref[kh] (Po, Ho).
            hpool = jnp.dot(r_ref[0], y, preferred_element_type=jnp.float32)
            for kh in range(1, K):
                hpool = jnp.maximum(
                    hpool, jnp.dot(r_ref[kh], y,
                                   preferred_element_type=jnp.float32))
            # W direction: lanes (2q+kw)*Cout+c selected by sw_ref[kw].
            wpool = jnp.dot(hpool, sw_ref[0],
                            preferred_element_type=jnp.float32)
            for kw in range(1, K):
                wpool = jnp.maximum(
                    wpool, jnp.dot(hpool, sw_ref[kw],
                                   preferred_element_type=jnp.float32))

            # ReLU after pooling (commutes with max); Dropout2d = identity.
            o_ref[nb] = jnp.maximum(wpool, 0.0)                  # (Po, Qo*Cout)

    return kernel


# ----------------------------------------------------------------------------
# Public wrapper (torch-style NCHW in / out, torch OIHW conv weight)
# ----------------------------------------------------------------------------
@jax.jit
def based_module_1_forward(x_nchw, w_oihw, bias, gamma, beta):
    N, Cin, H, W = x_nchw.shape
    Cout = w_oihw.shape[0]
    assert Cout % GROUPS == 0
    gc = Cout // GROUPS
    Ho = H + 2 * PAD - K + 1
    Wo = W + 2 * PAD - K + 1
    Po = (Ho - K) // 2 + 1
    Qo = (Wo - K) // 2 + 1
    WC = W * Cin
    WOC = Wo * Cout
    QOC = Qo * Cout
    f32 = jnp.float32
    hp = jax.lax.Precision.HIGHEST

    # NCHW -> (N, H, W*Cin): rows in sublanes, (w, ci) flattened into lanes.
    x = jnp.transpose(x_nchw, (0, 2, 3, 1)).reshape(N, H, WC).astype(f32)

    # Banded conv weights: wb[kh, n*Cin+ci, j*Cout+co] = w[co,ci,kh, n-j+PAD]
    # if the (n, j) pair is inside the 3-tap band, else 0.  W-padding is folded
    # into the band (zero pad columns contribute nothing).
    wt = jnp.transpose(w_oihw.astype(f32), (2, 3, 1, 0))          # (kh,kw,ci,co)
    n_i = jnp.arange(W)[None, :, None]
    j_i = jnp.arange(Wo)[None, None, :]
    k_i = jnp.arange(K)[:, None, None]
    band = (n_i == j_i + k_i - PAD).astype(f32)                   # (kw, W, Wo)
    wb = jnp.einsum("knj,hkio->hnijo", band, wt,
                    precision=hp).reshape(K, WC, WOC)

    bias_t = jnp.tile(bias.astype(f32), Wo)[None, :]              # (1, Wo*Cout)

    # GroupNorm helpers: group-average projection and lane-tiling matrix.
    grp = jnp.arange(Cout) // gc
    same = (grp[:, None] == grp[None, :]).astype(f32)
    gmat = jnp.tile(same, (Wo, 1)) * (1.0 / (Ho * Wo * gc))       # (WOC, Cout)
    tmat = jnp.tile(jnp.eye(Cout, dtype=f32), (1, Wo))            # (Cout, WOC)
    gb = jnp.stack([gamma.astype(f32), beta.astype(f32)], axis=0)  # (2, Cout)

    # MaxPool selection matrices (exact 0/1 selections, ride the idle MXU).
    r_i = jnp.arange(Ho)[None, None, :]
    p_i = jnp.arange(Po)[None, :, None]
    kh_i = jnp.arange(K)[:, None, None]
    rsel = (r_i == 2 * p_i + kh_i).astype(f32)                    # (K, Po, Ho)

    jj = jnp.arange(Wo)[None, :, None]
    qq = jnp.arange(Qo)[None, None, :]
    kw_i = jnp.arange(K)[:, None, None]
    dsel = (jj == 2 * qq + kw_i).astype(f32)                      # (K, Wo, Qo)
    wsel = jnp.einsum("kjq,ab->kjaqb", dsel, jnp.eye(Cout, dtype=f32),
                      precision=hp).reshape(K, WOC, QOC)

    # Per-step sample batching: keep >=2 grid steps when N>=2 (both v7x TCs
    # busy); batch samples per step to amortize step overhead on v5e/v6e.
    if N >= 2 and N % 2 == 0:
        NB = min(N // 2, 8)
        while N % NB:
            NB -= 1
    else:
        NB = 1
    grid = (N // NB,)

    kernel = _fused_kernel_factory(NB, H, WC, Ho)
    out = pl.pallas_call(
        kernel,
        out_shape=jax.ShapeDtypeStruct((N, Po, QOC), f32),
        grid=grid,
        in_specs=[
            pl.BlockSpec((NB, H, WC), lambda n: (n, 0, 0)),       # x
            pl.BlockSpec((K, WC, WOC), lambda n: (0, 0, 0)),      # banded conv W
            pl.BlockSpec((1, WOC), lambda n: (0, 0)),             # tiled bias
            pl.BlockSpec((WOC, Cout), lambda n: (0, 0)),          # group avg
            pl.BlockSpec((Cout, WOC), lambda n: (0, 0)),          # lane tiler
            pl.BlockSpec((2, Cout), lambda n: (0, 0)),            # gamma/beta
            pl.BlockSpec((K, Po, Ho), lambda n: (0, 0, 0)),       # H-pool sel
            pl.BlockSpec((K, WOC, QOC), lambda n: (0, 0, 0)),     # W-pool sel
        ],
        out_specs=pl.BlockSpec((NB, Po, QOC), lambda n: (n, 0, 0)),
        scratch_shapes=[pltpu.VMEM((H + 2 * PAD, WC), jnp.float32)],
        compiler_params=pltpu.CompilerParams(
            dimension_semantics=("parallel",)),
    )(x, wb, bias_t, gmat, tmat, gb, rsel, wsel)

    # (N, Po, Qo*Cout) -> (N, Cout, Po, Qo)
    return jnp.transpose(out.reshape(N, Po, Qo, Cout), (0, 3, 1, 2))


# ----------------------------------------------------------------------------
# Pure-JAX reference (for correctness check)
# ----------------------------------------------------------------------------
def _reference_forward(x_nchw, w_oihw, bias, gamma, beta):
    y = jax.lax.conv_general_dilated(
        x_nchw, w_oihw, window_strides=(1, 1),
        padding=((PAD, PAD), (PAD, PAD)),
        dimension_numbers=("NCHW", "OIHW", "NCHW"),
        precision=jax.lax.Precision.HIGHEST)
    y = y + bias[None, :, None, None]
    N, C, Hh, Ww = y.shape
    gc = C // GROUPS
    yg = y.reshape(N, GROUPS, gc, Hh, Ww)
    mean = jnp.mean(yg, axis=(2, 3, 4), keepdims=True)
    var = jnp.mean((yg - mean) ** 2, axis=(2, 3, 4), keepdims=True)
    yg = (yg - mean) * jax.lax.rsqrt(var + EPS_GN)
    y = yg.reshape(N, C, Hh, Ww)
    y = y * gamma[None, :, None, None] + beta[None, :, None, None]
    y = jnp.maximum(y, 0.0)
    y = jax.lax.reduce_window(y, -jnp.inf, jax.lax.max,
                              (1, 1, K, K), (1, 1, 2, 2), "VALID")
    return y  # Dropout2d identity in eval


if __name__ == "__main__":
    key = jax.random.PRNGKey(0)
    k_x, k_w, k_b, k_g, k_be = jax.random.split(key, 5)

    N, Cin, H, W, Cout = 2, 4, 16, 16, 32
    x = jax.random.normal(k_x, (N, Cin, H, W), jnp.float32)
    w = jax.random.normal(k_w, (Cout, Cin, K, K), jnp.float32) * (1.0 / (K * K * Cin)) ** 0.5
    b = jax.random.normal(k_b, (Cout,), jnp.float32) * 0.05
    gamma = 1.0 + 0.1 * jax.random.normal(k_g, (Cout,), jnp.float32)
    beta = 0.05 * jax.random.normal(k_be, (Cout,), jnp.float32)

    out = based_module_1_forward(x, w, b, gamma, beta)
    jax.block_until_ready(out)

    # shape: conv (pad=2) -> 18x18, maxpool(3, s=2) -> 8x8
    assert out.shape == (N, Cout, 8, 8), out.shape
    assert bool(jnp.all(jnp.isfinite(out)))
    assert bool(jnp.all(out >= 0.0))  # ReLU precedes MaxPool in semantics

    ref = _reference_forward(x, w, b, gamma, beta)
    assert bool(jnp.allclose(out, ref, rtol=1e-3, atol=1e-3)), (
        float(jnp.max(jnp.abs(out - ref))))

    print("KERNEL_OK")
</pallas_src>

<mosaic_0001>
module attributes {stable_mosaic.version = 11 : i64} {
  func.func @kernel(%arg0: i32, %arg1: memref<1x16x64xf32, #tpu.memory_space<vmem>>, %arg2: memref<3x64x576xf32, #tpu.memory_space<vmem>>, %arg3: memref<1x576xf32, #tpu.memory_space<vmem>>, %arg4: memref<576x32xf32, #tpu.memory_space<vmem>>, %arg5: memref<32x576xf32, #tpu.memory_space<vmem>>, %arg6: memref<2x32xf32, #tpu.memory_space<vmem>>, %arg7: memref<3x8x18xf32, #tpu.memory_space<vmem>>, %arg8: memref<3x576x256xf32, #tpu.memory_space<vmem>>, %arg9: memref<1x8x256xf32, #tpu.memory_space<vmem>>, %arg10: memref<20x64xf32, #tpu.memory_space<vmem>>) attributes {dimension_semantics = [#tpu.dimension_semantics<parallel>], iteration_bounds = array<i64: 2>, scalar_prefetch = 0 : i64, scratch_operands = 1 : i64, tpu.core_type = #tpu.core_type<tc>, window_params = [{transform_indices = @transform_0, window_bounds = array<i64: 1, 16, 64>}, {pipeline_mode = #tpu.pipeline_mode<synchronous>, transform_indices = @transform_1, window_bounds = array<i64: 3, 64, 576>}, {pipeline_mode = #tpu.pipeline_mode<synchronous>, transform_indices = @transform_2, window_bounds = array<i64: 1, 576>}, {pipeline_mode = #tpu.pipeline_mode<synchronous>, transform_indices = @transform_3, window_bounds = array<i64: 576, 32>}, {pipeline_mode = #tpu.pipeline_mode<synchronous>, transform_indices = @transform_4, window_bounds = array<i64: 32, 576>}, {pipeline_mode = #tpu.pipeline_mode<synchronous>, transform_indices = @transform_5, window_bounds = array<i64: 2, 32>}, {pipeline_mode = #tpu.pipeline_mode<synchronous>, transform_indices = @transform_6, window_bounds = array<i64: 3, 8, 18>}, {pipeline_mode = #tpu.pipeline_mode<synchronous>, transform_indices = @transform_7, window_bounds = array<i64: 3, 576, 256>}, {transform_indices = @transform_8, window_bounds = array<i64: 1, 8, 256>}]} {
    %cst = arith.constant 0.000000e+00 : f32
    %0 = vector.broadcast %cst : f32 to vector<2x64xf32>
    %c0 = arith.constant 0 : index
    %c0_0 = arith.constant 0 : index
    %1 = vector.load %arg10[%c0, %c0_0] : memref<20x64xf32, #tpu.memory_space<vmem>>, vector<2x64xf32>
    tpu.vector_store %arg10[%c0, %c0_0], %0 {strides = array<i32>} : memref<20x64xf32, #tpu.memory_space<vmem>>, vector<2x64xf32>,
    %cst_1 = arith.constant 0.000000e+00 : f32
    %2 = vector.broadcast %cst_1 : f32 to vector<2x64xf32>
    %c18 = arith.constant 18 : index
    %c0_2 = arith.constant 0 : index
    %3 = vector.load %arg10[%c18, %c0_2] : memref<20x64xf32, #tpu.memory_space<vmem>>, vector<2x64xf32>
    tpu.vector_store %arg10[%c18, %c0_2], %2 {strides = array<i32>} : memref<20x64xf32, #tpu.memory_space<vmem>>, vector<2x64xf32>,
    %c0_3 = arith.constant 0 : index
    %c0_4 = arith.constant 0 : index
    %c0_5 = arith.constant 0 : index
    %4 = vector.load %arg1[%c0_3, %c0_4, %c0_5] : memref<1x16x64xf32, #tpu.memory_space<vmem>>, vector<1x16x64xf32>
    %5 = vector.shape_cast %4 : vector<1x16x64xf32> to vector<16x64xf32>
    %c2 = arith.constant 2 : index
    %c0_6 = arith.constant 0 : index
    %6 = vector.load %arg10[%c2, %c0_6] : memref<20x64xf32, #tpu.memory_space<vmem>>, vector<16x64xf32>
    tpu.vector_store %arg10[%c2, %c0_6], %5 {strides = array<i32>} : memref<20x64xf32, #tpu.memory_space<vmem>>, vector<16x64xf32>,
    %c0_7 = arith.constant 0 : index
    %c0_8 = arith.constant 0 : index
    %7 = vector.load %arg10[%c0_7, %c0_8] : memref<20x64xf32, #tpu.memory_space<vmem>>, vector<18x64xf32>
    %c0_9 = arith.constant 0 : index
    %c0_10 = arith.constant 0 : index
    %c0_11 = arith.constant 0 : index
    %8 = vector.load %arg2[%c0_9, %c0_10, %c0_11] : memref<3x64x576xf32, #tpu.memory_space<vmem>>, vector<1x64x576xf32>
    %9 = vector.shape_cast %8 : vector<1x64x576xf32> to vector<64x576xf32>
    %cst_12 = arith.constant dense<0.000000e+00> : vector<18x576xf32>
    %10 = tpu.matmul %7, %9, %cst_12 {dimension_numbers = #tpu.dot_dimension_numbers<[1], [0], [0], [1], [0, 0, 1, 1], [], []>} : vector<18x64xf32>, vector<64x576xf32>, vector<18x576xf32> -> vector<18x576xf32>
    %c1 = arith.constant 1 : index
    %c0_13 = arith.constant 0 : index
    %11 = vector.load %arg10[%c1, %c0_13] : memref<20x64xf32, #tpu.memory_space<vmem>>, vector<18x64xf32>
    %c1_14 = arith.constant 1 : index
    %c0_15 = arith.constant 0 : index
    %c0_16 = arith.constant 0 : index
    %12 = vector.load %arg2[%c1_14, %c0_15, %c0_16] : memref<3x64x576xf32, #tpu.memory_space<vmem>>, vector<1x64x576xf32>
    %13 = vector.shape_cast %12 : vector<1x64x576xf32> to vector<64x576xf32>
    %cst_17 = arith.constant dense<0.000000e+00> : vector<18x576xf32>
    %14 = tpu.matmul %11, %13, %cst_17 {dimension_numbers = #tpu.dot_dimension_numbers<[1], [0], [0], [1], [0, 0, 1, 1], [], []>} : vector<18x64xf32>, vector<64x576xf32>, vector<18x576xf32> -> vector<18x576xf32>
    %15 = arith.addf %10, %14 : vector<18x576xf32>
    %c2_18 = arith.constant 2 : index
    %c0_19 = arith.constant 0 : index
    %16 = vector.load %arg10[%c2_18, %c0_19] : memref<20x64xf32, #tpu.memory_space<vmem>>, vector<18x64xf32>
    %c2_20 = arith.constant 2 : index
    %c0_21 = arith.constant 0 : index
    %c0_22 = arith.constant 0 : index
    %17 = vector.load %arg2[%c2_20, %c0_21, %c0_22] : memref<3x64x576xf32, #tpu.memory_space<vmem>>, vector<1x64x576xf32>
    %18 = vector.shape_cast %17 : vector<1x64x576xf32> to vector<64x576xf32>
    %cst_23 = arith.constant dense<0.000000e+00> : vector<18x576xf32>
    %19 = tpu.matmul %16, %18, %cst_23 {dimension_numbers = #tpu.dot_dimension_numbers<[1], [0], [0], [1], [0, 0, 1, 1], [], []>} : vector<18x64xf32>, vector<64x576xf32>, vector<18x576xf32> -> vector<18x576xf32>
    %20 = arith.addf %15, %19 : vector<18x576xf32>
    %c0_24 = arith.constant 0 : index
    %c0_25 = arith.constant 0 : index
    %21 = vector.load %arg3[%c0_24, %c0_25] : memref<1x576xf32, #tpu.memory_space<vmem>>, vector<1x576xf32>
    %22 = vector.broadcast %21 : vector<1x576xf32> to vector<18x576xf32>
    %23 = arith.addf %20, %22 : vector<18x576xf32>
    %cst_26 = arith.constant 1.000000e+00 : f32
    %24 = vector.broadcast %cst_26 : f32 to vector<1x18xf32>
    %cst_27 = arith.constant dense<0.000000e+00> : vector<1x576xf32>
    %25 = tpu.matmul %24, %23, %cst_27 {dimension_numbers = #tpu.dot_dimension_numbers<[1], [0], [0], [1], [0, 0, 1, 1], [], []>} : vector<1x18xf32>, vector<18x576xf32>, vector<1x576xf32> -> vector<1x576xf32>
    %26 = arith.mulf %23, %23 : vector<18x576xf32>
    %cst_28 = arith.constant dense<0.000000e+00> : vector<1x576xf32>
    %27 = tpu.matmul %24, %26, %cst_28 {dimension_numbers = #tpu.dot_dimension_numbers<[1], [0], [0], [1], [0, 0, 1, 1], [], []>} : vector<1x18xf32>, vector<18x576xf32>, vector<1x576xf32> -> vector<1x576xf32>
    %28 = tpu.concatenate %25, %27 in 0 : vector<1x576xf32>, vector<1x576xf32> -> vector<2x576xf32>
    %c0_29 = arith.constant 0 : index
    %c0_30 = arith.constant 0 : index
    %29 = vector.load %arg4[%c0_29, %c0_30] : memref<576x32xf32, #tpu.memory_space<vmem>>, vector<576x32xf32>
    %cst_31 = arith.constant dense<0.000000e+00> : vector<2x32xf32>
    %30 = tpu.matmul %28, %29, %cst_31 {dimension_numbers = #tpu.dot_dimension_numbers<[1], [0], [0], [1], [0, 0, 1, 1], [], []>} : vector<2x576xf32>, vector<576x32xf32>, vector<2x32xf32> -> vector<2x32xf32>
    %31 = vector.extract_strided_slice %30 {offsets = [0, 0], sizes = [1, 32], strides = [1, 1]} : vector<2x32xf32> to vector<1x32xf32>
    %32 = vector.extract_strided_slice %30 {offsets = [1, 0], sizes = [1, 32], strides = [1, 1]} : vector<2x32xf32> to vector<1x32xf32>
    %33 = arith.mulf %31, %31 : vector<1x32xf32>
    %34 = arith.subf %32, %33 : vector<1x32xf32>
    %cst_32 = arith.constant 0.000000e+00 : f32
    %35 = vector.broadcast %cst_32 : f32 to vector<1x32xf32>
    %36 = arith.maximumf %34, %35 : vector<1x32xf32>
    %c0_33 = arith.constant 0 : index
    %c0_34 = arith.constant 0 : index
    %37 = vector.load %arg6[%c0_33, %c0_34] : memref<2x32xf32, #tpu.memory_space<vmem>>, vector<1x32xf32>
    %cst_35 = arith.constant 9.99999974E-6 : f32
    %38 = vector.broadcast %cst_35 : f32 to vector<1x32xf32>
    %39 = arith.addf %36, %38 : vector<1x32xf32>
    %40 = math.rsqrt %39 : vector<1x32xf32>
    %41 = arith.mulf %37, %40 : vector<1x32xf32>
    %c1_36 = arith.constant 1 : index
    %c0_37 = arith.constant 0 : index
    %42 = vector.load %arg6[%c1_36, %c0_37] : memref<2x32xf32, #tpu.memory_space<vmem>>, vector<1x32xf32>
    %43 = arith.mulf %31, %41 : vector<1x32xf32>
    %44 = arith.subf %42, %43 : vector<1x32xf32>
    %45 = tpu.concatenate %41, %44 in 0 : vector<1x32xf32>, vector<1x32xf32> -> vector<2x32xf32>
    %c0_38 = arith.constant 0 : index
    %c0_39 = arith.constant 0 : index
    %46 = vector.load %arg5[%c0_38, %c0_39] : memref<32x576xf32, #tpu.memory_space<vmem>>, vector<32x576xf32>
    %cst_40 = arith.constant dense<0.000000e+00> : vector<2x576xf32>
    %47 = tpu.matmul %45, %46, %cst_40 {dimension_numbers = #tpu.dot_dimension_numbers<[1], [0], [0], [1], [0, 0, 1, 1], [], []>} : vector<2x32xf32>, vector<32x576xf32>, vector<2x576xf32> -> vector<2x576xf32>
    %48 = vector.extract_strided_slice %47 {offsets = [0, 0], sizes = [1, 576], strides = [1, 1]} : vector<2x576xf32> to vector<1x576xf32>
    %49 = vector.broadcast %48 : vector<1x576xf32> to vector<18x576xf32>
    %50 = arith.mulf %23, %49 : vector<18x576xf32>
    %51 = vector.extract_strided_slice %47 {offsets = [1, 0], sizes = [1, 576], strides = [1, 1]} : vector<2x576xf32> to vector<1x576xf32>
    %52 = vector.broadcast %51 : vector<1x576xf32> to vector<18x576xf32>
    %53 = arith.addf %50, %52 : vector<18x576xf32>
    %c0_41 = arith.constant 0 : index
    %c0_42 = arith.constant 0 : index
    %c0_43 = arith.constant 0 : index
    %54 = vector.load %arg7[%c0_41, %c0_42, %c0_43] : memref<3x8x18xf32, #tpu.memory_space<vmem>>, vector<1x8x18xf32>
    %55 = vector.shape_cast %54 : vector<1x8x18xf32> to vector<8x18xf32>
    %cst_44 = arith.constant dense<0.000000e+00> : vector<8x576xf32>
    %56 = tpu.matmul %55, %53, %cst_44 {dimension_numbers = #tpu.dot_dimension_numbers<[1], [0], [0], [1], [0, 0, 1, 1], [], []>} : vector<8x18xf32>, vector<18x576xf32>, vector<8x576xf32> -> vector<8x576xf32>
    %c1_45 = arith.constant 1 : index
    %c0_46 = arith.constant 0 : index
    %c0_47 = arith.constant 0 : index
    %57 = vector.load %arg7[%c1_45, %c0_46, %c0_47] : memref<3x8x18xf32, #tpu.memory_space<vmem>>, vector<1x8x18xf32>
    %58 = vector.shape_cast %57 : vector<1x8x18xf32> to vector<8x18xf32>
    %cst_48 = arith.constant dense<0.000000e+00> : vector<8x576xf32>
    %59 = tpu.matmul %58, %53, %cst_48 {dimension_numbers = #tpu.dot_dimension_numbers<[1], [0], [0], [1], [0, 0, 1, 1], [], []>} : vector<8x18xf32>, vector<18x576xf32>, vector<8x576xf32> -> vector<8x576xf32>
    %60 = arith.maximumf %56, %59 : vector<8x576xf32>
    %c2_49 = arith.constant 2 : index
    %c0_50 = arith.constant 0 : index
    %c0_51 = arith.constant 0 : index
    %61 = vector.load %arg7[%c2_49, %c0_50, %c0_51] : memref<3x8x18xf32, #tpu.memory_space<vmem>>, vector<1x8x18xf32>
    %62 = vector.shape_cast %61 : vector<1x8x18xf32> to vector<8x18xf32>
    %cst_52 = arith.constant dense<0.000000e+00> : vector<8x576xf32>
    %63 = tpu.matmul %62, %53, %cst_52 {dimension_numbers = #tpu.dot_dimension_numbers<[1], [0], [0], [1], [0, 0, 1, 1], [], []>} : vector<8x18xf32>, vector<18x576xf32>, vector<8x576xf32> -> vector<8x576xf32>
    %64 = arith.maximumf %60, %63 : vector<8x576xf32>
    %c0_53 = arith.constant 0 : index
    %c0_54 = arith.constant 0 : index
    %c0_55 = arith.constant 0 : index
    %65 = vector.load %arg8[%c0_53, %c0_54, %c0_55] : memref<3x576x256xf32, #tpu.memory_space<vmem>>, vector<1x576x256xf32>
    %66 = vector.shape_cast %65 : vector<1x576x256xf32> to vector<576x256xf32>
    %cst_56 = arith.constant dense<0.000000e+00> : vector<8x256xf32>
    %67 = tpu.matmul %64, %66, %cst_56 {dimension_numbers = #tpu.dot_dimension_numbers<[1], [0], [0], [1], [0, 0, 1, 1], [], []>} : vector<8x576xf32>, vector<576x256xf32>, vector<8x256xf32> -> vector<8x256xf32>
    %c1_57 = arith.constant 1 : index
    %c0_58 = arith.constant 0 : index
    %c0_59 = arith.constant 0 : index
    %68 = vector.load %arg8[%c1_57, %c0_58, %c0_59] : memref<3x576x256xf32, #tpu.memory_space<vmem>>, vector<1x576x256xf32>
    %69 = vector.shape_cast %68 : vector<1x576x256xf32> to vector<576x256xf32>
    %cst_60 = arith.constant dense<0.000000e+00> : vector<8x256xf32>
    %70 = tpu.matmul %64, %69, %cst_60 {dimension_numbers = #tpu.dot_dimension_numbers<[1], [0], [0], [1], [0, 0, 1, 1], [], []>} : vector<8x576xf32>, vector<576x256xf32>, vector<8x256xf32> -> vector<8x256xf32>
    %71 = arith.maximumf %67, %70 : vector<8x256xf32>
    %c2_61 = arith.constant 2 : index
    %c0_62 = arith.constant 0 : index
    %c0_63 = arith.constant 0 : index
    %72 = vector.load %arg8[%c2_61, %c0_62, %c0_63] : memref<3x576x256xf32, #tpu.memory_space<vmem>>, vector<1x576x256xf32>
    %73 = vector.shape_cast %72 : vector<1x576x256xf32> to vector<576x256xf32>
    %cst_64 = arith.constant dense<0.000000e+00> : vector<8x256xf32>
    %74 = tpu.matmul %64, %73, %cst_64 {dimension_numbers = #tpu.dot_dimension_numbers<[1], [0], [0], [1], [0, 0, 1, 1], [], []>} : vector<8x576xf32>, vector<576x256xf32>, vector<8x256xf32> -> vector<8x256xf32>
    %75 = arith.maximumf %71, %74 : vector<8x256xf32>
    %cst_65 = arith.constant 0.000000e+00 : f32
    %76 = vector.broadcast %cst_65 : f32 to vector<8x256xf32>
    %77 = arith.maximumf %75, %76 : vector<8x256xf32>
    %c0_66 = arith.constant 0 : index
    %c0_67 = arith.constant 0 : index
    %c0_68 = arith.constant 0 : index
    %78 = vector.load %arg9[%c0_66, %c0_67, %c0_68] : memref<1x8x256xf32, #tpu.memory_space<vmem>>, vector<1x8x256xf32>
    %79 = vector.shape_cast %78 : vector<1x8x256xf32> to vector<8x256xf32>
    %80 = vector.shape_cast %77 : vector<8x256xf32> to vector<1x8x256xf32>
    tpu.vector_store %arg9[%c0_66, %c0_67, %c0_68], %80 {strides = array<i32>} : memref<1x8x256xf32, #tpu.memory_space<vmem>>, vector<1x8x256xf32>,
    return
  }
  func.func @transform_0(%arg0: i32) -> (i32, i32, i32) {
    %c0_i32 = arith.constant 0 : i32
    %c0_i32_0 = arith.constant 0 : i32
    %c0_i32_1 = arith.constant 0 : i32
    return %arg0, %c0_i32, %c0_i32_0 : i32, i32, i32
  }
  func.func @transform_1(%arg0: i32) -> (i32, i32, i32) {
    %c0_i32 = arith.constant 0 : i32
    %c0_i32_0 = arith.constant 0 : i32
    %c0_i32_1 = arith.constant 0 : i32
    %c0_i32_2 = arith.constant 0 : i32
    return %c0_i32, %c0_i32_0, %c0_i32_1 : i32, i32, i32
  }
  func.func @transform_2(%arg0: i32) -> (i32, i32) {
    %c0_i32 = arith.constant 0 : i32
    %c0_i32_0 = arith.constant 0 : i32
    %c0_i32_1 = arith.constant 0 : i32
    return %c0_i32, %c0_i32_0 : i32, i32
  }
  func.func @transform_3(%arg0: i32) -> (i32, i32) {
    %c0_i32 = arith.constant 0 : i32
    %c0_i32_0 = arith.constant 0 : i32
    %c0_i32_1 = arith.constant 0 : i32
    return %c0_i32, %c0_i32_0 : i32, i32
  }
  func.func @transform_4(%arg0: i32) -> (i32, i32) {
    %c0_i32 = arith.constant 0 : i32
    %c0_i32_0 = arith.constant 0 : i32
    %c0_i32_1 = arith.constant 0 : i32
    return %c0_i32, %c0_i32_0 : i32, i32
  }
  func.func @transform_5(%arg0: i32) -> (i32, i32) {
    %c0_i32 = arith.constant 0 : i32
    %c0_i32_0 = arith.constant 0 : i32
    %c0_i32_1 = arith.constant 0 : i32
    return %c0_i32, %c0_i32_0 : i32, i32
  }
  func.func @transform_6(%arg0: i32) -> (i32, i32, i32) {
    %c0_i32 = arith.constant 0 : i32
    %c0_i32_0 = arith.constant 0 : i32
    %c0_i32_1 = arith.constant 0 : i32
    %c0_i32_2 = arith.constant 0 : i32
    return %c0_i32, %c0_i32_0, %c0_i32_1 : i32, i32, i32
  }
  func.func @transform_7(%arg0: i32) -> (i32, i32, i32) {
    %c0_i32 = arith.constant 0 : i32
    %c0_i32_0 = arith.constant 0 : i32
    %c0_i32_1 = arith.constant 0 : i32
    %c0_i32_2 = arith.constant 0 : i32
    return %c0_i32, %c0_i32_0, %c0_i32_1 : i32, i32, i32
  }
  func.func @transform_8(%arg0: i32) -> (i32, i32, i32) {
    %c0_i32 = arith.constant 0 : i32
    %c0_i32_0 = arith.constant 0 : i32
    %c0_i32_1 = arith.constant 0 : i32
    return %arg0, %c0_i32, %c0_i32_0 : i32, i32, i32
  }
}

</mosaic_0001>

<llo_original>
// kernel: tile.29
$region0: #{tile.29}
  %s0 = inlined_call_operand.vmem [shape: f32[32,18,32], index: 0, kind: input, shape index: {}]
  %s1 = inlined_call_operand.vmem [shape: f32[32,576], index: 1, kind: output, shape index: {}]
  %v2 = vld [vmem:[%s0] ss:$4 sm:$0x1f]
  %vm3 = vcmask 261120
  %4 = vst.msk [vmem:[%s1] ss:$8 sm:$0xf] %vm3, %v2
  %s5 = scalar_lea.vmem %s1, 28
  %6 = vst.msk [vmem:[%s5] sm:$0x10] %vm3, %v2
  %s7 = scalar_lea.vmem %s0, 24
  %v8 = vld [vmem:[%s7] ss:$4 sm:$0x1f]
  %vm9 = vcmask 261120
  %s10 = scalar_lea.vmem %s1, 1
  %11 = vst.msk [vmem:[%s10] ss:$8 sm:$0xf] %vm9, %v8
  %s12 = scalar_lea.vmem %s1, 29
  %13 = vst.msk [vmem:[%s12] sm:$0x10] %vm9, %v8
  %s14 = scalar_lea.vmem %s0, 48
  %v15 = vld [vmem:[%s14] ss:$4 sm:$0x1f]
  %vm16 = vcmask 261120
  %s17 = scalar_lea.vmem %s1, 2
  %18 = vst.msk [vmem:[%s17] ss:$8 sm:$0xf] %vm16, %v15
  %s19 = scalar_lea.vmem %s1, 30
  %20 = vst.msk [vmem:[%s19] sm:$0x10] %vm16, %v15
  %s21 = scalar_lea.vmem %s0, 72
  %v22 = vld [vmem:[%s21] ss:$4 sm:$0x1f]
  %vm23 = vcmask 261120
  %s24 = scalar_lea.vmem %s1, 3
  %25 = vst.msk [vmem:[%s24] ss:$8 sm:$0xf] %vm23, %v22
  %s26 = scalar_lea.vmem %s1, 31
  %27 = vst.msk [vmem:[%s26] sm:$0x10] %vm23, %v22
  %s28 = scalar_lea.vmem %s0, 96
  %v29 = vld [vmem:[%s28] ss:$4 sm:$0x1f]
  %vm30 = vcmask 261120
  %s31 = scalar_lea.vmem %s1, 4
  %32 = vst.msk [vmem:[%s31] ss:$8 sm:$0xf] %vm30, %v29
  %s33 = scalar_lea.vmem %s1, 32
  %34 = vst.msk [vmem:[%s33] sm:$0x10] %vm30, %v29
  %s35 = scalar_lea.vmem %s0, 120
  %v36 = vld [vmem:[%s35] ss:$4 sm:$0x1f]
  %vm37 = vcmask 261120
  %s38 = scalar_lea.vmem %s1, 5
  %39 = vst.msk [vmem:[%s38] ss:$8 sm:$0xf] %vm37, %v36
  %s40 = scalar_lea.vmem %s1, 33
  %41 = vst.msk [vmem:[%s40] sm:$0x10] %vm37, %v36
  %s42 = scalar_lea.vmem %s0, 144
  %v43 = vld [vmem:[%s42] ss:$4 sm:$0x1f]
  %vm44 = vcmask 261120
  %s45 = scalar_lea.vmem %s1, 6
  %46 = vst.msk [vmem:[%s45] ss:$8 sm:$0xf] %vm44, %v43
  %s47 = scalar_lea.vmem %s1, 34
  %48 = vst.msk [vmem:[%s47] sm:$0x10] %vm44, %v43
  %s49 = scalar_lea.vmem %s0, 168
  %v50 = vld [vmem:[%s49] ss:$4 sm:$0x1f]
  %vm51 = vcmask 261120
  %s52 = scalar_lea.vmem %s1, 7
  %53 = vst.msk [vmem:[%s52] ss:$8 sm:$0xf] %vm51, %v50
  %s54 = scalar_lea.vmem %s1, 35
  %55 = vst.msk [vmem:[%s54] sm:$0x10] %vm51, %v50
  %s56 = scalar_lea.vmem %s0, 192
  %v57 = vld [vmem:[%s56] ss:$4 sm:$0x1f]
  %vm58 = vcmask 261120
  %s59 = scalar_lea.vmem %s1, 40
  %60 = vst.msk [vmem:[%s59] ss:$8 sm:$0xf] %vm58, %v57
  %s61 = scalar_lea.vmem %s1, 68
  %62 = vst.msk [vmem:[%s61] sm:$0x10] %vm58, %v57
  %s63 = scalar_lea.vmem %s0, 216
  %v64 = vld [vmem:[%s63] ss:$4 sm:$0x1f]
  %vm65 = vcmask 261120
  %s66 = scalar_lea.vmem %s1, 41
  %67 = vst.msk [vmem:[%s66] ss:$8 sm:$0xf] %vm65, %v64
  %s68 = scalar_lea.vmem %s1, 69
  %69 = vst.msk [vmem:[%s68] sm:$0x10] %vm65, %v64
  %s70 = scalar_lea.vmem %s0, 240
  %v71 = vld [vmem:[%s70] ss:$4 sm:$0x1f]
  %vm72 = vcmask 261120
  %s73 = scalar_lea.vmem %s1, 42
  %74 = vst.msk [vmem:[%s73] ss:$8 sm:$0xf] %vm72, %v71
  %s75 = scalar_lea.vmem %s1, 70
  %76 = vst.msk [vmem:[%s75] sm:$0x10] %vm72, %v71
  %s77 = scalar_lea.vmem %s0, 264
  %v78 = vld [vmem:[%s77] ss:$4 sm:$0x1f]
  %vm79 = vcmask 261120
  %s80 = scalar_lea.vmem %s1, 43
  %81 = vst.msk [vmem:[%s80] ss:$8 sm:$0xf] %vm79, %v78
  %s82 = scalar_lea.vmem %s1, 71
  %83 = vst.msk [vmem:[%s82] sm:$0x10] %vm79, %v78
  %s84 = scalar_lea.vmem %s0, 288
  %v85 = vld [vmem:[%s84] ss:$4 sm:$0x1f]
  %vm86 = vcmask 261120
  %s87 = scalar_lea.vmem %s1, 44
  %88 = vst.msk [vmem:[%s87] ss:$8 sm:$0xf] %vm86, %v85
  %s89 = scalar_lea.vmem %s1, 72
  %90 = vst.msk [vmem:[%s89] sm:$0x10] %vm86, %v85
  %s91 = scalar_lea.vmem %s0, 312
  %v92 = vld [vmem:[%s91] ss:$4 sm:$0x1f]
  %vm93 = vcmask 261120
  %s94 = scalar_lea.vmem %s1, 45
  %95 = vst.msk [vmem:[%s94] ss:$8 sm:$0xf] %vm93, %v92
  %s96 = scalar_lea.vmem %s1, 73
  %97 = vst.msk [vmem:[%s96] sm:$0x10] %vm93, %v92
  %s98 = scalar_lea.vmem %s0, 336
  %v99 = vld [vmem:[%s98] ss:$4 sm:$0x1f]
  %vm100 = vcmask 261120
  %s101 = scalar_lea.vmem %s1, 46
  %102 = vst.msk [vmem:[%s101] ss:$8 sm:$0xf] %vm100, %v99
  %s103 = scalar_lea.vmem %s1, 74
  %104 = vst.msk [vmem:[%s103] sm:$0x10] %vm100, %v99
  %s105 = scalar_lea.vmem %s0, 360
  %v106 = vld [vmem:[%s105] ss:$4 sm:$0x1f]
  %vm107 = vcmask 261120
  %s108 = scalar_lea.vmem %s1, 47
  %109 = vst.msk [vmem:[%s108] ss:$8 sm:$0xf] %vm107, %v106
  %s110 = scalar_lea.vmem %s1, 75
  %111 = vst.msk [vmem:[%s110] sm:$0x10] %vm107, %v106
  %s112 = scalar_lea.vmem %s0, 384
  %v113 = vld [vmem:[%s112] ss:$4 sm:$0x1f]
  %vm114 = vcmask 261120
  %s115 = scalar_lea.vmem %s1, 80
  %116 = vst.msk [vmem:[%s115] ss:$8 sm:$0xf] %vm114, %v113
  %s117 = scalar_lea.vmem %s1, 108
  %118 = vst.msk [vmem:[%s117] sm:$0x10] %vm114, %v113
  %s119 = scalar_lea.vmem %s0, 408
  %v120 = vld [vmem:[%s119] ss:$4 sm:$0x1f]
  %vm121 = vcmask 261120
  %s122 = scalar_lea.vmem %s1, 81
  %123 = vst.msk [vmem:[%s122] ss:$8 sm:$0xf] %vm121, %v120
  %s124 = scalar_lea.vmem %s1, 109
  %125 = vst.msk [vmem:[%s124] sm:$0x10] %vm121, %v120
  %s126 = scalar_lea.vmem %s0, 432
  %v127 = vld [vmem:[%s126] ss:$4 sm:$0x1f]
  %vm128 = vcmask 261120
  %s129 = scalar_lea.vmem %s1, 82
  %130 = vst.msk [vmem:[%s129] ss:$8 sm:$0xf] %vm128, %v127
  %s131 = scalar_lea.vmem %s1, 110
  %132 = vst.msk [vmem:[%s131] sm:$0x10] %vm128, %v127
  %s133 = scalar_lea.vmem %s0, 456
  %v134 = vld [vmem:[%s133] ss:$4 sm:$0x1f]
  %vm135 = vcmask 261120
  %s136 = scalar_lea.vmem %s1, 83
  %137 = vst.msk [vmem:[%s136] ss:$8 sm:$0xf] %vm135, %v134
  %s138 = scalar_lea.vmem %s1, 111
  %139 = vst.msk [vmem:[%s138] sm:$0x10] %vm135, %v134
  %s140 = scalar_lea.vmem %s0, 480
  %v141 = vld [vmem:[%s140] ss:$4 sm:$0x1f]
  %vm142 = vcmask 261120
  %s143 = scalar_lea.vmem %s1, 84
  %144 = vst.msk [vmem:[%s143] ss:$8 sm:$0xf] %vm142, %v141
  %s145 = scalar_lea.vmem %s1, 112
  %146 = vst.msk [vmem:[%s145] sm:$0x10] %vm142, %v141
  %s147 = scalar_lea.vmem %s0, 504
  %v148 = vld [vmem:[%s147] ss:$4 sm:$0x1f]
  %vm149 = vcmask 261120
  %s150 = scalar_lea.vmem %s1, 85
  %151 = vst.msk [vmem:[%s150] ss:$8 sm:$0xf] %vm149, %v148
  %s152 = scalar_lea.vmem %s1, 113
  %153 = vst.msk [vmem:[%s152] sm:$0x10] %vm149, %v148
  %s154 = scalar_lea.vmem %s0, 528
  %v155 = vld [vmem:[%s154] ss:$4 sm:$0x1f]
  %vm156 = vcmask 261120
  %s157 = scalar_lea.vmem %s1, 86
  %158 = vst.msk [vmem:[%s157] ss:$8 sm:$0xf] %vm156, %v155
  %s159 = scalar_lea.vmem %s1, 114
  %160 = vst.msk [vmem:[%s159] sm:$0x10] %vm156, %v155
  %s161 = scalar_lea.vmem %s0, 552
  %v162 = vld [vmem:[%s161] ss:$4 sm:$0x1f]
  %vm163 = vcmask 261120
  %s164 = scalar_lea.vmem %s1, 87
  %165 = vst.msk [vmem:[%s164] ss:$8 sm:$0xf] %vm163, %v162
  %s166 = scalar_lea.vmem %s1, 115
  %167 = vst.msk [vmem:[%s166] sm:$0x10] %vm163, %v162
  %s168 = scalar_lea.vmem %s0, 576
  %v169 = vld [vmem:[%s168] ss:$4 sm:$0x1f]
  %vm170 = vcmask 261120
  %s171 = scalar_lea.vmem %s1, 120
  %172 = vst.msk [vmem:[%s171] ss:$8 sm:$0xf] %vm170, %v169
  %s173 = scalar_lea.vmem %s1, 148
  %174 = vst.msk [vmem:[%s173] sm:$0x10] %vm170, %v169
  %s175 = scalar_lea.vmem %s0, 600
  %v176 = vld [vmem:[%s175] ss:$4 sm:$0x1f]
  %vm177 = vcmask 261120
  %s178 = scalar_lea.vmem %s1, 121
  %179 = vst.msk [vmem:[%s178] ss:$8 sm:$0xf] %vm177, %v176
  %s180 = scalar_lea.vmem %s1, 149
  %181 = vst.msk [vmem:[%s180] sm:$0x10] %vm177, %v176
  %s182 = scalar_lea.vmem %s0, 624
  %v183 = vld [vmem:[%s182] ss:$4 sm:$0x1f]
  %vm184 = vcmask 261120
  %s185 = scalar_lea.vmem %s1, 122
  %186 = vst.msk [vmem:[%s185] ss:$8 sm:$0xf] %vm184, %v183
  %s187 = scalar_lea.vmem %s1, 150
  %188 = vst.msk [vmem:[%s187] sm:$0x10] %vm184, %v183
  %s189 = scalar_lea.vmem %s0, 648
  %v190 = vld [vmem:[%s189] ss:$4 sm:$0x1f]
  %vm191 = vcmask 261120
  %s192 = scalar_lea.vmem %s1, 123
  %193 = vst.msk [vmem:[%s192] ss:$8 sm:$0xf] %vm191, %v190
  %s194 = scalar_lea.vmem %s1, 151
  %195 = vst.msk [vmem:[%s194] sm:$0x10] %vm191, %v190
  %s196 = scalar_lea.vmem %s0, 672
  %v197 = vld [vmem:[%s196] ss:$4 sm:$0x1f]
  %vm198 = vcmask 261120
  %s199 = scalar_lea.vmem %s1, 124
  %200 = vst.msk [vmem:[%s199] ss:$8 sm:$0xf] %vm198, %v197
  %s201 = scalar_lea.vmem %s1, 152
  %202 = vst.msk [vmem:[%s201] sm:$0x10] %vm198, %v197
  %s203 = scalar_lea.vmem %s0, 696
  %v204 = vld [vmem:[%s203] ss:$4 sm:$0x1f]
  %vm205 = vcmask 261120
  %s206 = scalar_lea.vmem %s1, 125
  %207 = vst.msk [vmem:[%s206] ss:$8 sm:$0xf] %vm205, %v204
  %s208 = scalar_lea.vmem %s1, 153
  %209 = vst.msk [vmem:[%s208] sm:$0x10] %vm205, %v204
  %s210 = scalar_lea.vmem %s0, 720
  %v211 = vld [vmem:[%s210] ss:$4 sm:$0x1f]
  %vm212 = vcmask 261120
  %s213 = scalar_lea.vmem %s1, 126
  %214 = vst.msk [vmem:[%s213] ss:$8 sm:$0xf] %vm212, %v211
  %s215 = scalar_lea.vmem %s1, 154
  %216 = vst.msk [vmem:[%s215] sm:$0x10] %vm212, %v211
  %s217 = scalar_lea.vmem %s0, 744
  %v218 = vld [vmem:[%s217] ss:$4 sm:$0x1f]
  %vm219 = vcmask 261120
  %s220 = scalar_lea.vmem %s1, 127
  %221 = vst.msk [vmem:[%s220] ss:$8 sm:$0xf] %vm219, %v218
  %s222 = scalar_lea.vmem %s1, 155
  %223 = vst.msk [vmem:[%s222] sm:$0x10] %vm219, %v218
  %s224 = scalar_lea.vmem %s0, 3
  %v225 = vld [vmem:[%s224] ss:$24 sm:$0xf]
  %s226 = scalar_lea.vmem %s0, 3
  %v227 = vld [vmem:[%s226] ss:$24 sm:$0xf0]
  %vm228 = vcmask 1047556
  %v229 = vsel %vm228, %v227, %v225
  %230 = vrot.lane.b32.xlu0 %v229, 96
  %v231 = vpop.permute.xlu0 %230
  %vm232 = vcmask 1048320
  %233 = vst.msk [vmem:[%s1] sm:$0xff] %vm232, %v231
  %s234 = scalar_lea.vmem %s0, 207
  %v235 = vld [vmem:[%s234] ss:$24 sm:$0xf]
  %s236 = scalar_lea.vmem %s0, 207
  %v237 = vld [vmem:[%s236] ss:$24 sm:$0xf0]
  %vm238 = vcmask 1047556
  %v239 = vsel %vm238, %v237, %v235
  %240 = vrot.lane.b32.xlu0 %v239, 96
  %v241 = vpop.permute.xlu0 %240
  %vm242 = vcmask 1048320
  %s243 = scalar_lea.vmem %s1, 64
  %244 = vst.msk [vmem:[%s243] sm:$0xff] %vm242, %v241
  %s245 = scalar_lea.vmem %s0, 395
  %v246 = vld [vmem:[%s245] ss:$24 sm:$0xf]
  %s247 = scalar_lea.vmem %s0, 395
  %v248 = vld [vmem:[%s247] ss:$24 sm:$0xf0]
  %vm249 = vcmask 1047556
  %v250 = vsel %vm249, %v248, %v246
  %251 = vrot.lane.b32.xlu0 %v250, 96
  %v252 = vpop.permute.xlu0 %251
  %vm253 = vcmask 1048320
  %s254 = scalar_lea.vmem %s1, 96
  %255 = vst.msk [vmem:[%s254] sm:$0xff] %vm253, %v252
  %s256 = scalar_lea.vmem %s0, 583
  %v257 = vld [vmem:[%s256] ss:$24 sm:$0xf]
  %s258 = scalar_lea.vmem %s0, 583
  %v259 = vld [vmem:[%s258] ss:$24 sm:$0xf0]
  %vm260 = vcmask 1047556
  %v261 = vsel %vm260, %v259, %v257
  %262 = vrot.lane.b32.xlu0 %v261, 96
  %v263 = vpop.permute.xlu0 %262
  %vm264 = vcmask 1048320
  %s265 = scalar_lea.vmem %s1, 128
  %266 = vst.msk [vmem:[%s265] sm:$0xff] %vm264, %v263
  %s267 = scalar_lea.vmem %s0, 7
  %v268 = vld [vmem:[%s267] ss:$24 sm:$0xf]
  %s269 = scalar_lea.vmem %s0, 7
  %v270 = vld [vmem:[%s269] ss:$24 sm:$0xf0]
  %vm271 = vcmask 1047556
  %v272 = vsel %vm271, %v270, %v268
  %273 = vrot.lane.b32.xlu0 %v272, 96
  %v274 = vpop.permute.xlu0 %273
  %vm275 = vcmask 1048320
  %s276 = scalar_lea.vmem %s1, 8
  %277 = vst.msk [vmem:[%s276] sm:$0xff] %vm275, %v274
  %s278 = scalar_lea.vmem %s0, 195
  %v279 = vld [vmem:[%s278] ss:$24 sm:$0xf]
  %s280 = scalar_lea.vmem %s0, 195
  %v281 = vld [vmem:[%s280] ss:$24 sm:$0xf0]
  %vm282 = vcmask 1047556
  %v283 = vsel %vm282, %v281, %v279
  %284 = vrot.lane.b32.xlu0 %v283, 96
  %v285 = vpop.permute.xlu0 %284
  %vm286 = vcmask 1048320
  %s287 = scalar_lea.vmem %s1, 40
  %288 = vst.msk [vmem:[%s287] sm:$0xff] %vm286, %v285
  %s289 = scalar_lea.vmem %s0, 399
  %v290 = vld [vmem:[%s289] ss:$24 sm:$0xf]
  %s291 = scalar_lea.vmem %s0, 399
  %v292 = vld [vmem:[%s291] ss:$24 sm:$0xf0]
  %vm293 = vcmask 1047556
  %v294 = vsel %vm293, %v292, %v290
  %295 = vrot.lane.b32.xlu0 %v294, 96
  %v296 = vpop.permute.xlu0 %295
  %vm297 = vcmask 1048320
  %s298 = scalar_lea.vmem %s1, 104
  %299 = vst.msk [vmem:[%s298] sm:$0xff] %vm297, %v296
  %s300 = scalar_lea.vmem %s0, 587
  %v301 = vld [vmem:[%s300] ss:$24 sm:$0xf]
  %s302 = scalar_lea.vmem %s0, 587
  %v303 = vld [vmem:[%s302] ss:$24 sm:$0xf0]
  %vm304 = vcmask 1047556
  %v305 = vsel %vm304, %v303, %v301
  %306 = vrot.lane.b32.xlu0 %v305, 96
  %v307 = vpop.permute.xlu0 %306
  %vm308 = vcmask 1048320
  %s309 = scalar_lea.vmem %s1, 136
  %310 = vst.msk [vmem:[%s309] sm:$0xff] %vm308, %v307
  %s311 = scalar_lea.vmem %s0, 11
  %v312 = vld [vmem:[%s311] ss:$24 sm:$0xf]
  %s313 = scalar_lea.vmem %s0, 11
  %v314 = vld [vmem:[%s313] ss:$24 sm:$0xf0]
  %vm315 = vcmask 1047556
  %v316 = vsel %vm315, %v314, %v312
  %317 = vrot.lane.b32.xlu0 %v316, 96
  %v318 = vpop.permute.xlu0 %317
  %vm319 = vcmask 1048320
  %s320 = scalar_lea.vmem %s1, 16
  %321 = vst.msk [vmem:[%s320] sm:$0xff] %vm319, %v318
  %s322 = scalar_lea.vmem %s0, 199
  %v323 = vld [vmem:[%s322] ss:$24 sm:$0xf]
  %s324 = scalar_lea.vmem %s0, 199
  %v325 = vld [vmem:[%s324] ss:$24 sm:$0xf0]
  %vm326 = vcmask 1047556
  %v327 = vsel %vm326, %v325, %v323
  %328 = vrot.lane.b32.xlu0 %v327, 96
  %v329 = vpop.permute.xlu0 %328
  %vm330 = vcmask 1048320
  %s331 = scalar_lea.vmem %s1, 48
  %332 = vst.msk [vmem:[%s331] sm:$0xff] %vm330, %v329
  %s333 = scalar_lea.vmem %s0, 387
  %v334 = vld [vmem:[%s333] ss:$24 sm:$0xf]
  %s335 = scalar_lea.vmem %s0, 387
  %v336 = vld [vmem:[%s335] ss:$24 sm:$0xf0]
  %vm337 = vcmask 1047556
  %v338 = vsel %vm337, %v336, %v334
  %339 = vrot.lane.b32.xlu0 %v338, 96
  %v340 = vpop.permute.xlu0 %339
  %vm341 = vcmask 1048320
  %s342 = scalar_lea.vmem %s1, 80
  %343 = vst.msk [vmem:[%s342] sm:$0xff] %vm341, %v340
  %s344 = scalar_lea.vmem %s0, 591
  %v345 = vld [vmem:[%s344] ss:$24 sm:$0xf]
  %s346 = scalar_lea.vmem %s0, 591
  %v347 = vld [vmem:[%s346] ss:$24 sm:$0xf0]
  %vm348 = vcmask 1047556
  %v349 = vsel %vm348, %v347, %v345
  %350 = vrot.lane.b32.xlu0 %v349, 96
  %v351 = vpop.permute.xlu0 %350
  %vm352 = vcmask 1048320
  %s353 = scalar_lea.vmem %s1, 144
  %354 = vst.msk [vmem:[%s353] sm:$0xff] %vm352, %v351
  %s355 = scalar_lea.vmem %s0, 15
  %v356 = vld [vmem:[%s355] ss:$24 sm:$0xf]
  %s357 = scalar_lea.vmem %s0, 15
  %v358 = vld [vmem:[%s357] ss:$24 sm:$0xf0]
  %vm359 = vcmask 1047556
  %v360 = vsel %vm359, %v358, %v356
  %361 = vrot.lane.b32.xlu0 %v360, 96
  %v362 = vpop.permute.xlu0 %361
  %vm363 = vcmask 1048320
  %s364 = scalar_lea.vmem %s1, 24
  %365 = vst.msk [vmem:[%s364] sm:$0xff] %vm363, %v362
  %s366 = scalar_lea.vmem %s0, 203
  %v367 = vld [vmem:[%s366] ss:$24 sm:$0xf]
  %s368 = scalar_lea.vmem %s0, 203
  %v369 = vld [vmem:[%s368] ss:$24 sm:$0xf0]
  %vm370 = vcmask 1047556
  %v371 = vsel %vm370, %v369, %v367
  %372 = vrot.lane.b32.xlu0 %v371, 96
  %v373 = vpop.permute.xlu0 %372
  %vm374 = vcmask 1048320
  %s375 = scalar_lea.vmem %s1, 56
  %376 = vst.msk [vmem:[%s375] sm:$0xff] %vm374, %v373
  %s377 = scalar_lea.vmem %s0, 391
  %v378 = vld [vmem:[%s377] ss:$24 sm:$0xf]
  %s379 = scalar_lea.vmem %s0, 391
  %v380 = vld [vmem:[%s379] ss:$24 sm:$0xf0]
  %vm381 = vcmask 1047556
  %v382 = vsel %vm381, %v380, %v378
  %383 = vrot.lane.b32.xlu0 %v382, 96
  %v384 = vpop.permute.xlu0 %383
  %vm385 = vcmask 1048320
  %s386 = scalar_lea.vmem %s1, 88
  %387 = vst.msk [vmem:[%s386] sm:$0xff] %vm385, %v384
  %s388 = scalar_lea.vmem %s0, 579
  %v389 = vld [vmem:[%s388] ss:$24 sm:$0xf]
  %s390 = scalar_lea.vmem %s0, 579
  %v391 = vld [vmem:[%s390] ss:$24 sm:$0xf0]
  %vm392 = vcmask 1047556
  %v393 = vsel %vm392, %v391, %v389
  %394 = vrot.lane.b32.xlu0 %v393, 96
  %v395 = vpop.permute.xlu0 %394
  %vm396 = vcmask 1048320
  %s397 = scalar_lea.vmem %s1, 120
  %398 = vst.msk [vmem:[%s397] sm:$0xff] %vm396, %v395
  %s399 = scalar_lea.vmem %s0, 2
  %v400 = vld [vmem:[%s399] ss:$24 sm:$0xf]
  %s401 = scalar_lea.vmem %s0, 2
  %v402 = vld [vmem:[%s401] ss:$24 sm:$0xf0]
  %vm403 = vcmask 1047556
  %v404 = vsel %vm403, %v402, %v400
  %405 = vrot.lane.b32.xlu0 %v404, 64
  %v406 = vpop.permute.xlu0 %405
  %vm407 = vcmask 785920
  %408 = vst.msk [vmem:[%s1] sm:$0xff] %vm407, %v406
  %s409 = scalar_lea.vmem %s0, 206
  %v410 = vld [vmem:[%s409] ss:$24 sm:$0xf]
  %s411 = scalar_lea.vmem %s0, 206
  %v412 = vld [vmem:[%s411] ss:$24 sm:$0xf0]
  %vm413 = vcmask 1047556
  %v414 = vsel %vm413, %v412, %v410
  %415 = vrot.lane.b32.xlu0 %v414, 64
  %v416 = vpop.permute.xlu0 %415
  %vm417 = vcmask 785920
  %s418 = scalar_lea.vmem %s1, 64
  %419 = vst.msk [vmem:[%s418] sm:$0xff] %vm417, %v416
  %s420 = scalar_lea.vmem %s0, 394
  %v421 = vld [vmem:[%s420] ss:$24 sm:$0xf]
  %s422 = scalar_lea.vmem %s0, 394
  %v423 = vld [vmem:[%s422] ss:$24 sm:$0xf0]
  %vm424 = vcmask 1047556
  %v425 = vsel %vm424, %v423, %v421
  %426 = vrot.lane.b32.xlu0 %v425, 64
  %v427 = vpop.permute.xlu0 %426
  %vm428 = vcmask 785920
  %s429 = scalar_lea.vmem %s1, 96
  %430 = vst.msk [vmem:[%s429] sm:$0xff] %vm428, %v427
  %s431 = scalar_lea.vmem %s0, 582
  %v432 = vld [vmem:[%s431] ss:$24 sm:$0xf]
  %s433 = scalar_lea.vmem %s0, 582
  %v434 = vld [vmem:[%s433] ss:$24 sm:$0xf0]
  %vm435 = vcmask 1047556
  %v436 = vsel %vm435, %v434, %v432
  %437 = vrot.lane.b32.xlu0 %v436, 64
  %v438 = vpop.permute.xlu0 %437
  %vm439 = vcmask 785920
  %s440 = scalar_lea.vmem %s1, 128
  %441 = vst.msk [vmem:[%s440] sm:$0xff] %vm439, %v438
  %s442 = scalar_lea.vmem %s0, 6
  %v443 = vld [vmem:[%s442] ss:$24 sm:$0xf]
  %s444 = scalar_lea.vmem %s0, 6
  %v445 = vld [vmem:[%s444] ss:$24 sm:$0xf0]
  %vm446 = vcmask 1047556
  %v447 = vsel %vm446, %v445, %v443
  %448 = vrot.lane.b32.xlu0 %v447, 64
  %v449 = vpop.permute.xlu0 %448
  %vm450 = vcmask 785920
  %s451 = scalar_lea.vmem %s1, 8
  %452 = vst.msk [vmem:[%s451] sm:$0xff] %vm450, %v449
  %s453 = scalar_lea.vmem %s0, 194
  %v454 = vld [vmem:[%s453] ss:$24 sm:$0xf]
  %s455 = scalar_lea.vmem %s0, 194
  %v456 = vld [vmem:[%s455] ss:$24 sm:$0xf0]
  %vm457 = vcmask 1047556
  %v458 = vsel %vm457, %v456, %v454
  %459 = vrot.lane.b32.xlu0 %v458, 64
  %v460 = vpop.permute.xlu0 %459
  %vm461 = vcmask 785920
  %s462 = scalar_lea.vmem %s1, 40
  %463 = vst.msk [vmem:[%s462] sm:$0xff] %vm461, %v460
  %s464 = scalar_lea.vmem %s0, 398
  %v465 = vld [vmem:[%s464] ss:$24 sm:$0xf]
  %s466 = scalar_lea.vmem %s0, 398
  %v467 = vld [vmem:[%s466] ss:$24 sm:$0xf0]
  %vm468 = vcmask 1047556
  %v469 = vsel %vm468, %v467, %v465
  %470 = vrot.lane.b32.xlu0 %v469, 64
  %v471 = vpop.permute.xlu0 %470
  %vm472 = vcmask 785920
  %s473 = scalar_lea.vmem %s1, 104
  %474 = vst.msk [vmem:[%s473] sm:$0xff] %vm472, %v471
  %s475 = scalar_lea.vmem %s0, 586
  %v476 = vld [vmem:[%s475] ss:$24 sm:$0xf]
  %s477 = scalar_lea.vmem %s0, 586
  %v478 = vld [vmem:[%s477] ss:$24 sm:$0xf0]
  %vm479 = vcmask 1047556
  %v480 = vsel %vm479, %v478, %v476
  %481 = vrot.lane.b32.xlu0 %v480, 64
  %v482 = vpop.permute.xlu0 %481
  %vm483 = vcmask 785920
  %s484 = scalar_lea.vmem %s1, 136
  %485 = vst.msk [vmem:[%s484] sm:$0xff] %vm483, %v482
  %s486 = scalar_lea.vmem %s0, 10
  %v487 = vld [vmem:[%s486] ss:$24 sm:$0xf]
  %s488 = scalar_lea.vmem %s0, 10
  %v489 = vld [vmem:[%s488] ss:$24 sm:$0xf0]
  %vm490 = vcmask 1047556
  %v491 = vsel %vm490, %v489, %v487
  %492 = vrot.lane.b32.xlu0 %v491, 64
  %v493 = vpop.permute.xlu0 %492
  %vm494 = vcmask 785920
  %s495 = scalar_lea.vmem %s1, 16
  %496 = vst.msk [vmem:[%s495] sm:$0xff] %vm494, %v493
  %s497 = scalar_lea.vmem %s0, 198
  %v498 = vld [vmem:[%s497] ss:$24 sm:$0xf]
  %s499 = scalar_lea.vmem %s0, 198
  %v500 = vld [vmem:[%s499] ss:$24 sm:$0xf0]
  %vm501 = vcmask 1047556
  %v502 = vsel %vm501, %v500, %v498
  %503 = vrot.lane.b32.xlu0 %v502, 64
  %v504 = vpop.permute.xlu0 %503
  %vm505 = vcmask 785920
  %s506 = scalar_lea.vmem %s1, 48
  %507 = vst.msk [vmem:[%s506] sm:$0xff] %vm505, %v504
  %s508 = scalar_lea.vmem %s0, 386
  %v509 = vld [vmem:[%s508] ss:$24 sm:$0xf]
  %s510 = scalar_lea.vmem %s0, 386
  %v511 = vld [vmem:[%s510] ss:$24 sm:$0xf0]
  %vm512 = vcmask 1047556
  %v513 = vsel %vm512, %v511, %v509
  %514 = vrot.lane.b32.xlu0 %v513, 64
  %v515 = vpop.permute.xlu0 %514
  %vm516 = vcmask 785920
  %s517 = scalar_lea.vmem %s1, 80
  %518 = vst.msk [vmem:[%s517] sm:$0xff] %vm516, %v515
  %s519 = scalar_lea.vmem %s0, 590
  %v520 = vld [vmem:[%s519] ss:$24 sm:$0xf]
  %s521 = scalar_lea.vmem %s0, 590
  %v522 = vld [vmem:[%s521] ss:$24 sm:$0xf0]
  %vm523 = vcmask 1047556
  %v524 = vsel %vm523, %v522, %v520
  %525 = vrot.lane.b32.xlu0 %v524, 64
  %v526 = vpop.permute.xlu0 %525
  %vm527 = vcmask 785920
  %s528 = scalar_lea.vmem %s1, 144
  %529 = vst.msk [vmem:[%s528] sm:$0xff] %vm527, %v526
  %s530 = scalar_lea.vmem %s0, 14
  %v531 = vld [vmem:[%s530] ss:$24 sm:$0xf]
  %s532 = scalar_lea.vmem %s0, 14
  %v533 = vld [vmem:[%s532] ss:$24 sm:$0xf0]
  %vm534 = vcmask 1047556
  %v535 = vsel %vm534, %v533, %v531
  %536 = vrot.lane.b32.xlu0 %v535, 64
  %v537 = vpop.permute.xlu0 %536
  %vm538 = vcmask 785920
  %s539 = scalar_lea.vmem %s1, 24
  %540 = vst.msk [vmem:[%s539] sm:$0xff] %vm538, %v537
  %s541 = scalar_lea.vmem %s0, 202
  %v542 = vld [vmem:[%s541] ss:$24 sm:$0xf]
  %s543 = scalar_lea.vmem %s0, 202
  %v544 = vld [vmem:[%s543] ss:$24 sm:$0xf0]
  %vm545 = vcmask 1047556
  %v546 = vsel %vm545, %v544, %v542
  %547 = vrot.lane.b32.xlu0 %v546, 64
  %v548 = vpop.permute.xlu0 %547
  %vm549 = vcmask 785920
  %s550 = scalar_lea.vmem %s1, 56
  %551 = vst.msk [vmem:[%s550] sm:$0xff] %vm549, %v548
  %s552 = scalar_lea.vmem %s0, 390
  %v553 = vld [vmem:[%s552] ss:$24 sm:$0xf]
  %s554 = scalar_lea.vmem %s0, 390
  %v555 = vld [vmem:[%s554] ss:$24 sm:$0xf0]
  %vm556 = vcmask 1047556
  %v557 = vsel %vm556, %v555, %v553
  %558 = vrot.lane.b32.xlu0 %v557, 64
  %v559 = vpop.permute.xlu0 %558
  %vm560 = vcmask 785920
  %s561 = scalar_lea.vmem %s1, 88
  %562 = vst.msk [vmem:[%s561] sm:$0xff] %vm560, %v559
  %s563 = scalar_lea.vmem %s0, 578
  %v564 = vld [vmem:[%s563] ss:$24 sm:$0xf]
  %s565 = scalar_lea.vmem %s0, 578
  %v566 = vld [vmem:[%s565] ss:$24 sm:$0xf0]
  %vm567 = vcmask 1047556
  %v568 = vsel %vm567, %v566, %v564
  %569 = vrot.lane.b32.xlu0 %v568, 64
  %v570 = vpop.permute.xlu0 %569
  %vm571 = vcmask 785920
  %s572 = scalar_lea.vmem %s1, 120
  %573 = vst.msk [vmem:[%s572] sm:$0xff] %vm571, %v570
  %s574 = scalar_lea.vmem %s0, 1
  %v575 = vld [vmem:[%s574] ss:$24 sm:$0xf]
  %s576 = scalar_lea.vmem %s0, 1
  %v577 = vld [vmem:[%s576] ss:$24 sm:$0xf0]
  %vm578 = vcmask 1047556
  %v579 = vsel %vm578, %v577, %v575
  %580 = vrot.lane.b32.xlu0 %v579, 32
  %v581 = vpop.permute.xlu0 %580
  %vm582 = vcmask 523520
  %583 = vst.msk [vmem:[%s1] sm:$0xff] %vm582, %v581
  %s584 = scalar_lea.vmem %s0, 17
  %v585 = vld [vmem:[%s584] ss:$24 sm:$0xf]
  %s586 = scalar_lea.vmem %s0, 17
  %v587 = vld [vmem:[%s586] ss:$24 sm:$0xf0]
  %vm588 = vcmask 1047556
  %v589 = vsel %vm588, %v587, %v585
  %590 = vrot.lane.b32.xlu0 %v589, 32
  %v591 = vpop.permute.xlu0 %590
  %vm592 = vcmask 523520
  %s593 = scalar_lea.vmem %s1, 32
  %594 = vst.msk [vmem:[%s593] sm:$0xff] %vm592, %v591
  %s595 = scalar_lea.vmem %s0, 205
  %v596 = vld [vmem:[%s595] ss:$24 sm:$0xf]
  %s597 = scalar_lea.vmem %s0, 205
  %v598 = vld [vmem:[%s597] ss:$24 sm:$0xf0]
  %vm599 = vcmask 1047556
  %v600 = vsel %vm599, %v598, %v596
  %601 = vrot.lane.b32.xlu0 %v600, 32
  %v602 = vpop.permute.xlu0 %601
  %vm603 = vcmask 523520
  %s604 = scalar_lea.vmem %s1, 64
  %605 = vst.msk [vmem:[%s604] sm:$0xff] %vm603, %v602
  %s606 = scalar_lea.vmem %s0, 393
  %v607 = vld [vmem:[%s606] ss:$24 sm:$0xf]
  %s608 = scalar_lea.vmem %s0, 393
  %v609 = vld [vmem:[%s608] ss:$24 sm:$0xf0]
  %vm610 = vcmask 1047556
  %v611 = vsel %vm610, %v609, %v607
  %612 = vrot.lane.b32.xlu0 %v611, 32
  %v613 = vpop.permute.xlu0 %612
  %vm614 = vcmask 523520
  %s615 = scalar_lea.vmem %s1, 96
  %616 = vst.msk [vmem:[%s615] sm:$0xff] %vm614, %v613
  %s617 = scalar_lea.vmem %s0, 581
  %v618 = vld [vmem:[%s617] ss:$24 sm:$0xf]
  %s619 = scalar_lea.vmem %s0, 581
  %v620 = vld [vmem:[%s619] ss:$24 sm:$0xf0]
  %vm621 = vcmask 1047556
  %v622 = vsel %vm621, %v620, %v618
  %623 = vrot.lane.b32.xlu0 %v622, 32
  %v624 = vpop.permute.xlu0 %623
  %vm625 = vcmask 523520
  %s626 = scalar_lea.vmem %s1, 128
  %627 = vst.msk [vmem:[%s626] sm:$0xff] %vm625, %v624
  %s628 = scalar_lea.vmem %s0, 5
  %v629 = vld [vmem:[%s628] ss:$24 sm:$0xf]
  %s630 = scalar_lea.vmem %s0, 5
  %v631 = vld [vmem:[%s630] ss:$24 sm:$0xf0]
  %vm632 = vcmask 1047556
  %v633 = vsel %vm632, %v631, %v629
  %634 = vrot.lane.b32.xlu0 %v633, 32
  %v635 = vpop.permute.xlu0 %634
  %vm636 = vcmask 523520
  %s637 = scalar_lea.vmem %s1, 8
  %638 = vst.msk [vmem:[%s637] sm:$0xff] %vm636, %v635
  %s639 = scalar_lea.vmem %s0, 193
  %v640 = vld [vmem:[%s639] ss:$24 sm:$0xf]
  %s641 = scalar_lea.vmem %s0, 193
  %v642 = vld [vmem:[%s641] ss:$24 sm:$0xf0]
  %vm643 = vcmask 1047556
  %v644 = vsel %vm643, %v642, %v640
  %645 = vrot.lane.b32.xlu0 %v644, 32
  %v646 = vpop.permute.xlu0 %645
  %vm647 = vcmask 523520
  %s648 = scalar_lea.vmem %s1, 40
  %649 = vst.msk [vmem:[%s648] sm:$0xff] %vm647, %v646
  %s650 = scalar_lea.vmem %s0, 209
  %v651 = vld [vmem:[%s650] ss:$24 sm:$0xf]
  %s652 = scalar_lea.vmem %s0, 209
  %v653 = vld [vmem:[%s652] ss:$24 sm:$0xf0]
  %vm654 = vcmask 1047556
  %v655 = vsel %vm654, %v653, %v651
  %656 = vrot.lane.b32.xlu0 %v655, 32
  %v657 = vpop.permute.xlu0 %656
  %vm658 = vcmask 523520
  %s659 = scalar_lea.vmem %s1, 72
  %660 = vst.msk [vmem:[%s659] sm:$0xff] %vm658, %v657
  %s661 = scalar_lea.vmem %s0, 397
  %v662 = vld [vmem:[%s661] ss:$24 sm:$0xf]
  %s663 = scalar_lea.vmem %s0, 397
  %v664 = vld [vmem:[%s663] ss:$24 sm:$0xf0]
  %vm665 = vcmask 1047556
  %v666 = vsel %vm665, %v664, %v662
  %667 = vrot.lane.b32.xlu0 %v666, 32
  %v668 = vpop.permute.xlu0 %667
  %vm669 = vcmask 523520
  %s670 = scalar_lea.vmem %s1, 104
  %671 = vst.msk [vmem:[%s670] sm:$0xff] %vm669, %v668
  %s672 = scalar_lea.vmem %s0, 585
  %v673 = vld [vmem:[%s672] ss:$24 sm:$0xf]
  %s674 = scalar_lea.vmem %s0, 585
  %v675 = vld [vmem:[%s674] ss:$24 sm:$0xf0]
  %vm676 = vcmask 1047556
  %v677 = vsel %vm676, %v675, %v673
  %678 = vrot.lane.b32.xlu0 %v677, 32
  %v679 = vpop.permute.xlu0 %678
  %vm680 = vcmask 523520
  %s681 = scalar_lea.vmem %s1, 136
  %682 = vst.msk [vmem:[%s681] sm:$0xff] %vm680, %v679
  %s683 = scalar_lea.vmem %s0, 9
  %v684 = vld [vmem:[%s683] ss:$24 sm:$0xf]
  %s685 = scalar_lea.vmem %s0, 9
  %v686 = vld [vmem:[%s685] ss:$24 sm:$0xf0]
  %vm687 = vcmask 1047556
  %v688 = vsel %vm687, %v686, %v684
  %689 = vrot.lane.b32.xlu0 %v688, 32
  %v690 = vpop.permute.xlu0 %689
  %vm691 = vcmask 523520
  %s692 = scalar_lea.vmem %s1, 16
  %693 = vst.msk [vmem:[%s692] sm:$0xff] %vm691, %v690
  %s694 = scalar_lea.vmem %s0, 197
  %v695 = vld [vmem:[%s694] ss:$24 sm:$0xf]
  %s696 = scalar_lea.vmem %s0, 197
  %v697 = vld [vmem:[%s696] ss:$24 sm:$0xf0]
  %vm698 = vcmask 1047556
  %v699 = vsel %vm698, %v697, %v695
  %700 = vrot.lane.b32.xlu0 %v699, 32
  %v701 = vpop.permute.xlu0 %700
  %vm702 = vcmask 523520
  %s703 = scalar_lea.vmem %s1, 48
  %704 = vst.msk [vmem:[%s703] sm:$0xff] %vm702, %v701
  %s705 = scalar_lea.vmem %s0, 385
  %v706 = vld [vmem:[%s705] ss:$24 sm:$0xf]
  %s707 = scalar_lea.vmem %s0, 385
  %v708 = vld [vmem:[%s707] ss:$24 sm:$0xf0]
  %vm709 = vcmask 1047556
  %v710 = vsel %vm709, %v708, %v706
  %711 = vrot.lane.b32.xlu0 %v710, 32
  %v712 = vpop.permute.xlu0 %711
  %vm713 = vcmask 523520
  %s714 = scalar_lea.vmem %s1, 80
  %715 = vst.msk [vmem:[%s714] sm:$0xff] %vm713, %v712
  %s716 = scalar_lea.vmem %s0, 401
  %v717 = vld [vmem:[%s716] ss:$24 sm:$0xf]
  %s718 = scalar_lea.vmem %s0, 401
  %v719 = vld [vmem:[%s718] ss:$24 sm:$0xf0]
  %vm720 = vcmask 1047556
  %v721 = vsel %vm720, %v719, %v717
  %722 = vrot.lane.b32.xlu0 %v721, 32
  %v723 = vpop.permute.xlu0 %722
  %vm724 = vcmask 523520
  %s725 = scalar_lea.vmem %s1, 112
  %726 = vst.msk [vmem:[%s725] sm:$0xff] %vm724, %v723
  %s727 = scalar_lea.vmem %s0, 589
  %v728 = vld [vmem:[%s727] ss:$24 sm:$0xf]
  %s729 = scalar_lea.vmem %s0, 589
  %v730 = vld [vmem:[%s729] ss:$24 sm:$0xf0]
  %vm731 = vcmask 1047556
  %v732 = vsel %vm731, %v730, %v728
  %733 = vrot.lane.b32.xlu0 %v732, 32
  %v734 = vpop.permute.xlu0 %733
  %vm735 = vcmask 523520
  %s736 = scalar_lea.vmem %s1, 144
  %737 = vst.msk [vmem:[%s736] sm:$0xff] %vm735, %v734
  %s738 = scalar_lea.vmem %s0, 13
  %v739 = vld [vmem:[%s738] ss:$24 sm:$0xf]
  %s740 = scalar_lea.vmem %s0, 13
  %v741 = vld [vmem:[%s740] ss:$24 sm:$0xf0]
  %vm742 = vcmask 1047556
  %v743 = vsel %vm742, %v741, %v739
  %744 = vrot.lane.b32.xlu0 %v743, 32
  %v745 = vpop.permute.xlu0 %744
  %vm746 = vcmask 523520
  %s747 = scalar_lea.vmem %s1, 24
  %748 = vst.msk [vmem:[%s747] sm:$0xff] %vm746, %v745
  %s749 = scalar_lea.vmem %s0, 201
  %v750 = vld [vmem:[%s749] ss:$24 sm:$0xf]
  %s751 = scalar_lea.vmem %s0, 201
  %v752 = vld [vmem:[%s751] ss:$24 sm:$0xf0]
  %vm753 = vcmask 1047556
  %v754 = vsel %vm753, %v752, %v750
  %755 = vrot.lane.b32.xlu0 %v754, 32
  %v756 = vpop.permute.xlu0 %755
  %vm757 = vcmask 523520
  %s758 = scalar_lea.vmem %s1, 56
  %759 = vst.msk [vmem:[%s758] sm:$0xff] %vm757, %v756
  %s760 = scalar_lea.vmem %s0, 389
  %v761 = vld [vmem:[%s760] ss:$24 sm:$0xf]
  %s762 = scalar_lea.vmem %s0, 389
  %v763 = vld [vmem:[%s762] ss:$24 sm:$0xf0]
  %vm764 = vcmask 1047556
  %v765 = vsel %vm764, %v763, %v761
  %766 = vrot.lane.b32.xlu0 %v765, 32
  %v767 = vpop.permute.xlu0 %766
  %vm768 = vcmask 523520
  %s769 = scalar_lea.vmem %s1, 88
  %770 = vst.msk [vmem:[%s769] sm:$0xff] %vm768, %v767
  %s771 = scalar_lea.vmem %s0, 577
  %v772 = vld [vmem:[%s771] ss:$24 sm:$0xf]
  %s773 = scalar_lea.vmem %s0, 577
  %v774 = vld [vmem:[%s773] ss:$24 sm:$0xf0]
  %vm775 = vcmask 1047556
  %v776 = vsel %vm775, %v774, %v772
  %777 = vrot.lane.b32.xlu0 %v776, 32
  %v778 = vpop.permute.xlu0 %777
  %vm779 = vcmask 523520
  %s780 = scalar_lea.vmem %s1, 120
  %781 = vst.msk [vmem:[%s780] sm:$0xff] %vm779, %v778
  %s782 = scalar_lea.vmem %s0, 593
  %v783 = vld [vmem:[%s782] ss:$24 sm:$0xf]
  %s784 = scalar_lea.vmem %s0, 593
  %v785 = vld [vmem:[%s784] ss:$24 sm:$0xf0]
  %vm786 = vcmask 1047556
  %v787 = vsel %vm786, %v785, %v783
  %788 = vrot.lane.b32.xlu0 %v787, 32
  %v789 = vpop.permute.xlu0 %788
  %vm790 = vcmask 523520
  %s791 = scalar_lea.vmem %s1, 152
  %792 = vst.msk [vmem:[%s791] sm:$0xff] %vm790, %v789

// kernel: tile.18
$region0: #{tile.18}
  #allocation0 [shape = 's32[1]{0}', space=sflag, size = 0x4, scoped, tag = 'scoped memory for tile.18']
  %s0 = inlined_call_operand.vmem [shape: f32[32], index: 0, kind: input, shape index: {}]
  %s1 = inlined_call_operand.vmem [shape: f32[18,32], index: 1, kind: output, shape index: {}]
  // Predicated region
  $region2: #{tile.18} parent=0 // pred_check
    _
  $region3: #{tile.18} parent=0 // pred_check_branch
    %3 = sbr.rel (0) target = $region5
  $region4: #{tile.18} parent=0 // pred_region
    _
  $region5: #{tile.18} parent=0 // pred_fallthru
    _
  %v4 = vld [vmem:[%s0] ss:$0 sm:$0xff]
  %5 = vst [vmem:[%s1] sm:$0xff] %v4
  %s6 = scalar_lea.vmem %s1, 8
  %7 = vst [vmem:[%s6] sm:$0xff] %v4
  %s8 = scalar_lea.vmem %s1, 16
  %9 = vst [vmem:[%s8] sm:$0xff] %v4

// kernel: tile.19
$region0: #{tile.19}
  %s0 = inlined_call_operand.vmem [shape: f32[18,32], index: 0, kind: input, shape index: {}]
  %s1 = inlined_call_operand.vmem [shape: f32[1,576], index: 1, kind: output, shape index: {}]
  $region1: #{tile.19} parent=0
    #allocation0 [shape = 'u8[20480]{0}', space=vmem, size = 0x5000, scoped, tag = 'scoped mem for output reshape']
    %v2 = vld [vmem:[%s0] ss:$4 sm:$0x1f]
    %vm3 = vcmask 261120
    %4 = vst.msk [vmem:[#allocation0] ss:$8 sm:$0xf] %vm3, %v2
    %s5 = scalar_lea.vmem [#allocation0], 28
    %6 = vst.msk [vmem:[%s5] sm:$0x10] %vm3, %v2
    %s7 = scalar_lea.vmem %s0, 3
    %v8 = vld [vmem:[%s7] ss:$4 sm:$0xf]
    %9 = vrot.lane.b32.xlu0 %v8, 96
    %v10 = vpop.permute.xlu0 %9
    %vm11 = vcmask 1048320
    %12 = vst.msk [vmem:[#allocation0] ss:$8 sm:$0xf] %vm11, %v10
    %s13 = scalar_lea.vmem %s0, 2
    %v14 = vld [vmem:[%s13] ss:$4 sm:$0xf]
    %15 = vrot.lane.b32.xlu0 %v14, 64
    %v16 = vpop.permute.xlu0 %15
    %vm17 = vcmask 785920
    %18 = vst.msk [vmem:[#allocation0] ss:$8 sm:$0xf] %vm17, %v16
    %s19 = scalar_lea.vmem %s0, 1
    %v20 = vld [vmem:[%s19] ss:$4 sm:$0x1f]
    %21 = vrot.lane.b32.xlu0 %v20, 32
    %v22 = vpop.permute.xlu0 %21
    %vm23 = vcmask 523520
    %24 = vst.msk [vmem:[#allocation0] ss:$8 sm:$0xf] %vm23, %v22
    %s25 = scalar_lea.vmem [#allocation0], 28
    %26 = vst.msk [vmem:[%s25] sm:$0x10] %vm23, %v22
    %s28 = ssub.s32 2, 1
    %v29 = vld [vmem:[#allocation0] sm:%s28]
    %s31 = ssub.s32 2, 1
    %32 = vst [vmem:[%s1] sm:%s31] %v29
    %s33 = scalar_lea.vmem [#allocation0], 8
    %v34 = vld [vmem:[%s33] sm:%s28]
    %s36 = ssub.s32 2, 1
    %s37 = scalar_lea.vmem %s1, 1
    %38 = vst [vmem:[%s37] sm:%s36] %v34
    %s39 = scalar_lea.vmem [#allocation0], 16
    %v40 = vld [vmem:[%s39] sm:%s28]
    %s42 = ssub.s32 2, 1
    %s43 = scalar_lea.vmem %s1, 2
    %44 = vst [vmem:[%s43] sm:%s42] %v40
    %s45 = scalar_lea.vmem [#allocation0], 24
    %v46 = vld [vmem:[%s45] sm:%s28]
    %s48 = ssub.s32 2, 1
    %s49 = scalar_lea.vmem %s1, 3
    %50 = vst [vmem:[%s49] sm:%s48] %v46
    %s51 = scalar_lea.vmem [#allocation0], 32
    %v52 = vld [vmem:[%s51] sm:%s28]
    %s54 = ssub.s32 2, 1
    %s55 = scalar_lea.vmem %s1, 4
    %56 = vst [vmem:[%s55] sm:%s54] %v52

// kernel: based_module_1_forward.1
$region0: #{based_module_1_forward.1}
  #allocation0 [shape = 'u32[]', space=smem, size = 0x4, offset = 0x4, fixed_abs, tag = 'smem constant byte address 0x4 - core index']
  #allocation1 [shape = 'u32[72,128]{1,0:T(1,128)}', space=vmem, size = 0x9000, scoped, tag = 'internal scratch']
  #allocation2 [shape = 'f32[20,64]{1,0:T(8,128)}', space=vmem, size = 0x3000, scoped, tag = 'scratch operand']
  %s0 = inlined_call_operand.vmem [shape: f32[2,16,64], index: 0, kind: input, shape index: {}]
  %s1 = inlined_call_operand.vmem [shape: f32[3,64,576], index: 1, kind: input, shape index: {}]
  %s2 = inlined_call_operand.vmem [shape: f32[1,576], index: 2, kind: input, shape index: {}]
  %s3 = inlined_call_operand.vmem [shape: f32[576,32], index: 3, kind: input, shape index: {}]
  %s4 = inlined_call_operand.vmem [shape: f32[32,576], index: 4, kind: input, shape index: {}]
  %s5 = inlined_call_operand.vmem [shape: f32[2,32], index: 5, kind: input, shape index: {}]
  %s6 = inlined_call_operand.vmem [shape: f32[3,8,18], index: 6, kind: input, shape index: {}]
  %s7 = inlined_call_operand.vmem [shape: f32[3,576,256], index: 7, kind: input, shape index: {}]
  %s8 = inlined_call_operand.vmem [shape: f32[2,8,256], index: 8, kind: output, shape index: {}]
  %s9 = sld [smem:[#allocation0]]
  $region65: #{based_module_1_forward.1} parent=0
    _
  %s11 = ssub.s32 1, %s9
  %s12 = scalar_select 0, %s11, %s9
  loop: start=0, step=1, limit=4
  $region2: #{based_module_1_forward.1} parent=0 // loop_pre_header
    _
  $region3: #{based_module_1_forward.1} parent=0 // loop_header
    %s14 = sphi 0, %s18
    %p15 = scmp.ge.s32.totalorder %s14, 4
    %s24 = sphi 0, %s26
    %s27 = sphi 0, %s24
    %s28 = sphi 0, %s27
    %s44 = sphi 0, %s28
    %s48 = sphi 0, %s48
    %s50 = sphi 0, %s48
    %s51 = sphi 0, %s50
    %s65 = sphi 0, %s51
    %s69 = sphi 0, %s69
    %s71 = sphi 0, %s69
    %s72 = sphi 0, %s71
    %s86 = sphi 0, %s72
    %s90 = sphi 0, %s90
    %s92 = sphi 0, %s90
    %s93 = sphi 0, %s92
    %s107 = sphi 0, %s93
    %s111 = sphi 0, %s111
    %s113 = sphi 0, %s111
    %s114 = sphi 0, %s113
    %s128 = sphi 0, %s114
    %s132 = sphi 0, %s132
    %s134 = sphi 0, %s132
    %s135 = sphi 0, %s134
    %s149 = sphi 0, %s135
    %s153 = sphi 0, %s153
    %s155 = sphi 0, %s153
    %s156 = sphi 0, %s155
    %s170 = sphi 0, %s156
    %s174 = sphi 0, %s174
    %s176 = sphi 0, %s174
    %s177 = sphi 0, %s176
    %s191 = sphi 0, %s177
    %s197 = sphi 0, %s199
    %s200 = sphi 0, %s197
    %s201 = sphi 0, %s200
    %s217 = sphi 0, %s201
  $region4: #{based_module_1_forward.1} parent=0 // loop_header_branch
    %17 = sbr.rel (%p15) target = $region8
  $region5: #{based_module_1_forward.1} parent=0 // loop_body
    %s19 = ssub.s32 %s14, 1
    %s20 = ssub.s32 %s14, 2
    %s21 = sadd.s32 %s14, 1
    %s22 = ssub.s32 %s14, %s21
    %p23 = scmp.eq.s32.totalorder %s22, 0
    %s25 = sadd.s32 %s24, 1
    %s26 = scalar_select %p23, %s24, %s25
    %p29 = pneg %p23
    %p30 = scmp.eq.s32.totalorder %s14, 1
    %p31 = por %p29, %p30
    %p32 = scmp.ne.s32.totalorder %s24, %s27
    %p33 = scmp.eq.s32.totalorder %s14, 0
    %p34 = por %p32, %p33
    %p35 = scmp.ne.s32.totalorder %s24, %s27
    %p36 = scmp.eq.s32.totalorder %s19, 1
    %p37 = por %p35, %p36
    %p38 = scmp.ne.s32.totalorder %s27, %s28
    %p39 = scmp.eq.s32.totalorder %s19, 0
    %p40 = por %p38, %p39
    %p41 = scmp.ne.s32.totalorder %s27, %s28
    %p42 = scmp.eq.s32.totalorder %s20, 1
    %p43 = por %p41, %p42
    %p45 = scmp.ne.s32.totalorder %s28, %s44
    %p46 = scmp.eq.s32.totalorder %s20, 0
    %p47 = por %p45, %p46
    %s49 = sadd.s32 %s48, 1
    %p52 = scmp.eq.s32.totalorder %s14, 1
    %p53 = scmp.ne.s32.totalorder %s48, %s50
    %p54 = scmp.eq.s32.totalorder %s14, 0
    %p55 = por %p53, %p54
    %p56 = scmp.ne.s32.totalorder %s48, %s50
    %p57 = scmp.eq.s32.totalorder %s19, 1
    %p58 = por %p56, %p57
    %p59 = scmp.ne.s32.totalorder %s50, %s51
    %p60 = scmp.eq.s32.totalorder %s19, 0
    %p61 = por %p59, %p60
    %p62 = scmp.ne.s32.totalorder %s50, %s51
    %p63 = scmp.eq.s32.totalorder %s20, 1
    %p64 = por %p62, %p63
    %p66 = scmp.ne.s32.totalorder %s51, %s65
    %p67 = scmp.eq.s32.totalorder %s20, 0
    %p68 = por %p66, %p67
    %s70 = sadd.s32 %s69, 1
    %p73 = scmp.eq.s32.totalorder %s14, 1
    %p74 = scmp.ne.s32.totalorder %s69, %s71
    %p75 = scmp.eq.s32.totalorder %s14, 0
    %p76 = por %p74, %p75
    %p77 = scmp.ne.s32.totalorder %s69, %s71
    %p78 = scmp.eq.s32.totalorder %s19, 1
    %p79 = por %p77, %p78
    %p80 = scmp.ne.s32.totalorder %s71, %s72
    %p81 = scmp.eq.s32.totalorder %s19, 0
    %p82 = por %p80, %p81
    %p83 = scmp.ne.s32.totalorder %s71, %s72
    %p84 = scmp.eq.s32.totalorder %s20, 1
    %p85 = por %p83, %p84
    %p87 = scmp.ne.s32.totalorder %s72, %s86
    %p88 = scmp.eq.s32.totalorder %s20, 0
    %p89 = por %p87, %p88
    %s91 = sadd.s32 %s90, 1
    %p94 = scmp.eq.s32.totalorder %s14, 1
    %p95 = scmp.ne.s32.totalorder %s90, %s92
    %p96 = scmp.eq.s32.totalorder %s14, 0
    %p97 = por %p95, %p96
    %p98 = scmp.ne.s32.totalorder %s90, %s92
    %p99 = scmp.eq.s32.totalorder %s19, 1
    %p100 = por %p98, %p99
    %p101 = scmp.ne.s32.totalorder %s92, %s93
    %p102 = scmp.eq.s32.totalorder %s19, 0
    %p103 = por %p101, %p102
    %p104 = scmp.ne.s32.totalorder %s92, %s93
    %p105 = scmp.eq.s32.totalorder %s20, 1
    %p106 = por %p104, %p105
    %p108 = scmp.ne.s32.totalorder %s93, %s107
    %p109 = scmp.eq.s32.totalorder %s20, 0
    %p110 = por %p108, %p109
    %s112 = sadd.s32 %s111, 1
    %p115 = scmp.eq.s32.totalorder %s14, 1
    %p116 = scmp.ne.s32.totalorder %s111, %s113
    %p117 = scmp.eq.s32.totalorder %s14, 0
    %p118 = por %p116, %p117
    %p119 = scmp.ne.s32.totalorder %s111, %s113
    %p120 = scmp.eq.s32.totalorder %s19, 1
    %p121 = por %p119, %p120
    %p122 = scmp.ne.s32.totalorder %s113, %s114
    %p123 = scmp.eq.s32.totalorder %s19, 0
    %p124 = por %p122, %p123
    %p125 = scmp.ne.s32.totalorder %s113, %s114
    %p126 = scmp.eq.s32.totalorder %s20, 1
    %p127 = por %p125, %p126
    %p129 = scmp.ne.s32.totalorder %s114, %s128
    %p130 = scmp.eq.s32.totalorder %s20, 0
    %p131 = por %p129, %p130
    %s133 = sadd.s32 %s132, 1
    %p136 = scmp.eq.s32.totalorder %s14, 1
    %p137 = scmp.ne.s32.totalorder %s132, %s134
    %p138 = scmp.eq.s32.totalorder %s14, 0
    %p139 = por %p137, %p138
    %p140 = scmp.ne.s32.totalorder %s132, %s134
    %p141 = scmp.eq.s32.totalorder %s19, 1
    %p142 = por %p140, %p141
    %p143 = scmp.ne.s32.totalorder %s134, %s135
    %p144 = scmp.eq.s32.totalorder %s19, 0
    %p145 = por %p143, %p144
    %p146 = scmp.ne.s32.totalorder %s134, %s135
    %p147 = scmp.eq.s32.totalorder %s20, 1
    %p148 = por %p146, %p147
    %p150 = scmp.ne.s32.totalorder %s135, %s149
    %p151 = scmp.eq.s32.totalorder %s20, 0
    %p152 = por %p150, %p151
    %s154 = sadd.s32 %s153, 1
    %p157 = scmp.eq.s32.totalorder %s14, 1
    %p158 = scmp.ne.s32.totalorder %s153, %s155
    %p159 = scmp.eq.s32.totalorder %s14, 0
    %p160 = por %p158, %p159
    %p161 = scmp.ne.s32.totalorder %s153, %s155
    %p162 = scmp.eq.s32.totalorder %s19, 1
    %p163 = por %p161, %p162
    %p164 = scmp.ne.s32.totalorder %s155, %s156
    %p165 = scmp.eq.s32.totalorder %s19, 0
    %p166 = por %p164, %p165
    %p167 = scmp.ne.s32.totalorder %s155, %s156
    %p168 = scmp.eq.s32.totalorder %s20, 1
    %p169 = por %p167, %p168
    %p171 = scmp.ne.s32.totalorder %s156, %s170
    %p172 = scmp.eq.s32.totalorder %s20, 0
    %p173 = por %p171, %p172
    %s175 = sadd.s32 %s174, 1
    %p178 = scmp.eq.s32.totalorder %s14, 1
    %p179 = scmp.ne.s32.totalorder %s174, %s176
    %p180 = scmp.eq.s32.totalorder %s14, 0
    %p181 = por %p179, %p180
    %p182 = scmp.ne.s32.totalorder %s174, %s176
    %p183 = scmp.eq.s32.totalorder %s19, 1
    %p184 = por %p182, %p183
    %p185 = scmp.ne.s32.totalorder %s176, %s177
    %p186 = scmp.eq.s32.totalorder %s19, 0
    %p187 = por %p185, %p186
    %p188 = scmp.ne.s32.totalorder %s176, %s177
    %p189 = scmp.eq.s32.totalorder %s20, 1
    %p190 = por %p188, %p189
    %p192 = scmp.ne.s32.totalorder %s177, %s191
    %p193 = scmp.eq.s32.totalorder %s20, 0
    %p194 = por %p192, %p193
    %s195 = ssub.s32 %s14, %s21
    %p196 = scmp.eq.s32.totalorder %s195, 0
    %s198 = sadd.s32 %s197, 1
    %s199 = scalar_select %p196, %s197, %s198
    %p202 = pneg %p196
    %p203 = scmp.eq.s32.totalorder %s14, 1
    %p204 = por %p202, %p203
    %p205 = scmp.ne.s32.totalorder %s197, %s200
    %p206 = scmp.eq.s32.totalorder %s14, 0
    %p207 = por %p205, %p206
    %p208 = scmp.ne.s32.totalorder %s197, %s200
    %p209 = scmp.eq.s32.totalorder %s19, 1
    %p210 = por %p208, %p209
    %p211 = scmp.ne.s32.totalorder %s200, %s201
    %p212 = scmp.eq.s32.totalorder %s19, 0
    %p213 = por %p211, %p212
    %p214 = scmp.ne.s32.totalorder %s200, %s201
    %p215 = scmp.eq.s32.totalorder %s20, 1
    %p216 = por %p214, %p215
    %p218 = scmp.ne.s32.totalorder %s201, %s217
    %p219 = scmp.eq.s32.totalorder %s20, 0
    %p220 = por %p218, %p219
    %p221 = scmp.le.s32.totalorder 1, %s14
    %p222 = scmp.lt.s32.totalorder %s14, 3
    %p223 = pnand %p221, %p222
    %p224 = pneg %p223
    // Predicated region
    $region9: #{based_module_1_forward.1} parent=5 // pred_check
      _
    $region10: #{based_module_1_forward.1} parent=5 // pred_check_branch
      %226 = sbr.rel (%p223) target = $region12
    $region11: #{based_module_1_forward.1} parent=5 // pred_region
      %s227 = ssub.s32 %s14, 1
      // Predicated region
      $region13: #{based_module_1_forward.1} parent=11 // pred_check
        %p228 = pneg %p61
      $region14: #{based_module_1_forward.1} parent=11 // pred_check_branch
        %230 = sbr.rel (%p228) target = $region16
      $region15: #{based_module_1_forward.1} parent=11 // pred_region
        _
      $region16: #{based_module_1_forward.1} parent=11 // pred_fallthru
        _
      // Predicated region
      $region17: #{based_module_1_forward.1} parent=11 // pred_check
        %p231 = pneg %p82
      $region18: #{based_module_1_forward.1} parent=11 // pred_check_branch
        %233 = sbr.rel (%p231) target = $region20
      $region19: #{based_module_1_forward.1} parent=11 // pred_region
        _
      $region20: #{based_module_1_forward.1} parent=11 // pred_fallthru
        _
      // Predicated region
      $region21: #{based_module_1_forward.1} parent=11 // pred_check
        %p234 = pneg %p103
      $region22: #{based_module_1_forward.1} parent=11 // pred_check_branch
        %236 = sbr.rel (%p234) target = $region24
      $region23: #{based_module_1_forward.1} parent=11 // pred_region
        _
      $region24: #{based_module_1_forward.1} parent=11 // pred_fallthru
        _
      // Predicated region
      $region25: #{based_module_1_forward.1} parent=11 // pred_check
        %p237 = pneg %p124
      $region26: #{based_module_1_forward.1} parent=11 // pred_check_branch
        %239 = sbr.rel (%p237) target = $region28
      $region27: #{based_module_1_forward.1} parent=11 // pred_region
        _
      $region28: #{based_module_1_forward.1} parent=11 // pred_fallthru
        _
      // Predicated region
      $region29: #{based_module_1_forward.1} parent=11 // pred_check
        %p240 = pneg %p145
      $region30: #{based_module_1_forward.1} parent=11 // pred_check_branch
        %242 = sbr.rel (%p240) target = $region32
      $region31: #{based_module_1_forward.1} parent=11 // pred_region
        _
      $region32: #{based_module_1_forward.1} parent=11 // pred_fallthru
        _
      // Predicated region
      $region33: #{based_module_1_forward.1} parent=11 // pred_check
        %p243 = pneg %p166
      $region34: #{based_module_1_forward.1} parent=11 // pred_check_branch
        %245 = sbr.rel (%p243) target = $region36
      $region35: #{based_module_1_forward.1} parent=11 // pred_region
        _
      $region36: #{based_module_1_forward.1} parent=11 // pred_fallthru
        _
      // Predicated region
      $region37: #{based_module_1_forward.1} parent=11 // pred_check
        %p246 = pneg %p187
      $region38: #{based_module_1_forward.1} parent=11 // pred_check_branch
        %248 = sbr.rel (%p246) target = $region40
      $region39: #{based_module_1_forward.1} parent=11 // pred_region
        _
      $region40: #{based_module_1_forward.1} parent=11 // pred_fallthru
        _
    $region12: #{based_module_1_forward.1} parent=5 // pred_fallthru
      _
    %p249 = scmp.lt.s32.totalorder %s14, 2
    // Predicated region
    $region41: #{based_module_1_forward.1} parent=5 // pred_check
      %p250 = pneg %p249
    $region42: #{based_module_1_forward.1} parent=5 // pred_check_branch
      %252 = sbr.rel (%p250) target = $region44
    $region43: #{based_module_1_forward.1} parent=5 // pred_region
      // Predicated region
      $region45: #{based_module_1_forward.1} parent=43 // pred_check
        %p253 = pneg %p34
      $region46: #{based_module_1_forward.1} parent=43 // pred_check_branch
        %255 = sbr.rel (%p253) target = $region48
      $region47: #{based_module_1_forward.1} parent=43 // pred_region
        %p256 = scmp.lt.s32.totalorder %s14, 1
        %s257 = scalar_select %p256, %s14, 1
        %s258 = smul.addr %s257, 2
        %s259 = smul.addr %s258, 8
        %s260 = scalar_lea.vmem %s0, %s259
      $region48: #{based_module_1_forward.1} parent=43 // pred_fallthru
        _
    $region44: #{based_module_1_forward.1} parent=5 // pred_fallthru
      _
    %p261 = scmp.le.s32.totalorder 1, %s14
    %p262 = scmp.lt.s32.totalorder %s14, 3
    %p263 = pnand %p261, %p262
    %p264 = pneg %p263
    // Predicated region
    $region49: #{based_module_1_forward.1} parent=5 // pred_check
      _
    $region50: #{based_module_1_forward.1} parent=5 // pred_check_branch
      %266 = sbr.rel (%p263) target = $region52
    $region51: #{based_module_1_forward.1} parent=5 // pred_region
      %s267 = ssub.s32 %s14, 1
      %p268 = scmp.lt.s32.totalorder %s19, 1
      %s269 = scalar_select %p268, %s19, 1
      %s270 = smul.addr %s269, 2
      %s271 = smul.addr %s270, 8
      %s272 = scalar_lea.vmem %s0, %s271
      %p273 = pneg %p40
      %p274 = pneg %p37
      %p275 = pneg %p61
      %p276 = pneg %p58
      %p277 = pneg %p82
      %p278 = pneg %p79
      %p279 = pneg %p103
      %p280 = pneg %p100
      %p281 = pneg %p124
      %p282 = pneg %p121
      %p283 = pneg %p145
      %p284 = pneg %p142
      %p285 = pneg %p166
      %p286 = pneg %p163
      %p287 = pneg %p187
      %p288 = pneg %p184
      %p289 = pneg %p213
      %p290 = pneg %p210
      %p291 = scmp.lt.s32.totalorder %s19, 1
      %s292 = scalar_select %p291, %s19, 1
      %s293 = smul.addr %s292, 2
      %s294 = smul.addr %s293, 8
      %s295 = scalar_lea.vmem %s8, %s294
      %p296 = scmp.lt.s32.totalorder %s19, 1
      %s297 = scalar_select %p296, %s19, 1
      %s298 = smul.addr %s297, 2
      %s299 = smul.addr %s298, 8
      %s300 = scalar_lea.vmem %s0, %s299
      %p301 = scmp.lt.s32.totalorder %s19, 1
      %s302 = scalar_select %p301, %s19, 1
      %s303 = smul.addr %s302, 2
      %s304 = smul.addr %s303, 8
      %s305 = scalar_lea.vmem %s8, %s304
      %vm306 = vcmask 517120
      %307 = vst.msk [vmem:[#allocation2] sm:$0x3] %vm306, 0.0
      %308 = vst.msk [vmem:[#allocation2 + $0x12] sm:$0x3] %vm306, 0.0
      %v309 = vld [vmem:[%s300] sm:$0xff]
      %v310 = vld [vmem:[%s300 + $0x8] sm:$0xff]
      %vm311 = vcmask 523264
      %312 = vst.msk [vmem:[#allocation2 + $0x2] sm:$0xff] %vm311, %v309
      %313 = vst.msk [vmem:[#allocation2 + $0xa] sm:$0xff] %vm311, %v310
      %v314 = vld [vmem:[#allocation2] sm:$0xff]
      %v315 = vld [vmem:[#allocation2 + $0x8] sm:$0xff]
      %v316 = vld [vmem:[#allocation2 + $0x10] sm:$0x3]
      %v317 = vld [vmem:[%s1] sm:$0xff]
      %v318 = vld [vmem:[%s1 + $0x8] sm:$0xff]
      %v319 = vld [vmem:[%s1 + $0x10] sm:$0xff]
      %v320 = vld [vmem:[%s1 + $0x18] sm:$0xff]
      %v321 = vld [vmem:[%s1 + $0x20] sm:$0xff]
      %v322 = vld [vmem:[%s1 + $0x28] sm:$0xff]
      %v323 = vld [vmem:[%s1 + $0x30] sm:$0xff]
      %v324 = vld [vmem:[%s1 + $0x38] sm:$0xff]
      %v325 = vld [vmem:[%s1 + $0x40] sm:$0xff]
      %v326 = vld [vmem:[%s1 + $0x48] sm:$0xff]
      %v327 = vld [vmem:[%s1 + $0x50] sm:$0xff]
      %v328 = vld [vmem:[%s1 + $0x58] sm:$0xff]
      %v329 = vld [vmem:[%s1 + $0x60] sm:$0xff]
      %v330 = vld [vmem:[%s1 + $0x68] sm:$0xff]
      %v331 = vld [vmem:[%s1 + $0x70] sm:$0xff]
      %v332 = vld [vmem:[%s1 + $0x78] sm:$0xff]
      %v333 = vld [vmem:[%s1 + $0x80] sm:$0xff]
      %v334 = vld [vmem:[%s1 + $0x88] sm:$0xff]
      %v335 = vld [vmem:[%s1 + $0x90] sm:$0xff]
      %v336 = vld [vmem:[%s1 + $0x98] sm:$0xff]
      %v337 = vld [vmem:[%s1 + $0xa0] sm:$0xff]
      %v338 = vld [vmem:[%s1 + $0xa8] sm:$0xff]
      %v339 = vld [vmem:[%s1 + $0xb0] sm:$0xff]
      %v340 = vld [vmem:[%s1 + $0xb8] sm:$0xff]
      %v341 = vld [vmem:[%s1 + $0xc0] sm:$0xff]
      %v342 = vld [vmem:[%s1 + $0xc8] sm:$0xff]
      %v343 = vld [vmem:[%s1 + $0xd0] sm:$0xff]
      %v344 = vld [vmem:[%s1 + $0xd8] sm:$0xff]
      %v345 = vld [vmem:[%s1 + $0xe0] sm:$0xff]
      %v346 = vld [vmem:[%s1 + $0xe8] sm:$0xff]
      %v347 = vld [vmem:[%s1 + $0xf0] sm:$0xff]
      %v348 = vld [vmem:[%s1 + $0xf8] sm:$0xff]
      %v349 = vld [vmem:[%s1 + $0x100] sm:$0xff]
      %v350 = vld [vmem:[%s1 + $0x108] sm:$0xff]
      %v351 = vld [vmem:[%s1 + $0x110] sm:$0xff]
      %v352 = vld [vmem:[%s1 + $0x118] sm:$0xff]
      %v353 = vld [vmem:[%s1 + $0x120] sm:$0xff]
      %v354 = vld [vmem:[%s1 + $0x128] sm:$0xff]
      %v355 = vld [vmem:[%s1 + $0x130] sm:$0xff]
      %v356 = vld [vmem:[%s1 + $0x138] sm:$0xff]
      %v357 = vld [vmem:[#allocation2 + $0x1] sm:$0xff]
      %v358 = vld [vmem:[#allocation2 + $0x9] sm:$0xff]
      %v359 = vld [vmem:[#allocation2 + $0x11] sm:$0x3]
      %s360 = scalar_lea.vmem %s1, 320
      %v361 = vld [vmem:[%s360] sm:$0xff]
      %v362 = vld [vmem:[%s360 + $0x8] sm:$0xff]
      %v363 = vld [vmem:[%s360 + $0x10] sm:$0xff]
      %v364 = vld [vmem:[%s360 + $0x18] sm:$0xff]
      %v365 = vld [vmem:[%s360 + $0x20] sm:$0xff]
      %v366 = vld [vmem:[%s360 + $0x28] sm:$0xff]
      %v367 = vld [vmem:[%s360 + $0x30] sm:$0xff]
      %v368 = vld [vmem:[%s360 + $0x38] sm:$0xff]
      %v369 = vld [vmem:[%s360 + $0x40] sm:$0xff]
      %v370 = vld [vmem:[%s360 + $0x48] sm:$0xff]
      %v371 = vld [vmem:[%s360 + $0x50] sm:$0xff]
      %v372 = vld [vmem:[%s360 + $0x58] sm:$0xff]
      %v373 = vld [vmem:[%s360 + $0x60] sm:$0xff]
      %v374 = vld [vmem:[%s360 + $0x68] sm:$0xff]
      %v375 = vld [vmem:[%s360 + $0x70] sm:$0xff]
      %v376 = vld [vmem:[%s360 + $0x78] sm:$0xff]
      %v377 = vld [vmem:[%s360 + $0x80] sm:$0xff]
      %v378 = vld [vmem:[%s360 + $0x88] sm:$0xff]
      %v379 = vld [vmem:[%s360 + $0x90] sm:$0xff]
      %v380 = vld [vmem:[%s360 + $0x98] sm:$0xff]
      %v381 = vld [vmem:[%s360 + $0xa0] sm:$0xff]
      %v382 = vld [vmem:[%s360 + $0xa8] sm:$0xff]
      %v383 = vld [vmem:[%s360 + $0xb0] sm:$0xff]
      %v384 = vld [vmem:[%s360 + $0xb8] sm:$0xff]
      %v385 = vld [vmem:[%s360 + $0xc0] sm:$0xff]
      %v386 = vld [vmem:[%s360 + $0xc8] sm:$0xff]
      %v387 = vld [vmem:[%s360 + $0xd0] sm:$0xff]
      %v388 = vld [vmem:[%s360 + $0xd8] sm:$0xff]
      %v389 = vld [vmem:[%s360 + $0xe0] sm:$0xff]
      %v390 = vld [vmem:[%s360 + $0xe8] sm:$0xff]
      %v391 = vld [vmem:[%s360 + $0xf0] sm:$0xff]
      %v392 = vld [vmem:[%s360 + $0xf8] sm:$0xff]
      %v393 = vld [vmem:[%s360 + $0x100] sm:$0xff]
      %v394 = vld [vmem:[%s360 + $0x108] sm:$0xff]
      %v395 = vld [vmem:[%s360 + $0x110] sm:$0xff]
      %v396 = vld [vmem:[%s360 + $0x118] sm:$0xff]
      %v397 = vld [vmem:[%s360 + $0x120] sm:$0xff]
      %v398 = vld [vmem:[%s360 + $0x128] sm:$0xff]
      %v399 = vld [vmem:[%s360 + $0x130] sm:$0xff]
      %v400 = vld [vmem:[%s360 + $0x138] sm:$0xff]
      %v402 = vsel %vm311, %v357, 0
      %v405 = vsel %vm311, %v358, 0
      %v408 = vsel %vm311, %v359, 0
      %410 = vmatpush.msra.mxu0 0.0
      %411 = vmatpush.msra.mxu0 0.0
      %412 = vmatpush.msra.mxu0 0.0
      %413 = vmatpush.msra.mxu0 0.0
      %414 = vmatpush.msra.mxu0 0.0
      %415 = vmatpush.msra.mxu0 0.0
      %416 = vmatpush.msra.mxu0 0.0
      %417 = vmatpush.msra.mxu0 0.0
      %418 = vmatpush.msra.mxu0 %v396
      %419 = vmatpush.msra.mxu0 %v391
      %420 = vmatpush.msra.mxu0 %v386
      %421 = vmatpush.msra.mxu0 %v381
      %422 = vmatpush.msra.mxu0 %v376
      %423 = vmatpush.msra.mxu0 %v371
      %424 = vmatpush.msra.mxu0 %v366
      %425 = vmatpush.msra.mxu0 %v361
      %426 = vmatmul.f32.gmra.mxu0 %v402
      %v427 = vpop.f32.mrf.mxu0
      %v428 = vadd.f32 0.0, %v427
      %429 = vmatmul.f32.gmra.mxu0 %v405
      %v430 = vpop.f32.mrf.mxu0
      %v431 = vadd.f32 0.0, %v430
      %432 = vmatmul.f32.gmra.mxu0 %v408
      %v433 = vpop.f32.mrf.mxu0
      %v434 = vadd.f32 0.0, %v433
      %435 = vdwg.mxu0
      %436 = vmatpush.msra.mxu0 0.0
      %437 = vmatpush.msra.mxu0 0.0
      %438 = vmatpush.msra.mxu0 0.0
      %439 = vmatpush.msra.mxu0 0.0
      %440 = vmatpush.msra.mxu0 0.0
      %441 = vmatpush.msra.mxu0 0.0
      %442 = vmatpush.msra.mxu0 0.0
      %443 = vmatpush.msra.mxu0 0.0
      %444 = vmatpush.msra.mxu0 %v397
      %445 = vmatpush.msra.mxu0 %v392
      %446 = vmatpush.msra.mxu0 %v387
      %447 = vmatpush.msra.mxu0 %v382
      %448 = vmatpush.msra.mxu0 %v377
      %449 = vmatpush.msra.mxu0 %v372
      %450 = vmatpush.msra.mxu0 %v367
      %451 = vmatpush.msra.mxu0 %v362
      %452 = vmatmul.f32.gmra.mxu0 %v402
      %v453 = vpop.f32.mrf.mxu0
      %v454 = vadd.f32 0.0, %v453
      %455 = vmatmul.f32.gmra.mxu0 %v405
      %v456 = vpop.f32.mrf.mxu0
      %v457 = vadd.f32 0.0, %v456
      %458 = vmatmul.f32.gmra.mxu0 %v408
      %v459 = vpop.f32.mrf.mxu0
      %v460 = vadd.f32 0.0, %v459
      %461 = vdwg.mxu0
      %462 = vmatpush.msra.mxu0 0.0
      %463 = vmatpush.msra.mxu0 0.0
      %464 = vmatpush.msra.mxu0 0.0
      %465 = vmatpush.msra.mxu0 0.0
      %466 = vmatpush.msra.mxu0 0.0
      %467 = vmatpush.msra.mxu0 0.0
      %468 = vmatpush.msra.mxu0 0.0
      %469 = vmatpush.msra.mxu0 0.0
      %470 = vmatpush.msra.mxu0 %v398
      %471 = vmatpush.msra.mxu0 %v393
      %472 = vmatpush.msra.mxu0 %v388
      %473 = vmatpush.msra.mxu0 %v383
      %474 = vmatpush.msra.mxu0 %v378
      %475 = vmatpush.msra.mxu0 %v373
      %476 = vmatpush.msra.mxu0 %v368
      %477 = vmatpush.msra.mxu0 %v363
      %478 = vmatmul.f32.gmra.mxu0 %v402
      %v479 = vpop.f32.mrf.mxu0
      %v480 = vadd.f32 0.0, %v479
      %481 = vmatmul.f32.gmra.mxu0 %v405
      %v482 = vpop.f32.mrf.mxu0
      %v483 = vadd.f32 0.0, %v482
      %484 = vmatmul.f32.gmra.mxu0 %v408
      %v485 = vpop.f32.mrf.mxu0
      %v486 = vadd.f32 0.0, %v485
      %487 = vdwg.mxu0
      %488 = vmatpush.msra.mxu0 0.0
      %489 = vmatpush.msra.mxu0 0.0
      %490 = vmatpush.msra.mxu0 0.0
      %491 = vmatpush.msra.mxu0 0.0
      %492 = vmatpush.msra.mxu0 0.0
      %493 = vmatpush.msra.mxu0 0.0
      %494 = vmatpush.msra.mxu0 0.0
      %495 = vmatpush.msra.mxu0 0.0
      %496 = vmatpush.msra.mxu0 %v399
      %497 = vmatpush.msra.mxu0 %v394
      %498 = vmatpush.msra.mxu0 %v389
      %499 = vmatpush.msra.mxu0 %v384
      %500 = vmatpush.msra.mxu0 %v379
      %501 = vmatpush.msra.mxu0 %v374
      %502 = vmatpush.msra.mxu0 %v369
      %503 = vmatpush.msra.mxu0 %v364
      %504 = vmatmul.f32.gmra.mxu0 %v402
      %v505 = vpop.f32.mrf.mxu0
      %v506 = vadd.f32 0.0, %v505
      %507 = vmatmul.f32.gmra.mxu0 %v405
      %v508 = vpop.f32.mrf.mxu0
      %v509 = vadd.f32 0.0, %v508
      %510 = vmatmul.f32.gmra.mxu0 %v408
      %v511 = vpop.f32.mrf.mxu0
      %v512 = vadd.f32 0.0, %v511
      %513 = vdwg.mxu0
      %514 = vmatpush.msra.mxu0 0.0
      %515 = vmatpush.msra.mxu0 0.0
      %516 = vmatpush.msra.mxu0 0.0
      %517 = vmatpush.msra.mxu0 0.0
      %518 = vmatpush.msra.mxu0 0.0
      %519 = vmatpush.msra.mxu0 0.0
      %520 = vmatpush.msra.mxu0 0.0
      %521 = vmatpush.msra.mxu0 0.0
      %522 = vmatpush.msra.mxu0 %v400
      %523 = vmatpush.msra.mxu0 %v395
      %524 = vmatpush.msra.mxu0 %v390
      %525 = vmatpush.msra.mxu0 %v385
      %526 = vmatpush.msra.mxu0 %v380
      %527 = vmatpush.msra.mxu0 %v375
      %528 = vmatpush.msra.mxu0 %v370
      %529 = vmatpush.msra.mxu0 %v365
      %530 = vmatmul.f32.gmra.mxu0 %v402
      %v531 = vpop.f32.mrf.mxu0
      %v532 = vadd.f32 0.0, %v531
      %533 = vmatmul.f32.gmra.mxu0 %v405
      %v534 = vpop.f32.mrf.mxu0
      %v535 = vadd.f32 0.0, %v534
      %536 = vmatmul.f32.gmra.mxu0 %v408
      %v537 = vpop.f32.mrf.mxu0
      %v538 = vadd.f32 0.0, %v537
      %539 = vdwg.mxu0
      %v541 = vsel %vm311, %v314, 0
      %v544 = vsel %vm311, %v315, 0
      %v547 = vsel %vm311, %v316, 0
      %549 = vmatpush.msra.mxu0 0.0
      %550 = vmatpush.msra.mxu0 0.0
      %551 = vmatpush.msra.mxu0 0.0
      %552 = vmatpush.msra.mxu0 0.0
      %553 = vmatpush.msra.mxu0 0.0
      %554 = vmatpush.msra.mxu0 0.0
      %555 = vmatpush.msra.mxu0 0.0
      %556 = vmatpush.msra.mxu0 0.0
      %557 = vmatpush.msra.mxu0 %v352
      %558 = vmatpush.msra.mxu0 %v347
      %559 = vmatpush.msra.mxu0 %v342
      %560 = vmatpush.msra.mxu0 %v337
      %561 = vmatpush.msra.mxu0 %v332
      %562 = vmatpush.msra.mxu0 %v327
      %563 = vmatpush.msra.mxu0 %v322
      %564 = vmatpush.msra.mxu0 %v317
      %565 = vmatmul.f32.gmra.mxu0 %v541
      %v566 = vpop.f32.mrf.mxu0
      %v567 = vadd.f32 %v428, %v566
      %568 = vmatmul.f32.gmra.mxu0 %v544
      %v569 = vpop.f32.mrf.mxu0
      %v570 = vadd.f32 %v431, %v569
      %571 = vmatmul.f32.gmra.mxu0 %v547
      %v572 = vpop.f32.mrf.mxu0
      %v573 = vadd.f32 %v434, %v572
      %574 = vdwg.mxu0
      %575 = vmatpush.msra.mxu0 0.0
      %576 = vmatpush.msra.mxu0 0.0
      %577 = vmatpush.msra.mxu0 0.0
      %578 = vmatpush.msra.mxu0 0.0
      %579 = vmatpush.msra.mxu0 0.0
      %580 = vmatpush.msra.mxu0 0.0
      %581 = vmatpush.msra.mxu0 0.0
      %582 = vmatpush.msra.mxu0 0.0
      %583 = vmatpush.msra.mxu0 %v353
      %584 = vmatpush.msra.mxu0 %v348
      %585 = vmatpush.msra.mxu0 %v343
      %586 = vmatpush.msra.mxu0 %v338
      %587 = vmatpush.msra.mxu0 %v333
      %588 = vmatpush.msra.mxu0 %v328
      %589 = vmatpush.msra.mxu0 %v323
      %590 = vmatpush.msra.mxu0 %v318
      %591 = vmatmul.f32.gmra.mxu0 %v541
      %v592 = vpop.f32.mrf.mxu0
      %v593 = vadd.f32 %v454, %v592
      %594 = vmatmul.f32.gmra.mxu0 %v544
      %v595 = vpop.f32.mrf.mxu0
      %v596 = vadd.f32 %v457, %v595
      %597 = vmatmul.f32.gmra.mxu0 %v547
      %v598 = vpop.f32.mrf.mxu0
      %v599 = vadd.f32 %v460, %v598
      %600 = vdwg.mxu0
      %601 = vmatpush.msra.mxu0 0.0
      %602 = vmatpush.msra.mxu0 0.0
      %603 = vmatpush.msra.mxu0 0.0
      %604 = vmatpush.msra.mxu0 0.0
      %605 = vmatpush.msra.mxu0 0.0
      %606 = vmatpush.msra.mxu0 0.0
      %607 = vmatpush.msra.mxu0 0.0
      %608 = vmatpush.msra.mxu0 0.0
      %609 = vmatpush.msra.mxu0 %v354
      %610 = vmatpush.msra.mxu0 %v349
      %611 = vmatpush.msra.mxu0 %v344
      %612 = vmatpush.msra.mxu0 %v339
      %613 = vmatpush.msra.mxu0 %v334
      %614 = vmatpush.msra.mxu0 %v329
      %615 = vmatpush.msra.mxu0 %v324
      %616 = vmatpush.msra.mxu0 %v319
      %617 = vmatmul.f32.gmra.mxu0 %v541
      %v618 = vpop.f32.mrf.mxu0
      %v619 = vadd.f32 %v480, %v618
      %620 = vmatmul.f32.gmra.mxu0 %v544
      %v621 = vpop.f32.mrf.mxu0
      %v622 = vadd.f32 %v483, %v621
      %623 = vmatmul.f32.gmra.mxu0 %v547
      %v624 = vpop.f32.mrf.mxu0
      %v625 = vadd.f32 %v486, %v624
      %626 = vdwg.mxu0
      %627 = vmatpush.msra.mxu0 0.0
      %628 = vmatpush.msra.mxu0 0.0
      %629 = vmatpush.msra.mxu0 0.0
      %630 = vmatpush.msra.mxu0 0.0
      %631 = vmatpush.msra.mxu0 0.0
      %632 = vmatpush.msra.mxu0 0.0
      %633 = vmatpush.msra.mxu0 0.0
      %634 = vmatpush.msra.mxu0 0.0
      %635 = vmatpush.msra.mxu0 %v355
      %636 = vmatpush.msra.mxu0 %v350
      %637 = vmatpush.msra.mxu0 %v345
      %638 = vmatpush.msra.mxu0 %v340
      %639 = vmatpush.msra.mxu0 %v335
      %640 = vmatpush.msra.mxu0 %v330
      %641 = vmatpush.msra.mxu0 %v325
      %642 = vmatpush.msra.mxu0 %v320
      %643 = vmatmul.f32.gmra.mxu0 %v541
      %v644 = vpop.f32.mrf.mxu0
      %v645 = vadd.f32 %v506, %v644
      %646 = vmatmul.f32.gmra.mxu0 %v544
      %v647 = vpop.f32.mrf.mxu0
      %v648 = vadd.f32 %v509, %v647
      %649 = vmatmul.f32.gmra.mxu0 %v547
      %v650 = vpop.f32.mrf.mxu0
      %v651 = vadd.f32 %v512, %v650
      %652 = vdwg.mxu0
      %653 = vmatpush.msra.mxu0 0.0
      %654 = vmatpush.msra.mxu0 0.0
      %655 = vmatpush.msra.mxu0 0.0
      %656 = vmatpush.msra.mxu0 0.0
      %657 = vmatpush.msra.mxu0 0.0
      %658 = vmatpush.msra.mxu0 0.0
      %659 = vmatpush.msra.mxu0 0.0
      %660 = vmatpush.msra.mxu0 0.0
      %661 = vmatpush.msra.mxu0 %v356
      %662 = vmatpush.msra.mxu0 %v351
      %663 = vmatpush.msra.mxu0 %v346
      %664 = vmatpush.msra.mxu0 %v341
      %665 = vmatpush.msra.mxu0 %v336
      %666 = vmatpush.msra.mxu0 %v331
      %667 = vmatpush.msra.mxu0 %v326
      %668 = vmatpush.msra.mxu0 %v321
      %669 = vmatmul.f32.gmra.mxu0 %v541
      %v670 = vpop.f32.mrf.mxu0
      %v671 = vadd.f32 %v532, %v670
      %672 = vmatmul.f32.gmra.mxu0 %v544
      %v673 = vpop.f32.mrf.mxu0
      %v674 = vadd.f32 %v535, %v673
      %675 = vmatmul.f32.gmra.mxu0 %v547
      %v676 = vpop.f32.mrf.mxu0
      %v677 = vadd.f32 %v538, %v676
      %678 = vdwg.mxu0
      %v679 = vld [vmem:[#allocation2 + $0x2] sm:$0xff]
      %v680 = vld [vmem:[#allocation2 + $0xa] sm:$0xff]
      %v681 = vld [vmem:[#allocation2 + $0x12] sm:$0x3]
      %s682 = scalar_lea.vmem %s1, 640
      %v683 = vld [vmem:[%s682] sm:$0xff]
      %v684 = vld [vmem:[%s682 + $0x8] sm:$0xff]
      %v685 = vld [vmem:[%s682 + $0x10] sm:$0xff]
      %v686 = vld [vmem:[%s682 + $0x18] sm:$0xff]
      %v687 = vld [vmem:[%s682 + $0x20] sm:$0xff]
      %v688 = vld [vmem:[%s682 + $0x28] sm:$0xff]
      %v689 = vld [vmem:[%s682 + $0x30] sm:$0xff]
      %v690 = vld [vmem:[%s682 + $0x38] sm:$0xff]
      %v691 = vld [vmem:[%s682 + $0x40] sm:$0xff]
      %v692 = vld [vmem:[%s682 + $0x48] sm:$0xff]
      %v693 = vld [vmem:[%s682 + $0x50] sm:$0xff]
      %v694 = vld [vmem:[%s682 + $0x58] sm:$0xff]
      %v695 = vld [vmem:[%s682 + $0x60] sm:$0xff]
      %v696 = vld [vmem:[%s682 + $0x68] sm:$0xff]
      %v697 = vld [vmem:[%s682 + $0x70] sm:$0xff]
      %v698 = vld [vmem:[%s682 + $0x78] sm:$0xff]
      %v699 = vld [vmem:[%s682 + $0x80] sm:$0xff]
      %v700 = vld [vmem:[%s682 + $0x88] sm:$0xff]
      %v701 = vld [vmem:[%s682 + $0x90] sm:$0xff]
      %v702 = vld [vmem:[%s682 + $0x98] sm:$0xff]
      %v703 = vld [vmem:[%s682 + $0xa0] sm:$0xff]
      %v704 = vld [vmem:[%s682 + $0xa8] sm:$0xff]
      %v705 = vld [vmem:[%s682 + $0xb0] sm:$0xff]
      %v706 = vld [vmem:[%s682 + $0xb8] sm:$0xff]
      %v707 = vld [vmem:[%s682 + $0xc0] sm:$0xff]
      %v708 = vld [vmem:[%s682 + $0xc8] sm:$0xff]
      %v709 = vld [vmem:[%s682 + $0xd0] sm:$0xff]
      %v710 = vld [vmem:[%s682 + $0xd8] sm:$0xff]
      %v711 = vld [vmem:[%s682 + $0xe0] sm:$0xff]
      %v712 = vld [vmem:[%s682 + $0xe8] sm:$0xff]
      %v713 = vld [vmem:[%s682 + $0xf0] sm:$0xff]
      %v714 = vld [vmem:[%s682 + $0xf8] sm:$0xff]
      %v715 = vld [vmem:[%s682 + $0x100] sm:$0xff]
      %v716 = vld [vmem:[%s682 + $0x108] sm:$0xff]
      %v717 = vld [vmem:[%s682 + $0x110] sm:$0xff]
      %v718 = vld [vmem:[%s682 + $0x118] sm:$0xff]
      %v719 = vld [vmem:[%s682 + $0x120] sm:$0xff]
      %v720 = vld [vmem:[%s682 + $0x128] sm:$0xff]
      %v721 = vld [vmem:[%s682 + $0x130] sm:$0xff]
      %v722 = vld [vmem:[%s682 + $0x138] sm:$0xff]
      %v724 = vsel %vm311, %v679, 0
      %v727 = vsel %vm311, %v680, 0
      %v730 = vsel %vm311, %v681, 0
      %732 = vmatpush.msra.mxu0 0.0
      %733 = vmatpush.msra.mxu0 0.0
      %734 = vmatpush.msra.mxu0 0.0
      %735 = vmatpush.msra.mxu0 0.0
      %736 = vmatpush.msra.mxu0 0.0
      %737 = vmatpush.msra.mxu0 0.0
      %738 = vmatpush.msra.mxu0 0.0
      %739 = vmatpush.msra.mxu0 0.0
      %740 = vmatpush.msra.mxu0 %v718
      %741 = vmatpush.msra.mxu0 %v713
      %742 = vmatpush.msra.mxu0 %v708
      %743 = vmatpush.msra.mxu0 %v703
      %744 = vmatpush.msra.mxu0 %v698
      %745 = vmatpush.msra.mxu0 %v693
      %746 = vmatpush.msra.mxu0 %v688
      %747 = vmatpush.msra.mxu0 %v683
      %748 = vmatmul.f32.gmra.mxu0 %v724
      %v749 = vpop.f32.mrf.mxu0
      %v750 = vadd.f32 0.0, %v749
      %751 = vmatmul.f32.gmra.mxu0 %v727
      %v752 = vpop.f32.mrf.mxu0
      %v753 = vadd.f32 0.0, %v752
      %754 = vmatmul.f32.gmra.mxu0 %v730
      %v755 = vpop.f32.mrf.mxu0
      %v756 = vadd.f32 0.0, %v755
      %757 = vdwg.mxu0
      %758 = vmatpush.msra.mxu0 0.0
      %759 = vmatpush.msra.mxu0 0.0
      %760 = vmatpush.msra.mxu0 0.0
      %761 = vmatpush.msra.mxu0 0.0
      %762 = vmatpush.msra.mxu0 0.0
      %763 = vmatpush.msra.mxu0 0.0
      %764 = vmatpush.msra.mxu0 0.0
      %765 = vmatpush.msra.mxu0 0.0
      %766 = vmatpush.msra.mxu0 %v719
      %767 = vmatpush.msra.mxu0 %v714
      %768 = vmatpush.msra.mxu0 %v709
      %769 = vmatpush.msra.mxu0 %v704
      %770 = vmatpush.msra.mxu0 %v699
      %771 = vmatpush.msra.mxu0 %v694
      %772 = vmatpush.msra.mxu0 %v689
      %773 = vmatpush.msra.mxu0 %v684
      %774 = vmatmul.f32.gmra.mxu0 %v724
      %v775 = vpop.f32.mrf.mxu0
      %v776 = vadd.f32 0.0, %v775
      %777 = vmatmul.f32.gmra.mxu0 %v727
      %v778 = vpop.f32.mrf.mxu0
      %v779 = vadd.f32 0.0, %v778
      %780 = vmatmul.f32.gmra.mxu0 %v730
      %v781 = vpop.f32.mrf.mxu0
      %v782 = vadd.f32 0.0, %v781
      %783 = vdwg.mxu0
      %784 = vmatpush.msra.mxu0 0.0
      %785 = vmatpush.msra.mxu0 0.0
      %786 = vmatpush.msra.mxu0 0.0
      %787 = vmatpush.msra.mxu0 0.0
      %788 = vmatpush.msra.mxu0 0.0
      %789 = vmatpush.msra.mxu0 0.0
      %790 = vmatpush.msra.mxu0 0.0
      %791 = vmatpush.msra.mxu0 0.0
      %792 = vmatpush.msra.mxu0 %v720
      %793 = vmatpush.msra.mxu0 %v715
      %794 = vmatpush.msra.mxu0 %v710
      %795 = vmatpush.msra.mxu0 %v705
      %796 = vmatpush.msra.mxu0 %v700
      %797 = vmatpush.msra.mxu0 %v695
      %798 = vmatpush.msra.mxu0 %v690
      %799 = vmatpush.msra.mxu0 %v685
      %800 = vmatmul.f32.gmra.mxu0 %v724
      %v801 = vpop.f32.mrf.mxu0
      %v802 = vadd.f32 0.0, %v801
      %803 = vmatmul.f32.gmra.mxu0 %v727
      %v804 = vpop.f32.mrf.mxu0
      %v805 = vadd.f32 0.0, %v804
      %806 = vmatmul.f32.gmra.mxu0 %v730
      %v807 = vpop.f32.mrf.mxu0
      %v808 = vadd.f32 0.0, %v807
      %809 = vdwg.mxu0
      %810 = vmatpush.msra.mxu0 0.0
      %811 = vmatpush.msra.mxu0 0.0
      %812 = vmatpush.msra.mxu0 0.0
      %813 = vmatpush.msra.mxu0 0.0
      %814 = vmatpush.msra.mxu0 0.0
      %815 = vmatpush.msra.mxu0 0.0
      %816 = vmatpush.msra.mxu0 0.0
      %817 = vmatpush.msra.mxu0 0.0
      %818 = vmatpush.msra.mxu0 %v721
      %819 = vmatpush.msra.mxu0 %v716
      %820 = vmatpush.msra.mxu0 %v711
      %821 = vmatpush.msra.mxu0 %v706
      %822 = vmatpush.msra.mxu0 %v701
      %823 = vmatpush.msra.mxu0 %v696
      %824 = vmatpush.msra.mxu0 %v691
      %825 = vmatpush.msra.mxu0 %v686
      %826 = vmatmul.f32.gmra.mxu0 %v724
      %v827 = vpop.f32.mrf.mxu0
      %v828 = vadd.f32 0.0, %v827
      %829 = vmatmul.f32.gmra.mxu0 %v727
      %v830 = vpop.f32.mrf.mxu0
      %v831 = vadd.f32 0.0, %v830
      %832 = vmatmul.f32.gmra.mxu0 %v730
      %v833 = vpop.f32.mrf.mxu0
      %v834 = vadd.f32 0.0, %v833
      %835 = vdwg.mxu0
      %836 = vmatpush.msra.mxu0 0.0
      %837 = vmatpush.msra.mxu0 0.0
      %838 = vmatpush.msra.mxu0 0.0
      %839 = vmatpush.msra.mxu0 0.0
      %840 = vmatpush.msra.mxu0 0.0
      %841 = vmatpush.msra.mxu0 0.0
      %842 = vmatpush.msra.mxu0 0.0
      %843 = vmatpush.msra.mxu0 0.0
      %844 = vmatpush.msra.mxu0 %v722
      %845 = vmatpush.msra.mxu0 %v717
      %846 = vmatpush.msra.mxu0 %v712
      %847 = vmatpush.msra.mxu0 %v707
      %848 = vmatpush.msra.mxu0 %v702
      %849 = vmatpush.msra.mxu0 %v697
      %850 = vmatpush.msra.mxu0 %v692
      %851 = vmatpush.msra.mxu0 %v687
      %852 = vmatmul.f32.gmra.mxu0 %v724
      %v853 = vpop.f32.mrf.mxu0
      %v854 = vadd.f32 0.0, %v853
      %855 = vmatmul.f32.gmra.mxu0 %v727
      %v856 = vpop.f32.mrf.mxu0
      %v857 = vadd.f32 0.0, %v856
      %858 = vmatmul.f32.gmra.mxu0 %v730
      %v859 = vpop.f32.mrf.mxu0
      %v860 = vadd.f32 0.0, %v859
      %861 = vdwg.mxu0
      %v862 = vadd.f32 %v567, %v750
      %v863 = vadd.f32 %v593, %v776
      %v864 = vadd.f32 %v619, %v802
      %v865 = vadd.f32 %v645, %v828
      %v866 = vadd.f32 %v671, %v854
      %v867 = vadd.f32 %v570, %v753
      %v868 = vadd.f32 %v596, %v779
      %v869 = vadd.f32 %v622, %v805
      %v870 = vadd.f32 %v648, %v831
      %v871 = vadd.f32 %v674, %v857
      %v872 = vadd.f32 %v573, %v756
      %v873 = vadd.f32 %v599, %v782
      %v874 = vadd.f32 %v625, %v808
      %v875 = vadd.f32 %v651, %v834
      %v876 = vadd.f32 %v677, %v860
      %v877 = vld [vmem:[%s2] sm:$0x1f]
      %v879 = vperm.slane %v877, 0
      %v880 = vperm.slane %v877, 1
      %v881 = vperm.slane %v877, 2
      %v882 = vperm.slane %v877, 3
      %v883 = vperm.slane %v877, 4
      %v889 = vadd.f32 %v862, %v879
      %v890 = vadd.f32 %v863, %v880
      %v891 = vadd.f32 %v864, %v881
      %v892 = vadd.f32 %v865, %v882
      %v893 = vadd.f32 %v866, %v883
      %v894 = vadd.f32 %v867, %v879
      %v895 = vadd.f32 %v868, %v880
      %v896 = vadd.f32 %v869, %v881
      %v897 = vadd.f32 %v870, %v882
      %v898 = vadd.f32 %v871, %v883
      %v899 = vadd.f32 %v872, %v879
      %v900 = vadd.f32 %v873, %v880
      %v901 = vadd.f32 %v874, %v881
      %v902 = vadd.f32 %v875, %v882
      %v903 = vadd.f32 %v876, %v883
      %vm904 = vcmask 146432
      %v906 = vsel %vm904, 1.0, 0
      %vm908 = vcmask 1041408
      %v910 = vsel %vm908, %v899, 0
      %v913 = vsel %vm908, %v900, 0
      %v916 = vsel %vm908, %v901, 0
      %v919 = vsel %vm908, %v902, 0
      %v922 = vsel %vm908, %v903, 0
      %924 = vmatpush.msra.mxu0 0.0
      %925 = vmatpush.msra.mxu0 0.0
      %926 = vmatpush.msra.mxu0 0.0
      %927 = vmatpush.msra.mxu0 0.0
      %928 = vmatpush.msra.mxu0 0.0
      %929 = vmatpush.msra.mxu0 0.0
      %930 = vmatpush.msra.mxu0 0.0
      %931 = vmatpush.msra.mxu0 0.0
      %932 = vmatpush.msra.mxu0 0.0
      %933 = vmatpush.msra.mxu0 0.0
      %934 = vmatpush.msra.mxu0 0.0
      %935 = vmatpush.msra.mxu0 0.0
      %936 = vmatpush.msra.mxu0 0.0
      %937 = vmatpush.msra.mxu0 %v910
      %938 = vmatpush.msra.mxu0 %v894
      %939 = vmatpush.msra.mxu0 %v889
      %940 = vmatmul.f32.gmra.mxu0 %v906
      %v941 = vpop.f32.mrf.mxu0
      %v942 = vadd.f32 0.0, %v941
      %943 = vdwg.mxu0
      %944 = vmatpush.msra.mxu0 0.0
      %945 = vmatpush.msra.mxu0 0.0
      %946 = vmatpush.msra.mxu0 0.0
      %947 = vmatpush.msra.mxu0 0.0
      %948 = vmatpush.msra.mxu0 0.0
      %949 = vmatpush.msra.mxu0 0.0
      %950 = vmatpush.msra.mxu0 0.0
      %951 = vmatpush.msra.mxu0 0.0
      %952 = vmatpush.msra.mxu0 0.0
      %953 = vmatpush.msra.mxu0 0.0
      %954 = vmatpush.msra.mxu0 0.0
      %955 = vmatpush.msra.mxu0 0.0
      %956 = vmatpush.msra.mxu0 0.0
      %957 = vmatpush.msra.mxu0 %v913
      %958 = vmatpush.msra.mxu0 %v895
      %959 = vmatpush.msra.mxu0 %v890
      %960 = vmatmul.f32.gmra.mxu0 %v906
      %v961 = vpop.f32.mrf.mxu0
      %v962 = vadd.f32 0.0, %v961
      %963 = vdwg.mxu0
      %964 = vmatpush.msra.mxu0 0.0
      %965 = vmatpush.msra.mxu0 0.0
      %966 = vmatpush.msra.mxu0 0.0
      %967 = vmatpush.msra.mxu0 0.0
      %968 = vmatpush.msra.mxu0 0.0
      %969 = vmatpush.msra.mxu0 0.0
      %970 = vmatpush.msra.mxu0 0.0
      %971 = vmatpush.msra.mxu0 0.0
      %972 = vmatpush.msra.mxu0 0.0
      %973 = vmatpush.msra.mxu0 0.0
      %974 = vmatpush.msra.mxu0 0.0
      %975 = vmatpush.msra.mxu0 0.0
      %976 = vmatpush.msra.mxu0 0.0
      %977 = vmatpush.msra.mxu0 %v916
      %978 = vmatpush.msra.mxu0 %v896
      %979 = vmatpush.msra.mxu0 %v891
      %980 = vmatmul.f32.gmra.mxu0 %v906
      %v981 = vpop.f32.mrf.mxu0
      %v982 = vadd.f32 0.0, %v981
      %983 = vdwg.mxu0
      %984 = vmatpush.msra.mxu0 0.0
      %985 = vmatpush.msra.mxu0 0.0
      %986 = vmatpush.msra.mxu0 0.0
      %987 = vmatpush.msra.mxu0 0.0
      %988 = vmatpush.msra.mxu0 0.0
      %989 = vmatpush.msra.mxu0 0.0
      %990 = vmatpush.msra.mxu0 0.0
      %991 = vmatpush.msra.mxu0 0.0
      %992 = vmatpush.msra.mxu0 0.0
      %993 = vmatpush.msra.mxu0 0.0
      %994 = vmatpush.msra.mxu0 0.0
      %995 = vmatpush.msra.mxu0 0.0
      %996 = vmatpush.msra.mxu0 0.0
      %997 = vmatpush.msra.mxu0 %v919
      %998 = vmatpush.msra.mxu0 %v897
      %999 = vmatpush.msra.mxu0 %v892
      %1000 = vmatmul.f32.gmra.mxu0 %v906
      %v1001 = vpop.f32.mrf.mxu0
      %v1002 = vadd.f32 0.0, %v1001
      %1003 = vdwg.mxu0
      %1004 = vmatpush.msra.mxu0 0.0
      %1005 = vmatpush.msra.mxu0 0.0
      %1006 = vmatpush.msra.mxu0 0.0
      %1007 = vmatpush.msra.mxu0 0.0
      %1008 = vmatpush.msra.mxu0 0.0
      %1009 = vmatpush.msra.mxu0 0.0
      %1010 = vmatpush.msra.mxu0 0.0
      %1011 = vmatpush.msra.mxu0 0.0
      %1012 = vmatpush.msra.mxu0 0.0
      %1013 = vmatpush.msra.mxu0 0.0
      %1014 = vmatpush.msra.mxu0 0.0
      %1015 = vmatpush.msra.mxu0 0.0
      %1016 = vmatpush.msra.mxu0 0.0
      %1017 = vmatpush.msra.mxu0 %v922
      %1018 = vmatpush.msra.mxu0 %v898
      %1019 = vmatpush.msra.mxu0 %v893
      %1020 = vmatmul.f32.gmra.mxu0 %v906
      %v1021 = vpop.f32.mrf.mxu0
      %v1022 = vadd.f32 0.0, %v1021
      %1023 = vdwg.mxu0
      %v1024 = vmul.f32 %v889, %v889
      %v1025 = vmul.f32 %v890, %v890
      %v1026 = vmul.f32 %v891, %v891
      %v1027 = vmul.f32 %v892, %v892
      %v1028 = vmul.f32 %v893, %v893
      %v1029 = vmul.f32 %v894, %v894
      %v1030 = vmul.f32 %v895, %v895
      %v1031 = vmul.f32 %v896, %v896
      %v1032 = vmul.f32 %v897, %v897
      %v1033 = vmul.f32 %v898, %v898
      %v1034 = vmul.f32 %v899, %v899
      %v1035 = vmul.f32 %v900, %v900
      %v1036 = vmul.f32 %v901, %v901
      %v1037 = vmul.f32 %v902, %v902
      %v1038 = vmul.f32 %v903, %v903
      %v1040 = vsel %vm908, %v1034, 0
      %v1043 = vsel %vm908, %v1035, 0
      %v1046 = vsel %vm908, %v1036, 0
      %v1049 = vsel %vm908, %v1037, 0
      %v1052 = vsel %vm908, %v1038, 0
      %1054 = vmatpush.msra.mxu0 0.0
      %1055 = vmatpush.msra.mxu0 0.0
      %1056 = vmatpush.msra.mxu0 0.0
      %1057 = vmatpush.msra.mxu0 0.0
      %1058 = vmatpush.msra.mxu0 0.0
      %1059 = vmatpush.msra.mxu0 0.0
      %1060 = vmatpush.msra.mxu0 0.0
      %1061 = vmatpush.msra.mxu0 0.0
      %1062 = vmatpush.msra.mxu0 0.0
      %1063 = vmatpush.msra.mxu0 0.0
      %1064 = vmatpush.msra.mxu0 0.0
      %1065 = vmatpush.msra.mxu0 0.0
      %1066 = vmatpush.msra.mxu0 0.0
      %1067 = vmatpush.msra.mxu0 %v1040
      %1068 = vmatpush.msra.mxu0 %v1029
      %1069 = vmatpush.msra.mxu0 %v1024
      %1070 = vmatmul.f32.gmra.mxu0 %v906
      %v1071 = vpop.f32.mrf.mxu0
      %v1072 = vadd.f32 0.0, %v1071
      %1073 = vdwg.mxu0
      %1074 = vmatpush.msra.mxu0 0.0
      %1075 = vmatpush.msra.mxu0 0.0
      %1076 = vmatpush.msra.mxu0 0.0
      %1077 = vmatpush.msra.mxu0 0.0
      %1078 = vmatpush.msra.mxu0 0.0
      %1079 = vmatpush.msra.mxu0 0.0
      %1080 = vmatpush.msra.mxu0 0.0
      %1081 = vmatpush.msra.mxu0 0.0
      %1082 = vmatpush.msra.mxu0 0.0
      %1083 = vmatpush.msra.mxu0 0.0
      %1084 = vmatpush.msra.mxu0 0.0
      %1085 = vmatpush.msra.mxu0 0.0
      %1086 = vmatpush.msra.mxu0 0.0
      %1087 = vmatpush.msra.mxu0 %v1043
      %1088 = vmatpush.msra.mxu0 %v1030
      %1089 = vmatpush.msra.mxu0 %v1025
      %1090 = vmatmul.f32.gmra.mxu0 %v906
      %v1091 = vpop.f32.mrf.mxu0
      %v1092 = vadd.f32 0.0, %v1091
      %1093 = vdwg.mxu0
      %1094 = vmatpush.msra.mxu0 0.0
      %1095 = vmatpush.msra.mxu0 0.0
      %1096 = vmatpush.msra.mxu0 0.0
      %1097 = vmatpush.msra.mxu0 0.0
      %1098 = vmatpush.msra.mxu0 0.0
      %1099 = vmatpush.msra.mxu0 0.0
      %1100 = vmatpush.msra.mxu0 0.0
      %1101 = vmatpush.msra.mxu0 0.0
      %1102 = vmatpush.msra.mxu0 0.0
      %1103 = vmatpush.msra.mxu0 0.0
      %1104 = vmatpush.msra.mxu0 0.0
      %1105 = vmatpush.msra.mxu0 0.0
      %1106 = vmatpush.msra.mxu0 0.0
      %1107 = vmatpush.msra.mxu0 %v1046
      %1108 = vmatpush.msra.mxu0 %v1031
      %1109 = vmatpush.msra.mxu0 %v1026
      %1110 = vmatmul.f32.gmra.mxu0 %v906
      %v1111 = vpop.f32.mrf.mxu0
      %v1112 = vadd.f32 0.0, %v1111
      %1113 = vdwg.mxu0
      %1114 = vmatpush.msra.mxu0 0.0
      %1115 = vmatpush.msra.mxu0 0.0
      %1116 = vmatpush.msra.mxu0 0.0
      %1117 = vmatpush.msra.mxu0 0.0
      %1118 = vmatpush.msra.mxu0 0.0
      %1119 = vmatpush.msra.mxu0 0.0
      %1120 = vmatpush.msra.mxu0 0.0
      %1121 = vmatpush.msra.mxu0 0.0
      %1122 = vmatpush.msra.mxu0 0.0
      %1123 = vmatpush.msra.mxu0 0.0
      %1124 = vmatpush.msra.mxu0 0.0
      %1125 = vmatpush.msra.mxu0 0.0
      %1126 = vmatpush.msra.mxu0 0.0
      %1127 = vmatpush.msra.mxu0 %v1049
      %1128 = vmatpush.msra.mxu0 %v1032
      %1129 = vmatpush.msra.mxu0 %v1027
      %1130 = vmatmul.f32.gmra.mxu0 %v906
      %v1131 = vpop.f32.mrf.mxu0
      %v1132 = vadd.f32 0.0, %v1131
      %1133 = vdwg.mxu0
      %1134 = vmatpush.msra.mxu0 0.0
      %1135 = vmatpush.msra.mxu0 0.0
      %1136 = vmatpush.msra.mxu0 0.0
      %1137 = vmatpush.msra.mxu0 0.0
      %1138 = vmatpush.msra.mxu0 0.0
      %1139 = vmatpush.msra.mxu0 0.0
      %1140 = vmatpush.msra.mxu0 0.0
      %1141 = vmatpush.msra.mxu0 0.0
      %1142 = vmatpush.msra.mxu0 0.0
      %1143 = vmatpush.msra.mxu0 0.0
      %1144 = vmatpush.msra.mxu0 0.0
      %1145 = vmatpush.msra.mxu0 0.0
      %1146 = vmatpush.msra.mxu0 0.0
      %1147 = vmatpush.msra.mxu0 %v1052
      %1148 = vmatpush.msra.mxu0 %v1033
      %1149 = vmatpush.msra.mxu0 %v1028
      %1150 = vmatmul.f32.gmra.mxu0 %v906
      %v1151 = vpop.f32.mrf.mxu0
      %v1152 = vadd.f32 0.0, %v1151
      %1153 = vdwg.mxu0
      %v1159 = vrot.slane %v1072, 7
      %v1160 = vrot.slane %v1092, 7
      %v1161 = vrot.slane %v1112, 7
      %v1162 = vrot.slane %v1132, 7
      %v1163 = vrot.slane %v1152, 7
      %vm1169 = vcmask 1040384
      %v1170 = vsel %vm1169, %v942, %v1159
      %v1171 = vsel %vm1169, %v962, %v1160
      %v1172 = vsel %vm1169, %v982, %v1161
      %v1173 = vsel %vm1169, %v1002, %v1162
      %v1174 = vsel %vm1169, %v1022, %v1163
      %v1175 = vld [vmem:[%s3] sm:$0xff]
      %v1176 = vld [vmem:[%s3 + $0x8] sm:$0xff]
      %v1177 = vld [vmem:[%s3 + $0x10] sm:$0xff]
      %v1178 = vld [vmem:[%s3 + $0x18] sm:$0xff]
      %v1179 = vld [vmem:[%s3 + $0x20] sm:$0xff]
      %v1180 = vld [vmem:[%s3 + $0x28] sm:$0xff]
      %v1181 = vld [vmem:[%s3 + $0x30] sm:$0xff]
      %v1182 = vld [vmem:[%s3 + $0x38] sm:$0xff]
      %v1183 = vld [vmem:[%s3 + $0x40] sm:$0xff]
      %v1184 = vld [vmem:[%s3 + $0x48] sm:$0xff]
      %v1185 = vld [vmem:[%s3 + $0x50] sm:$0xff]
      %v1186 = vld [vmem:[%s3 + $0x58] sm:$0xff]
      %v1187 = vld [vmem:[%s3 + $0x60] sm:$0xff]
      %v1188 = vld [vmem:[%s3 + $0x68] sm:$0xff]
      %v1189 = vld [vmem:[%s3 + $0x70] sm:$0xff]
      %v1190 = vld [vmem:[%s3 + $0x78] sm:$0xff]
      %v1191 = vld [vmem:[%s3 + $0x80] sm:$0xff]
      %v1192 = vld [vmem:[%s3 + $0x88] sm:$0xff]
      %v1193 = vld [vmem:[%s3 + $0x90] sm:$0xff]
      %v1194 = vld [vmem:[%s3 + $0x98] sm:$0xff]
      %v1195 = vld [vmem:[%s3 + $0xa0] sm:$0xff]
      %v1196 = vld [vmem:[%s3 + $0xa8] sm:$0xff]
      %v1197 = vld [vmem:[%s3 + $0xb0] sm:$0xff]
      %v1198 = vld [vmem:[%s3 + $0xb8] sm:$0xff]
      %v1199 = vld [vmem:[%s3 + $0xc0] sm:$0xff]
      %v1200 = vld [vmem:[%s3 + $0xc8] sm:$0xff]
      %v1201 = vld [vmem:[%s3 + $0xd0] sm:$0xff]
      %v1202 = vld [vmem:[%s3 + $0xd8] sm:$0xff]
      %v1203 = vld [vmem:[%s3 + $0xe0] sm:$0xff]
      %v1204 = vld [vmem:[%s3 + $0xe8] sm:$0xff]
      %v1205 = vld [vmem:[%s3 + $0xf0] sm:$0xff]
      %v1206 = vld [vmem:[%s3 + $0xf8] sm:$0xff]
      %v1207 = vld [vmem:[%s3 + $0x100] sm:$0xff]
      %v1208 = vld [vmem:[%s3 + $0x108] sm:$0xff]
      %v1209 = vld [vmem:[%s3 + $0x110] sm:$0xff]
      %v1210 = vld [vmem:[%s3 + $0x118] sm:$0xff]
      %v1211 = vld [vmem:[%s3 + $0x120] sm:$0xff]
      %v1212 = vld [vmem:[%s3 + $0x128] sm:$0xff]
      %v1213 = vld [vmem:[%s3 + $0x130] sm:$0xff]
      %v1214 = vld [vmem:[%s3 + $0x138] sm:$0xff]
      %v1215 = vld [vmem:[%s3 + $0x140] sm:$0xff]
      %v1216 = vld [vmem:[%s3 + $0x148] sm:$0xff]
      %v1217 = vld [vmem:[%s3 + $0x150] sm:$0xff]
      %v1218 = vld [vmem:[%s3 + $0x158] sm:$0xff]
      %v1219 = vld [vmem:[%s3 + $0x160] sm:$0xff]
      %v1220 = vld [vmem:[%s3 + $0x168] sm:$0xff]
      %v1221 = vld [vmem:[%s3 + $0x170] sm:$0xff]
      %v1222 = vld [vmem:[%s3 + $0x178] sm:$0xff]
      %v1223 = vld [vmem:[%s3 + $0x180] sm:$0xff]
      %v1224 = vld [vmem:[%s3 + $0x188] sm:$0xff]
      %v1225 = vld [vmem:[%s3 + $0x190] sm:$0xff]
      %v1226 = vld [vmem:[%s3 + $0x198] sm:$0xff]
      %v1227 = vld [vmem:[%s3 + $0x1a0] sm:$0xff]
      %v1228 = vld [vmem:[%s3 + $0x1a8] sm:$0xff]
      %v1229 = vld [vmem:[%s3 + $0x1b0] sm:$0xff]
      %v1230 = vld [vmem:[%s3 + $0x1b8] sm:$0xff]
      %v1231 = vld [vmem:[%s3 + $0x1c0] sm:$0xff]
      %v1232 = vld [vmem:[%s3 + $0x1c8] sm:$0xff]
      %v1233 = vld [vmem:[%s3 + $0x1d0] sm:$0xff]
      %v1234 = vld [vmem:[%s3 + $0x1d8] sm:$0xff]
      %v1235 = vld [vmem:[%s3 + $0x1e0] sm:$0xff]
      %v1236 = vld [vmem:[%s3 + $0x1e8] sm:$0xff]
      %v1237 = vld [vmem:[%s3 + $0x1f0] sm:$0xff]
      %v1238 = vld [vmem:[%s3 + $0x1f8] sm:$0xff]
      %v1239 = vld [vmem:[%s3 + $0x200] sm:$0xff]
      %v1240 = vld [vmem:[%s3 + $0x208] sm:$0xff]
      %v1241 = vld [vmem:[%s3 + $0x210] sm:$0xff]
      %v1242 = vld [vmem:[%s3 + $0x218] sm:$0xff]
      %v1243 = vld [vmem:[%s3 + $0x220] sm:$0xff]
      %v1244 = vld [vmem:[%s3 + $0x228] sm:$0xff]
      %v1245 = vld [vmem:[%s3 + $0x230] sm:$0xff]
      %v1246 = vld [vmem:[%s3 + $0x238] sm:$0xff]
      %v1248 = vsel %vm311, %v1174, 0
      %1250 = vmatpush.msra.mxu0 %v1190
      %1251 = vmatpush.msra.mxu0 %v1189
      %1252 = vmatpush.msra.mxu0 %v1188
      %1253 = vmatpush.msra.mxu0 %v1187
      %1254 = vmatpush.msra.mxu0 %v1186
      %1255 = vmatpush.msra.mxu0 %v1185
      %1256 = vmatpush.msra.mxu0 %v1184
      %1257 = vmatpush.msra.mxu0 %v1183
      %1258 = vmatpush.msra.mxu0 %v1182
      %1259 = vmatpush.msra.mxu0 %v1181
      %1260 = vmatpush.msra.mxu0 %v1180
      %1261 = vmatpush.msra.mxu0 %v1179
      %1262 = vmatpush.msra.mxu0 %v1178
      %1263 = vmatpush.msra.mxu0 %v1177
      %1264 = vmatpush.msra.mxu0 %v1176
      %1265 = vmatpush.msra.mxu0 %v1175
      %1266 = vmatmul.f32.gmra.mxu0 %v1170
      %v1267 = vpop.f32.mrf.mxu0
      %v1268 = vadd.f32 0.0, %v1267
      %1269 = vdwg.mxu0
      %1270 = vmatpush.msra.mxu0 %v1206
      %1271 = vmatpush.msra.mxu0 %v1205
      %1272 = vmatpush.msra.mxu0 %v1204
      %1273 = vmatpush.msra.mxu0 %v1203
      %1274 = vmatpush.msra.mxu0 %v1202
      %1275 = vmatpush.msra.mxu0 %v1201
      %1276 = vmatpush.msra.mxu0 %v1200
      %1277 = vmatpush.msra.mxu0 %v1199
      %1278 = vmatpush.msra.mxu0 %v1198
      %1279 = vmatpush.msra.mxu0 %v1197
      %1280 = vmatpush.msra.mxu0 %v1196
      %1281 = vmatpush.msra.mxu0 %v1195
      %1282 = vmatpush.msra.mxu0 %v1194
      %1283 = vmatpush.msra.mxu0 %v1193
      %1284 = vmatpush.msra.mxu0 %v1192
      %1285 = vmatpush.msra.mxu0 %v1191
      %1286 = vmatmul.f32.gmra.mxu0 %v1171
      %v1287 = vpop.f32.mrf.mxu0
      %v1288 = vadd.f32 %v1268, %v1287
      %1289 = vdwg.mxu0
      %1290 = vmatpush.msra.mxu0 %v1222
      %1291 = vmatpush.msra.mxu0 %v1221
      %1292 = vmatpush.msra.mxu0 %v1220
      %1293 = vmatpush.msra.mxu0 %v1219
      %1294 = vmatpush.msra.mxu0 %v1218
      %1295 = vmatpush.msra.mxu0 %v1217
      %1296 = vmatpush.msra.mxu0 %v1216
      %1297 = vmatpush.msra.mxu0 %v1215
      %1298 = vmatpush.msra.mxu0 %v1214
      %1299 = vmatpush.msra.mxu0 %v1213
      %1300 = vmatpush.msra.mxu0 %v1212
      %1301 = vmatpush.msra.mxu0 %v1211
      %1302 = vmatpush.msra.mxu0 %v1210
      %1303 = vmatpush.msra.mxu0 %v1209
      %1304 = vmatpush.msra.mxu0 %v1208
      %1305 = vmatpush.msra.mxu0 %v1207
      %1306 = vmatmul.f32.gmra.mxu0 %v1172
      %v1307 = vpop.f32.mrf.mxu0
      %v1308 = vadd.f32 %v1288, %v1307
      %1309 = vdwg.mxu0
      %1310 = vmatpush.msra.mxu0 %v1238
      %1311 = vmatpush.msra.mxu0 %v1237
      %1312 = vmatpush.msra.mxu0 %v1236
      %1313 = vmatpush.msra.mxu0 %v1235
      %1314 = vmatpush.msra.mxu0 %v1234
      %1315 = vmatpush.msra.mxu0 %v1233
      %1316 = vmatpush.msra.mxu0 %v1232
      %1317 = vmatpush.msra.mxu0 %v1231
      %1318 = vmatpush.msra.mxu0 %v1230
      %1319 = vmatpush.msra.mxu0 %v1229
      %1320 = vmatpush.msra.mxu0 %v1228
      %1321 = vmatpush.msra.mxu0 %v1227
      %1322 = vmatpush.msra.mxu0 %v1226
      %1323 = vmatpush.msra.mxu0 %v1225
      %1324 = vmatpush.msra.mxu0 %v1224
      %1325 = vmatpush.msra.mxu0 %v1223
      %1326 = vmatmul.f32.gmra.mxu0 %v1173
      %v1327 = vpop.f32.mrf.mxu0
      %v1328 = vadd.f32 %v1308, %v1327
      %1329 = vdwg.mxu0
      %1330 = vmatpush.msra.mxu0 0.0
      %1331 = vmatpush.msra.mxu0 0.0
      %1332 = vmatpush.msra.mxu0 0.0
      %1333 = vmatpush.msra.mxu0 0.0
      %1334 = vmatpush.msra.mxu0 0.0
      %1335 = vmatpush.msra.mxu0 0.0
      %1336 = vmatpush.msra.mxu0 0.0
      %1337 = vmatpush.msra.mxu0 0.0
      %1338 = vmatpush.msra.mxu0 %v1246
      %1339 = vmatpush.msra.mxu0 %v1245
      %1340 = vmatpush.msra.mxu0 %v1244
      %1341 = vmatpush.msra.mxu0 %v1243
      %1342 = vmatpush.msra.mxu0 %v1242
      %1343 = vmatpush.msra.mxu0 %v1241
      %1344 = vmatpush.msra.mxu0 %v1240
      %1345 = vmatpush.msra.mxu0 %v1239
      %1346 = vmatmul.f32.gmra.mxu0 %v1248
      %v1347 = vpop.f32.mrf.mxu0
      %v1348 = vadd.f32 %v1328, %v1347
      %1349 = vdwg.mxu0
      %v1350 = vmul.f32 %v1348, %v1348
      %v1352 = vrot.slane %v1350, 7
      %v1354 = vsub.f32 %v1348, %v1352
      %v1355 = vmax.f32 %v1354, 0.0
      %v1356 = vld [vmem:[%s5] sm:$0x1]
      %v1357 = vadd.f32 %v1355, 1e-05
      %v1358 = vrsqrt.pop %v1357
      %v1359 = vmul.f32 %v1358, %v1357
      %v1360 = vmul.f32 %v1359, %v1358
      %v1361 = vmul.f32 0.5, %v1360
      %v1362 = vsub.f32 1.5, %v1361
      %v1363 = vmul.f32 %v1358, %v1362
      %vm1364 = vweird.f32 %v1357
      %vm1365 = vweird.f32 %v1358
      %vm1366 = vmor %vm1364, %vm1365
      %v1367 = vsel %vm1366, %v1358, %v1363
      %v1369 = vrot.slane %v1367, 1
      %v1371 = vmul.f32 %v1356, %v1369
      %v1372 = vld [vmem:[%s5 + $0x1] sm:$0x1]
      %v1373 = vmul.f32 %v1348, %v1371
      %v1374 = vsub.f32 %v1372, %v1373
      %v1376 = vrot.slane %v1374, 7
      %v1378 = vsel %vm1169, %v1371, %v1376
      %v1379 = vld [vmem:[%s4] sm:$0xff]
      %v1380 = vld [vmem:[%s4 + $0x8] sm:$0xff]
      %v1381 = vld [vmem:[%s4 + $0x10] sm:$0xff]
      %v1382 = vld [vmem:[%s4 + $0x18] sm:$0xff]
      %v1383 = vld [vmem:[%s4 + $0x20] sm:$0xff]
      %v1384 = vld [vmem:[%s4 + $0x28] sm:$0xff]
      %v1385 = vld [vmem:[%s4 + $0x30] sm:$0xff]
      %v1386 = vld [vmem:[%s4 + $0x38] sm:$0xff]
      %v1387 = vld [vmem:[%s4 + $0x40] sm:$0xff]
      %v1388 = vld [vmem:[%s4 + $0x48] sm:$0xff]
      %v1389 = vld [vmem:[%s4 + $0x50] sm:$0xff]
      %v1390 = vld [vmem:[%s4 + $0x58] sm:$0xff]
      %v1391 = vld [vmem:[%s4 + $0x60] sm:$0xff]
      %v1392 = vld [vmem:[%s4 + $0x68] sm:$0xff]
      %v1393 = vld [vmem:[%s4 + $0x70] sm:$0xff]
      %v1394 = vld [vmem:[%s4 + $0x78] sm:$0xff]
      %v1395 = vld [vmem:[%s4 + $0x80] sm:$0xff]
      %v1396 = vld [vmem:[%s4 + $0x88] sm:$0xff]
      %v1397 = vld [vmem:[%s4 + $0x90] sm:$0xff]
      %v1398 = vld [vmem:[%s4 + $0x98] sm:$0xff]
      %vm1399 = vcmask 261120
      %v1401 = vsel %vm1399, %v1378, 0
      %1403 = vmatpush.msra.mxu0 0.0
      %1404 = vmatpush.msra.mxu0 0.0
      %1405 = vmatpush.msra.mxu0 0.0
      %1406 = vmatpush.msra.mxu0 0.0
      %1407 = vmatpush.msra.mxu0 0.0
      %1408 = vmatpush.msra.mxu0 0.0
      %1409 = vmatpush.msra.mxu0 0.0
      %1410 = vmatpush.msra.mxu0 0.0
      %1411 = vmatpush.msra.mxu0 0.0
      %1412 = vmatpush.msra.mxu0 0.0
      %1413 = vmatpush.msra.mxu0 0.0
      %1414 = vmatpush.msra.mxu0 0.0
      %1415 = vmatpush.msra.mxu0 %v1394
      %1416 = vmatpush.msra.mxu0 %v1389
      %1417 = vmatpush.msra.mxu0 %v1384
      %1418 = vmatpush.msra.mxu0 %v1379
      %1419 = vmatmul.f32.gmra.mxu0 %v1401
      %v1420 = vpop.f32.mrf.mxu0
      %v1421 = vadd.f32 0.0, %v1420
      %1422 = vdwg.mxu0
      %1423 = vmatpush.msra.mxu0 0.0
      %1424 = vmatpush.msra.mxu0 0.0
      %1425 = vmatpush.msra.mxu0 0.0
      %1426 = vmatpush.msra.mxu0 0.0
      %1427 = vmatpush.msra.mxu0 0.0
      %1428 = vmatpush.msra.mxu0 0.0
      %1429 = vmatpush.msra.mxu0 0.0
      %1430 = vmatpush.msra.mxu0 0.0
      %1431 = vmatpush.msra.mxu0 0.0
      %1432 = vmatpush.msra.mxu0 0.0
      %1433 = vmatpush.msra.mxu0 0.0
      %1434 = vmatpush.msra.mxu0 0.0
      %1435 = vmatpush.msra.mxu0 %v1395
      %1436 = vmatpush.msra.mxu0 %v1390
      %1437 = vmatpush.msra.mxu0 %v1385
      %1438 = vmatpush.msra.mxu0 %v1380
      %1439 = vmatmul.f32.gmra.mxu0 %v1401
      %v1440 = vpop.f32.mrf.mxu0
      %v1441 = vadd.f32 0.0, %v1440
      %1442 = vdwg.mxu0
      %1443 = vmatpush.msra.mxu0 0.0
      %1444 = vmatpush.msra.mxu0 0.0
      %1445 = vmatpush.msra.mxu0 0.0
      %1446 = vmatpush.msra.mxu0 0.0
      %1447 = vmatpush.msra.mxu0 0.0
      %1448 = vmatpush.msra.mxu0 0.0
      %1449 = vmatpush.msra.mxu0 0.0
      %1450 = vmatpush.msra.mxu0 0.0
      %1451 = vmatpush.msra.mxu0 0.0
      %1452 = vmatpush.msra.mxu0 0.0
      %1453 = vmatpush.msra.mxu0 0.0
      %1454 = vmatpush.msra.mxu0 0.0
      %1455 = vmatpush.msra.mxu0 %v1396
      %1456 = vmatpush.msra.mxu0 %v1391
      %1457 = vmatpush.msra.mxu0 %v1386
      %1458 = vmatpush.msra.mxu0 %v1381
      %1459 = vmatmul.f32.gmra.mxu0 %v1401
      %v1460 = vpop.f32.mrf.mxu0
      %v1461 = vadd.f32 0.0, %v1460
      %1462 = vdwg.mxu0
      %1463 = vmatpush.msra.mxu0 0.0
      %1464 = vmatpush.msra.mxu0 0.0
      %1465 = vmatpush.msra.mxu0 0.0
      %1466 = vmatpush.msra.mxu0 0.0
      %1467 = vmatpush.msra.mxu0 0.0
      %1468 = vmatpush.msra.mxu0 0.0
      %1469 = vmatpush.msra.mxu0 0.0
      %1470 = vmatpush.msra.mxu0 0.0
      %1471 = vmatpush.msra.mxu0 0.0
      %1472 = vmatpush.msra.mxu0 0.0
      %1473 = vmatpush.msra.mxu0 0.0
      %1474 = vmatpush.msra.mxu0 0.0
      %1475 = vmatpush.msra.mxu0 %v1397
      %1476 = vmatpush.msra.mxu0 %v1392
      %1477 = vmatpush.msra.mxu0 %v1387
      %1478 = vmatpush.msra.mxu0 %v1382
      %1479 = vmatmul.f32.gmra.mxu0 %v1401
      %v1480 = vpop.f32.mrf.mxu0
      %v1481 = vadd.f32 0.0, %v1480
      %1482 = vdwg.mxu0
      %1483 = vmatpush.msra.mxu0 0.0
      %1484 = vmatpush.msra.mxu0 0.0
      %1485 = vmatpush.msra.mxu0 0.0
      %1486 = vmatpush.msra.mxu0 0.0
      %1487 = vmatpush.msra.mxu0 0.0
      %1488 = vmatpush.msra.mxu0 0.0
      %1489 = vmatpush.msra.mxu0 0.0
      %1490 = vmatpush.msra.mxu0 0.0
      %1491 = vmatpush.msra.mxu0 0.0
      %1492 = vmatpush.msra.mxu0 0.0
      %1493 = vmatpush.msra.mxu0 0.0
      %1494 = vmatpush.msra.mxu0 0.0
      %1495 = vmatpush.msra.mxu0 %v1398
      %1496 = vmatpush.msra.mxu0 %v1393
      %1497 = vmatpush.msra.mxu0 %v1388
      %1498 = vmatpush.msra.mxu0 %v1383
      %1499 = vmatmul.f32.gmra.mxu0 %v1401
      %v1500 = vpop.f32.mrf.mxu0
      %v1501 = vadd.f32 0.0, %v1500
      %1502 = vdwg.mxu0
      %v1503 = vperm.slane %v1421, 0
      %v1504 = vperm.slane %v1441, 0
      %v1505 = vperm.slane %v1461, 0
      %v1506 = vperm.slane %v1481, 0
      %v1507 = vperm.slane %v1501, 0
      %v1508 = vmul.f32 %v889, %v1503
      %v1509 = vmul.f32 %v890, %v1504
      %v1510 = vmul.f32 %v891, %v1505
      %v1511 = vmul.f32 %v892, %v1506
      %v1512 = vmul.f32 %v893, %v1507
      %v1513 = vmul.f32 %v894, %v1503
      %v1514 = vmul.f32 %v895, %v1504
      %v1515 = vmul.f32 %v896, %v1505
      %v1516 = vmul.f32 %v897, %v1506
      %v1517 = vmul.f32 %v898, %v1507
      %v1518 = vmul.f32 %v899, %v1503
      %v1519 = vmul.f32 %v900, %v1504
      %v1520 = vmul.f32 %v901, %v1505
      %v1521 = vmul.f32 %v902, %v1506
      %v1522 = vmul.f32 %v903, %v1507
      %v1523 = vperm.slane %v1421, 1
      %v1524 = vperm.slane %v1441, 1
      %v1525 = vperm.slane %v1461, 1
      %v1526 = vperm.slane %v1481, 1
      %v1527 = vperm.slane %v1501, 1
      %v1528 = vadd.f32 %v1508, %v1523
      %v1529 = vadd.f32 %v1509, %v1524
      %v1530 = vadd.f32 %v1510, %v1525
      %v1531 = vadd.f32 %v1511, %v1526
      %v1532 = vadd.f32 %v1512, %v1527
      %v1533 = vadd.f32 %v1513, %v1523
      %v1534 = vadd.f32 %v1514, %v1524
      %v1535 = vadd.f32 %v1515, %v1525
      %v1536 = vadd.f32 %v1516, %v1526
      %v1537 = vadd.f32 %v1517, %v1527
      %v1538 = vadd.f32 %v1518, %v1523
      %v1539 = vadd.f32 %v1519, %v1524
      %v1540 = vadd.f32 %v1520, %v1525
      %v1541 = vadd.f32 %v1521, %v1526
      %v1542 = vadd.f32 %v1522, %v1527
      %v1543 = vld [vmem:[%s6] sm:$0xff]
      %v1545 = vsel %vm904, %v1543, 0
      %v1548 = vsel %vm908, %v1538, 0
      %v1551 = vsel %vm908, %v1539, 0
      %v1554 = vsel %vm908, %v1540, 0
      %v1557 = vsel %vm908, %v1541, 0
      %v1560 = vsel %vm908, %v1542, 0
      %1562 = vmatpush.msra.mxu0 0.0
      %1563 = vmatpush.msra.mxu0 0.0
      %1564 = vmatpush.msra.mxu0 0.0
      %1565 = vmatpush.msra.mxu0 0.0
      %1566 = vmatpush.msra.mxu0 0.0
      %1567 = vmatpush.msra.mxu0 0.0
      %1568 = vmatpush.msra.mxu0 0.0
      %1569 = vmatpush.msra.mxu0 0.0
      %1570 = vmatpush.msra.mxu0 0.0
      %1571 = vmatpush.msra.mxu0 0.0
      %1572 = vmatpush.msra.mxu0 0.0
      %1573 = vmatpush.msra.mxu0 0.0
      %1574 = vmatpush.msra.mxu0 0.0
      %1575 = vmatpush.msra.mxu0 %v1548
      %1576 = vmatpush.msra.mxu0 %v1533
      %1577 = vmatpush.msra.mxu0 %v1528
      %1578 = vmatmul.f32.gmra.mxu0 %v1545
      %v1579 = vpop.f32.mrf.mxu0
      %v1580 = vadd.f32 0.0, %v1579
      %1581 = vdwg.mxu0
      %1582 = vmatpush.msra.mxu0 0.0
      %1583 = vmatpush.msra.mxu0 0.0
      %1584 = vmatpush.msra.mxu0 0.0
      %1585 = vmatpush.msra.mxu0 0.0
      %1586 = vmatpush.msra.mxu0 0.0
      %1587 = vmatpush.msra.mxu0 0.0
      %1588 = vmatpush.msra.mxu0 0.0
      %1589 = vmatpush.msra.mxu0 0.0
      %1590 = vmatpush.msra.mxu0 0.0
      %1591 = vmatpush.msra.mxu0 0.0
      %1592 = vmatpush.msra.mxu0 0.0
      %1593 = vmatpush.msra.mxu0 0.0
      %1594 = vmatpush.msra.mxu0 0.0
      %1595 = vmatpush.msra.mxu0 %v1551
      %1596 = vmatpush.msra.mxu0 %v1534
      %1597 = vmatpush.msra.mxu0 %v1529
      %1598 = vmatmul.f32.gmra.mxu0 %v1545
      %v1599 = vpop.f32.mrf.mxu0
      %v1600 = vadd.f32 0.0, %v1599
      %1601 = vdwg.mxu0
      %1602 = vmatpush.msra.mxu0 0.0
      %1603 = vmatpush.msra.mxu0 0.0
      %1604 = vmatpush.msra.mxu0 0.0
      %1605 = vmatpush.msra.mxu0 0.0
      %1606 = vmatpush.msra.mxu0 0.0
      %1607 = vmatpush.msra.mxu0 0.0
      %1608 = vmatpush.msra.mxu0 0.0
      %1609 = vmatpush.msra.mxu0 0.0
      %1610 = vmatpush.msra.mxu0 0.0
      %1611 = vmatpush.msra.mxu0 0.0
      %1612 = vmatpush.msra.mxu0 0.0
      %1613 = vmatpush.msra.mxu0 0.0
      %1614 = vmatpush.msra.mxu0 0.0
      %1615 = vmatpush.msra.mxu0 %v1554
      %1616 = vmatpush.msra.mxu0 %v1535
      %1617 = vmatpush.msra.mxu0 %v1530
      %1618 = vmatmul.f32.gmra.mxu0 %v1545
      %v1619 = vpop.f32.mrf.mxu0
      %v1620 = vadd.f32 0.0, %v1619
      %1621 = vdwg.mxu0
      %1622 = vmatpush.msra.mxu0 0.0
      %1623 = vmatpush.msra.mxu0 0.0
      %1624 = vmatpush.msra.mxu0 0.0
      %1625 = vmatpush.msra.mxu0 0.0
      %1626 = vmatpush.msra.mxu0 0.0
      %1627 = vmatpush.msra.mxu0 0.0
      %1628 = vmatpush.msra.mxu0 0.0
      %1629 = vmatpush.msra.mxu0 0.0
      %1630 = vmatpush.msra.mxu0 0.0
      %1631 = vmatpush.msra.mxu0 0.0
      %1632 = vmatpush.msra.mxu0 0.0
      %1633 = vmatpush.msra.mxu0 0.0
      %1634 = vmatpush.msra.mxu0 0.0
      %1635 = vmatpush.msra.mxu0 %v1557
      %1636 = vmatpush.msra.mxu0 %v1536
      %1637 = vmatpush.msra.mxu0 %v1531
      %1638 = vmatmul.f32.gmra.mxu0 %v1545
      %v1639 = vpop.f32.mrf.mxu0
      %v1640 = vadd.f32 0.0, %v1639
      %1641 = vdwg.mxu0
      %1642 = vmatpush.msra.mxu0 0.0
      %1643 = vmatpush.msra.mxu0 0.0
      %1644 = vmatpush.msra.mxu0 0.0
      %1645 = vmatpush.msra.mxu0 0.0
      %1646 = vmatpush.msra.mxu0 0.0
      %1647 = vmatpush.msra.mxu0 0.0
      %1648 = vmatpush.msra.mxu0 0.0
      %1649 = vmatpush.msra.mxu0 0.0
      %1650 = vmatpush.msra.mxu0 0.0
      %1651 = vmatpush.msra.mxu0 0.0
      %1652 = vmatpush.msra.mxu0 0.0
      %1653 = vmatpush.msra.mxu0 0.0
      %1654 = vmatpush.msra.mxu0 0.0
      %1655 = vmatpush.msra.mxu0 %v1560
      %1656 = vmatpush.msra.mxu0 %v1537
      %1657 = vmatpush.msra.mxu0 %v1532
      %1658 = vmatmul.f32.gmra.mxu0 %v1545
      %v1659 = vpop.f32.mrf.mxu0
      %v1660 = vadd.f32 0.0, %v1659
      %1661 = vdwg.mxu0
      %s1662 = scalar_lea.vmem %s6, 8
      %v1663 = vld [vmem:[%s1662] sm:$0xff]
      %v1665 = vsel %vm904, %v1663, 0
      %1667 = vmatpush.msra.mxu0 0.0
      %1668 = vmatpush.msra.mxu0 0.0
      %1669 = vmatpush.msra.mxu0 0.0
      %1670 = vmatpush.msra.mxu0 0.0
      %1671 = vmatpush.msra.mxu0 0.0
      %1672 = vmatpush.msra.mxu0 0.0
      %1673 = vmatpush.msra.mxu0 0.0
      %1674 = vmatpush.msra.mxu0 0.0
      %1675 = vmatpush.msra.mxu0 0.0
      %1676 = vmatpush.msra.mxu0 0.0
      %1677 = vmatpush.msra.mxu0 0.0
      %1678 = vmatpush.msra.mxu0 0.0
      %1679 = vmatpush.msra.mxu0 0.0
      %1680 = vmatpush.msra.mxu0 %v1548
      %1681 = vmatpush.msra.mxu0 %v1533
      %1682 = vmatpush.msra.mxu0 %v1528
      %1683 = vmatmul.f32.gmra.mxu0 %v1665
      %v1684 = vpop.f32.mrf.mxu0
      %v1685 = vadd.f32 0.0, %v1684
      %1686 = vdwg.mxu0
      %1687 = vmatpush.msra.mxu0 0.0
      %1688 = vmatpush.msra.mxu0 0.0
      %1689 = vmatpush.msra.mxu0 0.0
      %1690 = vmatpush.msra.mxu0 0.0
      %1691 = vmatpush.msra.mxu0 0.0
      %1692 = vmatpush.msra.mxu0 0.0
      %1693 = vmatpush.msra.mxu0 0.0
      %1694 = vmatpush.msra.mxu0 0.0
      %1695 = vmatpush.msra.mxu0 0.0
      %1696 = vmatpush.msra.mxu0 0.0
      %1697 = vmatpush.msra.mxu0 0.0
      %1698 = vmatpush.msra.mxu0 0.0
      %1699 = vmatpush.msra.mxu0 0.0
      %1700 = vmatpush.msra.mxu0 %v1551
      %1701 = vmatpush.msra.mxu0 %v1534
      %1702 = vmatpush.msra.mxu0 %v1529
      %1703 = vmatmul.f32.gmra.mxu0 %v1665
      %v1704 = vpop.f32.mrf.mxu0
      %v1705 = vadd.f32 0.0, %v1704
      %1706 = vdwg.mxu0
      %1707 = vmatpush.msra.mxu0 0.0
      %1708 = vmatpush.msra.mxu0 0.0
      %1709 = vmatpush.msra.mxu0 0.0
      %1710 = vmatpush.msra.mxu0 0.0
      %1711 = vmatpush.msra.mxu0 0.0
      %1712 = vmatpush.msra.mxu0 0.0
      %1713 = vmatpush.msra.mxu0 0.0
      %1714 = vmatpush.msra.mxu0 0.0
      %1715 = vmatpush.msra.mxu0 0.0
      %1716 = vmatpush.msra.mxu0 0.0
      %1717 = vmatpush.msra.mxu0 0.0
      %1718 = vmatpush.msra.mxu0 0.0
      %1719 = vmatpush.msra.mxu0 0.0
      %1720 = vmatpush.msra.mxu0 %v1554
      %1721 = vmatpush.msra.mxu0 %v1535
      %1722 = vmatpush.msra.mxu0 %v1530
      %1723 = vmatmul.f32.gmra.mxu0 %v1665
      %v1724 = vpop.f32.mrf.mxu0
      %v1725 = vadd.f32 0.0, %v1724
      %1726 = vdwg.mxu0
      %1727 = vmatpush.msra.mxu0 0.0
      %1728 = vmatpush.msra.mxu0 0.0
      %1729 = vmatpush.msra.mxu0 0.0
      %1730 = vmatpush.msra.mxu0 0.0
      %1731 = vmatpush.msra.mxu0 0.0
      %1732 = vmatpush.msra.mxu0 0.0
      %1733 = vmatpush.msra.mxu0 0.0
      %1734 = vmatpush.msra.mxu0 0.0
      %1735 = vmatpush.msra.mxu0 0.0
      %1736 = vmatpush.msra.mxu0 0.0
      %1737 = vmatpush.msra.mxu0 0.0
      %1738 = vmatpush.msra.mxu0 0.0
      %1739 = vmatpush.msra.mxu0 0.0
      %1740 = vmatpush.msra.mxu0 %v1557
      %1741 = vmatpush.msra.mxu0 %v1536
      %1742 = vmatpush.msra.mxu0 %v1531
      %1743 = vmatmul.f32.gmra.mxu0 %v1665
      %v1744 = vpop.f32.mrf.mxu0
      %v1745 = vadd.f32 0.0, %v1744
      %1746 = vdwg.mxu0
      %1747 = vmatpush.msra.mxu0 0.0
      %1748 = vmatpush.msra.mxu0 0.0
      %1749 = vmatpush.msra.mxu0 0.0
      %1750 = vmatpush.msra.mxu0 0.0
      %1751 = vmatpush.msra.mxu0 0.0
      %1752 = vmatpush.msra.mxu0 0.0
      %1753 = vmatpush.msra.mxu0 0.0
      %1754 = vmatpush.msra.mxu0 0.0
      %1755 = vmatpush.msra.mxu0 0.0
      %1756 = vmatpush.msra.mxu0 0.0
      %1757 = vmatpush.msra.mxu0 0.0
      %1758 = vmatpush.msra.mxu0 0.0
      %1759 = vmatpush.msra.mxu0 0.0
      %1760 = vmatpush.msra.mxu0 %v1560
      %1761 = vmatpush.msra.mxu0 %v1537
      %1762 = vmatpush.msra.mxu0 %v1532
      %1763 = vmatmul.f32.gmra.mxu0 %v1665
      %v1764 = vpop.f32.mrf.mxu0
      %v1765 = vadd.f32 0.0, %v1764
      %1766 = vdwg.mxu0
      %v1767 = vmax.f32 %v1580, %v1685
      %v1768 = vmax.f32 %v1600, %v1705
      %v1769 = vmax.f32 %v1620, %v1725
      %v1770 = vmax.f32 %v1640, %v1745
      %v1771 = vmax.f32 %v1660, %v1765
      %s1772 = scalar_lea.vmem %s6, 16
      %v1773 = vld [vmem:[%s1772] sm:$0xff]
      %v1775 = vsel %vm904, %v1773, 0
      %1777 = vmatpush.msra.mxu0 0.0
      %1778 = vmatpush.msra.mxu0 0.0
      %1779 = vmatpush.msra.mxu0 0.0
      %1780 = vmatpush.msra.mxu0 0.0
      %1781 = vmatpush.msra.mxu0 0.0
      %1782 = vmatpush.msra.mxu0 0.0
      %1783 = vmatpush.msra.mxu0 0.0
      %1784 = vmatpush.msra.mxu0 0.0
      %1785 = vmatpush.msra.mxu0 0.0
      %1786 = vmatpush.msra.mxu0 0.0
      %1787 = vmatpush.msra.mxu0 0.0
      %1788 = vmatpush.msra.mxu0 0.0
      %1789 = vmatpush.msra.mxu0 0.0
      %1790 = vmatpush.msra.mxu0 %v1548
      %1791 = vmatpush.msra.mxu0 %v1533
      %1792 = vmatpush.msra.mxu0 %v1528
      %1793 = vmatmul.f32.gmra.mxu0 %v1775
      %v1794 = vpop.f32.mrf.mxu0
      %v1795 = vadd.f32 0.0, %v1794
      %1796 = vdwg.mxu0
      %1797 = vmatpush.msra.mxu0 0.0
      %1798 = vmatpush.msra.mxu0 0.0
      %1799 = vmatpush.msra.mxu0 0.0
      %1800 = vmatpush.msra.mxu0 0.0
      %1801 = vmatpush.msra.mxu0 0.0
      %1802 = vmatpush.msra.mxu0 0.0
      %1803 = vmatpush.msra.mxu0 0.0
      %1804 = vmatpush.msra.mxu0 0.0
      %1805 = vmatpush.msra.mxu0 0.0
      %1806 = vmatpush.msra.mxu0 0.0
      %1807 = vmatpush.msra.mxu0 0.0
      %1808 = vmatpush.msra.mxu0 0.0
      %1809 = vmatpush.msra.mxu0 0.0
      %1810 = vmatpush.msra.mxu0 %v1551
      %1811 = vmatpush.msra.mxu0 %v1534
      %1812 = vmatpush.msra.mxu0 %v1529
      %1813 = vmatmul.f32.gmra.mxu0 %v1775
      %v1814 = vpop.f32.mrf.mxu0
      %v1815 = vadd.f32 0.0, %v1814
      %1816 = vdwg.mxu0
      %1817 = vmatpush.msra.mxu0 0.0
      %1818 = vmatpush.msra.mxu0 0.0
      %1819 = vmatpush.msra.mxu0 0.0
      %1820 = vmatpush.msra.mxu0 0.0
      %1821 = vmatpush.msra.mxu0 0.0
      %1822 = vmatpush.msra.mxu0 0.0
      %1823 = vmatpush.msra.mxu0 0.0
      %1824 = vmatpush.msra.mxu0 0.0
      %1825 = vmatpush.msra.mxu0 0.0
      %1826 = vmatpush.msra.mxu0 0.0
      %1827 = vmatpush.msra.mxu0 0.0
      %1828 = vmatpush.msra.mxu0 0.0
      %1829 = vmatpush.msra.mxu0 0.0
      %1830 = vmatpush.msra.mxu0 %v1554
      %1831 = vmatpush.msra.mxu0 %v1535
      %1832 = vmatpush.msra.mxu0 %v1530
      %1833 = vmatmul.f32.gmra.mxu0 %v1775
      %v1834 = vpop.f32.mrf.mxu0
      %v1835 = vadd.f32 0.0, %v1834
      %1836 = vdwg.mxu0
      %1837 = vmatpush.msra.mxu0 0.0
      %1838 = vmatpush.msra.mxu0 0.0
      %1839 = vmatpush.msra.mxu0 0.0
      %1840 = vmatpush.msra.mxu0 0.0
      %1841 = vmatpush.msra.mxu0 0.0
      %1842 = vmatpush.msra.mxu0 0.0
      %1843 = vmatpush.msra.mxu0 0.0
      %1844 = vmatpush.msra.mxu0 0.0
      %1845 = vmatpush.msra.mxu0 0.0
      %1846 = vmatpush.msra.mxu0 0.0
      %1847 = vmatpush.msra.mxu0 0.0
      %1848 = vmatpush.msra.mxu0 0.0
      %1849 = vmatpush.msra.mxu0 0.0
      %1850 = vmatpush.msra.mxu0 %v1557
      %1851 = vmatpush.msra.mxu0 %v1536
      %1852 = vmatpush.msra.mxu0 %v1531
      %1853 = vmatmul.f32.gmra.mxu0 %v1775
      %v1854 = vpop.f32.mrf.mxu0
      %v1855 = vadd.f32 0.0, %v1854
      %1856 = vdwg.mxu0
      %1857 = vmatpush.msra.mxu0 0.0
      %1858 = vmatpush.msra.mxu0 0.0
      %1859 = vmatpush.msra.mxu0 0.0
      %1860 = vmatpush.msra.mxu0 0.0
      %1861 = vmatpush.msra.mxu0 0.0
      %1862 = vmatpush.msra.mxu0 0.0
      %1863 = vmatpush.msra.mxu0 0.0
      %1864 = vmatpush.msra.mxu0 0.0
      %1865 = vmatpush.msra.mxu0 0.0
      %1866 = vmatpush.msra.mxu0 0.0
      %1867 = vmatpush.msra.mxu0 0.0
      %1868 = vmatpush.msra.mxu0 0.0
      %1869 = vmatpush.msra.mxu0 0.0
      %1870 = vmatpush.msra.mxu0 %v1560
      %1871 = vmatpush.msra.mxu0 %v1537
      %1872 = vmatpush.msra.mxu0 %v1532
      %1873 = vmatmul.f32.gmra.mxu0 %v1775
      %v1874 = vpop.f32.mrf.mxu0
      %v1875 = vadd.f32 0.0, %v1874
      %1876 = vdwg.mxu0
      %v1877 = vmax.f32 %v1767, %v1795
      %v1878 = vmax.f32 %v1768, %v1815
      %v1879 = vmax.f32 %v1769, %v1835
      %v1880 = vmax.f32 %v1770, %v1855
      %v1881 = vmax.f32 %v1771, %v1875
      %v1882 = vld [vmem:[%s7] sm:$0xff]
      %v1883 = vld [vmem:[%s7 + $0x8] sm:$0xff]
      %v1884 = vld [vmem:[%s7 + $0x10] sm:$0xff]
      %v1885 = vld [vmem:[%s7 + $0x18] sm:$0xff]
      %v1886 = vld [vmem:[%s7 + $0x20] sm:$0xff]
      %v1887 = vld [vmem:[%s7 + $0x28] sm:$0xff]
      %v1888 = vld [vmem:[%s7 + $0x30] sm:$0xff]
      %v1889 = vld [vmem:[%s7 + $0x38] sm:$0xff]
      %v1890 = vld [vmem:[%s7 + $0x40] sm:$0xff]
      %v1891 = vld [vmem:[%s7 + $0x48] sm:$0xff]
      %v1892 = vld [vmem:[%s7 + $0x50] sm:$0xff]
      %v1893 = vld [vmem:[%s7 + $0x58] sm:$0xff]
      %v1894 = vld [vmem:[%s7 + $0x60] sm:$0xff]
      %v1895 = vld [vmem:[%s7 + $0x68] sm:$0xff]
      %v1896 = vld [vmem:[%s7 + $0x70] sm:$0xff]
      %v1897 = vld [vmem:[%s7 + $0x78] sm:$0xff]
      %v1898 = vld [vmem:[%s7 + $0x80] sm:$0xff]
      %v1899 = vld [vmem:[%s7 + $0x88] sm:$0xff]
      %v1900 = vld [vmem:[%s7 + $0x90] sm:$0xff]
      %v1901 = vld [vmem:[%s7 + $0x98] sm:$0xff]
      %v1902 = vld [vmem:[%s7 + $0xa0] sm:$0xff]
      %v1903 = vld [vmem:[%s7 + $0xa8] sm:$0xff]
      %v1904 = vld [vmem:[%s7 + $0xb0] sm:$0xff]
      %v1905 = vld [vmem:[%s7 + $0xb8] sm:$0xff]
      %v1906 = vld [vmem:[%s7 + $0xc0] sm:$0xff]
      %v1907 = vld [vmem:[%s7 + $0xc8] sm:$0xff]
      %v1908 = vld [vmem:[%s7 + $0xd0] sm:$0xff]
      %v1909 = vld [vmem:[%s7 + $0xd8] sm:$0xff]
      %v1910 = vld [vmem:[%s7 + $0xe0] sm:$0xff]
      %v1911 = vld [vmem:[%s7 + $0xe8] sm:$0xff]
      %v1912 = vld [vmem:[%s7 + $0xf0] sm:$0xff]
      %v1913 = vld [vmem:[%s7 + $0xf8] sm:$0xff]
      %v1914 = vld [vmem:[%s7 + $0x100] sm:$0xff]
      %v1915 = vld [vmem:[%s7 + $0x108] sm:$0xff]
      %v1916 = vld [vmem:[%s7 + $0x110] sm:$0xff]
      %v1917 = vld [vmem:[%s7 + $0x118] sm:$0xff]
      %v1918 = vld [vmem:[%s7 + $0x120] sm:$0xff]
      %v1919 = vld [vmem:[%s7 + $0x128] sm:$0xff]
      %v1920 = vld [vmem:[%s7 + $0x130] sm:$0xff]
      %v1921 = vld [vmem:[%s7 + $0x138] sm:$0xff]
      %v1922 = vld [vmem:[%s7 + $0x140] sm:$0xff]
      %v1923 = vld [vmem:[%s7 + $0x148] sm:$0xff]
      %v1924 = vld [vmem:[%s7 + $0x150] sm:$0xff]
      %v1925 = vld [vmem:[%s7 + $0x158] sm:$0xff]
      %v1926 = vld [vmem:[%s7 + $0x160] sm:$0xff]
      %v1927 = vld [vmem:[%s7 + $0x168] sm:$0xff]
      %v1928 = vld [vmem:[%s7 + $0x170] sm:$0xff]
      %v1929 = vld [vmem:[%s7 + $0x178] sm:$0xff]
      %v1930 = vld [vmem:[%s7 + $0x180] sm:$0xff]
      %v1931 = vld [vmem:[%s7 + $0x188] sm:$0xff]
      %v1932 = vld [vmem:[%s7 + $0x190] sm:$0xff]
      %v1933 = vld [vmem:[%s7 + $0x198] sm:$0xff]
      %v1934 = vld [vmem:[%s7 + $0x1a0] sm:$0xff]
      %v1935 = vld [vmem:[%s7 + $0x1a8] sm:$0xff]
      %v1936 = vld [vmem:[%s7 + $0x1b0] sm:$0xff]
      %v1937 = vld [vmem:[%s7 + $0x1b8] sm:$0xff]
      %v1938 = vld [vmem:[%s7 + $0x1c0] sm:$0xff]
      %v1939 = vld [vmem:[%s7 + $0x1c8] sm:$0xff]
      %v1940 = vld [vmem:[%s7 + $0x1d0] sm:$0xff]
      %v1941 = vld [vmem:[%s7 + $0x1d8] sm:$0xff]
      %v1942 = vld [vmem:[%s7 + $0x1e0] sm:$0xff]
      %v1943 = vld [vmem:[%s7 + $0x1e8] sm:$0xff]
      %v1944 = vld [vmem:[%s7 + $0x1f0] sm:$0xff]
      %v1945 = vld [vmem:[%s7 + $0x1f8] sm:$0xff]
      %v1946 = vld [vmem:[%s7 + $0x200] sm:$0xff]
      %v1947 = vld [vmem:[%s7 + $0x208] sm:$0xff]
      %v1948 = vld [vmem:[%s7 + $0x210] sm:$0xff]
      %v1949 = vld [vmem:[%s7 + $0x218] sm:$0xff]
      %v1950 = vld [vmem:[%s7 + $0x220] sm:$0xff]
      %v1951 = vld [vmem:[%s7 + $0x228] sm:$0xff]
      %v1952 = vld [vmem:[%s7 + $0x230] sm:$0xff]
      %v1953 = vld [vmem:[%s7 + $0x238] sm:$0xff]
      %v1954 = vld [vmem:[%s7 + $0x240] sm:$0xff]
      %v1955 = vld [vmem:[%s7 + $0x248] sm:$0xff]
      %v1956 = vld [vmem:[%s7 + $0x250] sm:$0xff]
      %v1957 = vld [vmem:[%s7 + $0x258] sm:$0xff]
      %v1958 = vld [vmem:[%s7 + $0x260] sm:$0xff]
      %v1959 = vld [vmem:[%s7 + $0x268] sm:$0xff]
      %v1960 = vld [vmem:[%s7 + $0x270] sm:$0xff]
      %v1961 = vld [vmem:[%s7 + $0x278] sm:$0xff]
      %v1962 = vld [vmem:[%s7 + $0x280] sm:$0xff]
      %v1963 = vld [vmem:[%s7 + $0x288] sm:$0xff]
      %v1964 = vld [vmem:[%s7 + $0x290] sm:$0xff]
      %v1965 = vld [vmem:[%s7 + $0x298] sm:$0xff]
      %v1966 = vld [vmem:[%s7 + $0x2a0] sm:$0xff]
      %v1967 = vld [vmem:[%s7 + $0x2a8] sm:$0xff]
      %v1968 = vld [vmem:[%s7 + $0x2b0] sm:$0xff]
      %v1969 = vld [vmem:[%s7 + $0x2b8] sm:$0xff]
      %v1970 = vld [vmem:[%s7 + $0x2c0] sm:$0xff]
      %v1971 = vld [vmem:[%s7 + $0x2c8] sm:$0xff]
      %v1972 = vld [vmem:[%s7 + $0x2d0] sm:$0xff]
      %v1973 = vld [vmem:[%s7 + $0x2d8] sm:$0xff]
      %v1974 = vld [vmem:[%s7 + $0x2e0] sm:$0xff]
      %v1975 = vld [vmem:[%s7 + $0x2e8] sm:$0xff]
      %v1976 = vld [vmem:[%s7 + $0x2f0] sm:$0xff]
      %v1977 = vld [vmem:[%s7 + $0x2f8] sm:$0xff]
      %v1978 = vld [vmem:[%s7 + $0x300] sm:$0xff]
      %v1979 = vld [vmem:[%s7 + $0x308] sm:$0xff]
      %v1980 = vld [vmem:[%s7 + $0x310] sm:$0xff]
      %v1981 = vld [vmem:[%s7 + $0x318] sm:$0xff]
      %v1982 = vld [vmem:[%s7 + $0x320] sm:$0xff]
      %v1983 = vld [vmem:[%s7 + $0x328] sm:$0xff]
      %v1984 = vld [vmem:[%s7 + $0x330] sm:$0xff]
      %v1985 = vld [vmem:[%s7 + $0x338] sm:$0xff]
      %v1986 = vld [vmem:[%s7 + $0x340] sm:$0xff]
      %v1987 = vld [vmem:[%s7 + $0x348] sm:$0xff]
      %v1988 = vld [vmem:[%s7 + $0x350] sm:$0xff]
      %v1989 = vld [vmem:[%s7 + $0x358] sm:$0xff]
      %v1990 = vld [vmem:[%s7 + $0x360] sm:$0xff]
      %v1991 = vld [vmem:[%s7 + $0x368] sm:$0xff]
      %v1992 = vld [vmem:[%s7 + $0x370] sm:$0xff]
      %v1993 = vld [vmem:[%s7 + $0x378] sm:$0xff]
      %v1994 = vld [vmem:[%s7 + $0x380] sm:$0xff]
      %v1995 = vld [vmem:[%s7 + $0x388] sm:$0xff]
      %v1996 = vld [vmem:[%s7 + $0x390] sm:$0xff]
      %v1997 = vld [vmem:[%s7 + $0x398] sm:$0xff]
      %v1998 = vld [vmem:[%s7 + $0x3a0] sm:$0xff]
      %v1999 = vld [vmem:[%s7 + $0x3a8] sm:$0xff]
      %v2000 = vld [vmem:[%s7 + $0x3b0] sm:$0xff]
      %v2001 = vld [vmem:[%s7 + $0x3b8] sm:$0xff]
      %v2002 = vld [vmem:[%s7 + $0x3c0] sm:$0xff]
      %v2003 = vld [vmem:[%s7 + $0x3c8] sm:$0xff]
      %v2004 = vld [vmem:[%s7 + $0x3d0] sm:$0xff]
      %v2005 = vld [vmem:[%s7 + $0x3d8] sm:$0xff]
      %v2006 = vld [vmem:[%s7 + $0x3e0] sm:$0xff]
      %v2007 = vld [vmem:[%s7 + $0x3e8] sm:$0xff]
      %v2008 = vld [vmem:[%s7 + $0x3f0] sm:$0xff]
      %v2009 = vld [vmem:[%s7 + $0x3f8] sm:$0xff]
      %v2010 = vld [vmem:[%s7 + $0x400] sm:$0xff]
      %v2011 = vld [vmem:[%s7 + $0x408] sm:$0xff]
      %v2012 = vld [vmem:[%s7 + $0x410] sm:$0xff]
      %v2013 = vld [vmem:[%s7 + $0x418] sm:$0xff]
      %v2014 = vld [vmem:[%s7 + $0x420] sm:$0xff]
      %v2015 = vld [vmem:[%s7 + $0x428] sm:$0xff]
      %v2016 = vld [vmem:[%s7 + $0x430] sm:$0xff]
      %v2017 = vld [vmem:[%s7 + $0x438] sm:$0xff]
      %v2018 = vld [vmem:[%s7 + $0x440] sm:$0xff]
      %v2019 = vld [vmem:[%s7 + $0x448] sm:$0xff]
      %v2020 = vld [vmem:[%s7 + $0x450] sm:$0xff]
      %v2021 = vld [vmem:[%s7 + $0x458] sm:$0xff]
      %v2022 = vld [vmem:[%s7 + $0x460] sm:$0xff]
      %v2023 = vld [vmem:[%s7 + $0x468] sm:$0xff]
      %v2024 = vld [vmem:[%s7 + $0x470] sm:$0xff]
      %v2025 = vld [vmem:[%s7 + $0x478] sm:$0xff]
      %v2027 = vsel %vm311, %v1881, 0
      %2029 = vmatpush.msra.mxu0 %v1912
      %2030 = vmatpush.msra.mxu0 %v1910
      %2031 = vmatpush.msra.mxu0 %v1908
      %2032 = vmatpush.msra.mxu0 %v1906
      %2033 = vmatpush.msra.mxu0 %v1904
      %2034 = vmatpush.msra.mxu0 %v1902
      %2035 = vmatpush.msra.mxu0 %v1900
      %2036 = vmatpush.msra.mxu0 %v1898
      %2037 = vmatpush.msra.mxu0 %v1896
      %2038 = vmatpush.msra.mxu0 %v1894
      %2039 = vmatpush.msra.mxu0 %v1892
      %2040 = vmatpush.msra.mxu0 %v1890
      %2041 = vmatpush.msra.mxu0 %v1888
      %2042 = vmatpush.msra.mxu0 %v1886
      %2043 = vmatpush.msra.mxu0 %v1884
      %2044 = vmatpush.msra.mxu0 %v1882
      %2045 = vmatmul.f32.gmra.mxu0 %v1877
      %v2046 = vpop.f32.mrf.mxu0
      %v2047 = vadd.f32 0.0, %v2046
      %2048 = vdwg.mxu0
      %2049 = vmatpush.msra.mxu0 %v1944
      %2050 = vmatpush.msra.mxu0 %v1942
      %2051 = vmatpush.msra.mxu0 %v1940
      %2052 = vmatpush.msra.mxu0 %v1938
      %2053 = vmatpush.msra.mxu0 %v1936
      %2054 = vmatpush.msra.mxu0 %v1934
      %2055 = vmatpush.msra.mxu0 %v1932
      %2056 = vmatpush.msra.mxu0 %v1930
      %2057 = vmatpush.msra.mxu0 %v1928
      %2058 = vmatpush.msra.mxu0 %v1926
      %2059 = vmatpush.msra.mxu0 %v1924
      %2060 = vmatpush.msra.mxu0 %v1922
      %2061 = vmatpush.msra.mxu0 %v1920
      %2062 = vmatpush.msra.mxu0 %v1918
      %2063 = vmatpush.msra.mxu0 %v1916
      %2064 = vmatpush.msra.mxu0 %v1914
      %2065 = vmatmul.f32.gmra.mxu0 %v1878
      %v2066 = vpop.f32.mrf.mxu0
      %v2067 = vadd.f32 %v2047, %v2066
      %2068 = vdwg.mxu0
      %2069 = vmatpush.msra.mxu0 %v1976
      %2070 = vmatpush.msra.mxu0 %v1974
      %2071 = vmatpush.msra.mxu0 %v1972
      %2072 = vmatpush.msra.mxu0 %v1970
      %2073 = vmatpush.msra.mxu0 %v1968
      %2074 = vmatpush.msra.mxu0 %v1966
      %2075 = vmatpush.msra.mxu0 %v1964
      %2076 = vmatpush.msra.mxu0 %v1962
      %2077 = vmatpush.msra.mxu0 %v1960
      %2078 = vmatpush.msra.mxu0 %v1958
      %2079 = vmatpush.msra.mxu0 %v1956
      %2080 = vmatpush.msra.mxu0 %v1954
      %2081 = vmatpush.msra.mxu0 %v1952
      %2082 = vmatpush.msra.mxu0 %v1950
      %2083 = vmatpush.msra.mxu0 %v1948
      %2084 = vmatpush.msra.mxu0 %v1946
      %2085 = vmatmul.f32.gmra.mxu0 %v1879
      %v2086 = vpop.f32.mrf.mxu0
      %v2087 = vadd.f32 %v2067, %v2086
      %2088 = vdwg.mxu0
      %2089 = vmatpush.msra.mxu0 %v2008
      %2090 = vmatpush.msra.mxu0 %v2006
      %2091 = vmatpush.msra.mxu0 %v2004
      %2092 = vmatpush.msra.mxu0 %v2002
      %2093 = vmatpush.msra.mxu0 %v2000
      %2094 = vmatpush.msra.mxu0 %v1998
      %2095 = vmatpush.msra.mxu0 %v1996
      %2096 = vmatpush.msra.mxu0 %v1994
      %2097 = vmatpush.msra.mxu0 %v1992
      %2098 = vmatpush.msra.mxu0 %v1990
      %2099 = vmatpush.msra.mxu0 %v1988
      %2100 = vmatpush.msra.mxu0 %v1986
      %2101 = vmatpush.msra.mxu0 %v1984
      %2102 = vmatpush.msra.mxu0 %v1982
      %2103 = vmatpush.msra.mxu0 %v1980
      %2104 = vmatpush.msra.mxu0 %v1978
      %2105 = vmatmul.f32.gmra.mxu0 %v1880
      %v2106 = vpop.f32.mrf.mxu0
      %v2107 = vadd.f32 %v2087, %v2106
      %2108 = vdwg.mxu0
      %2109 = vmatpush.msra.mxu0 0.0
      %2110 = vmatpush.msra.mxu0 0.0
      %2111 = vmatpush.msra.mxu0 0.0
      %2112 = vmatpush.msra.mxu0 0.0
      %2113 = vmatpush.msra.mxu0 0.0
      %2114 = vmatpush.msra.mxu0 0.0
      %2115 = vmatpush.msra.mxu0 0.0
      %2116 = vmatpush.msra.mxu0 0.0
      %2117 = vmatpush.msra.mxu0 %v2024
      %2118 = vmatpush.msra.mxu0 %v2022
      %2119 = vmatpush.msra.mxu0 %v2020
      %2120 = vmatpush.msra.mxu0 %v2018
      %2121 = vmatpush.msra.mxu0 %v2016
      %2122 = vmatpush.msra.mxu0 %v2014
      %2123 = vmatpush.msra.mxu0 %v2012
      %2124 = vmatpush.msra.mxu0 %v2010
      %2125 = vmatmul.f32.gmra.mxu0 %v2027
      %v2126 = vpop.f32.mrf.mxu0
      %v2127 = vadd.f32 %v2107, %v2126
      %2128 = vdwg.mxu0
      %2129 = vmatpush.msra.mxu0 %v1913
      %2130 = vmatpush.msra.mxu0 %v1911
      %2131 = vmatpush.msra.mxu0 %v1909
      %2132 = vmatpush.msra.mxu0 %v1907
      %2133 = vmatpush.msra.mxu0 %v1905
      %2134 = vmatpush.msra.mxu0 %v1903
      %2135 = vmatpush.msra.mxu0 %v1901
      %2136 = vmatpush.msra.mxu0 %v1899
      %2137 = vmatpush.msra.mxu0 %v1897
      %2138 = vmatpush.msra.mxu0 %v1895
      %2139 = vmatpush.msra.mxu0 %v1893
      %2140 = vmatpush.msra.mxu0 %v1891
      %2141 = vmatpush.msra.mxu0 %v1889
      %2142 = vmatpush.msra.mxu0 %v1887
      %2143 = vmatpush.msra.mxu0 %v1885
      %2144 = vmatpush.msra.mxu0 %v1883
      %2145 = vmatmul.f32.gmra.mxu0 %v1877
      %v2146 = vpop.f32.mrf.mxu0
      %v2147 = vadd.f32 0.0, %v2146
      %2148 = vdwg.mxu0
      %2149 = vmatpush.msra.mxu0 %v1945
      %2150 = vmatpush.msra.mxu0 %v1943
      %2151 = vmatpush.msra.mxu0 %v1941
      %2152 = vmatpush.msra.mxu0 %v1939
      %2153 = vmatpush.msra.mxu0 %v1937
      %2154 = vmatpush.msra.mxu0 %v1935
      %2155 = vmatpush.msra.mxu0 %v1933
      %2156 = vmatpush.msra.mxu0 %v1931
      %2157 = vmatpush.msra.mxu0 %v1929
      %2158 = vmatpush.msra.mxu0 %v1927
      %2159 = vmatpush.msra.mxu0 %v1925
      %2160 = vmatpush.msra.mxu0 %v1923
      %2161 = vmatpush.msra.mxu0 %v1921
      %2162 = vmatpush.msra.mxu0 %v1919
      %2163 = vmatpush.msra.mxu0 %v1917
      %2164 = vmatpush.msra.mxu0 %v1915
      %2165 = vmatmul.f32.gmra.mxu0 %v1878
      %v2166 = vpop.f32.mrf.mxu0
      %v2167 = vadd.f32 %v2147, %v2166
      %2168 = vdwg.mxu0
      %2169 = vmatpush.msra.mxu0 %v1977
      %2170 = vmatpush.msra.mxu0 %v1975
      %2171 = vmatpush.msra.mxu0 %v1973
      %2172 = vmatpush.msra.mxu0 %v1971
      %2173 = vmatpush.msra.mxu0 %v1969
      %2174 = vmatpush.msra.mxu0 %v1967
      %2175 = vmatpush.msra.mxu0 %v1965
      %2176 = vmatpush.msra.mxu0 %v1963
      %2177 = vmatpush.msra.mxu0 %v1961
      %2178 = vmatpush.msra.mxu0 %v1959
      %2179 = vmatpush.msra.mxu0 %v1957
      %2180 = vmatpush.msra.mxu0 %v1955
      %2181 = vmatpush.msra.mxu0 %v1953
      %2182 = vmatpush.msra.mxu0 %v1951
      %2183 = vmatpush.msra.mxu0 %v1949
      %2184 = vmatpush.msra.mxu0 %v1947
      %2185 = vmatmul.f32.gmra.mxu0 %v1879
      %v2186 = vpop.f32.mrf.mxu0
      %v2187 = vadd.f32 %v2167, %v2186
      %2188 = vdwg.mxu0
      %2189 = vmatpush.msra.mxu0 %v2009
      %2190 = vmatpush.msra.mxu0 %v2007
      %2191 = vmatpush.msra.mxu0 %v2005
      %2192 = vmatpush.msra.mxu0 %v2003
      %2193 = vmatpush.msra.mxu0 %v2001
      %2194 = vmatpush.msra.mxu0 %v1999
      %2195 = vmatpush.msra.mxu0 %v1997
      %2196 = vmatpush.msra.mxu0 %v1995
      %2197 = vmatpush.msra.mxu0 %v1993
      %2198 = vmatpush.msra.mxu0 %v1991
      %2199 = vmatpush.msra.mxu0 %v1989
      %2200 = vmatpush.msra.mxu0 %v1987
      %2201 = vmatpush.msra.mxu0 %v1985
      %2202 = vmatpush.msra.mxu0 %v1983
      %2203 = vmatpush.msra.mxu0 %v1981
      %2204 = vmatpush.msra.mxu0 %v1979
      %2205 = vmatmul.f32.gmra.mxu0 %v1880
      %v2206 = vpop.f32.mrf.mxu0
      %v2207 = vadd.f32 %v2187, %v2206
      %2208 = vdwg.mxu0
      %2209 = vmatpush.msra.mxu0 0.0
      %2210 = vmatpush.msra.mxu0 0.0
      %2211 = vmatpush.msra.mxu0 0.0
      %2212 = vmatpush.msra.mxu0 0.0
      %2213 = vmatpush.msra.mxu0 0.0
      %2214 = vmatpush.msra.mxu0 0.0
      %2215 = vmatpush.msra.mxu0 0.0
      %2216 = vmatpush.msra.mxu0 0.0
      %2217 = vmatpush.msra.mxu0 %v2025
      %2218 = vmatpush.msra.mxu0 %v2023
      %2219 = vmatpush.msra.mxu0 %v2021
      %2220 = vmatpush.msra.mxu0 %v2019
      %2221 = vmatpush.msra.mxu0 %v2017
      %2222 = vmatpush.msra.mxu0 %v2015
      %2223 = vmatpush.msra.mxu0 %v2013
      %2224 = vmatpush.msra.mxu0 %v2011
      %2225 = vmatmul.f32.gmra.mxu0 %v2027
      %v2226 = vpop.f32.mrf.mxu0
      %v2227 = vadd.f32 %v2207, %v2226
      %2228 = vdwg.mxu0
      %s2229 = scalar_lea.vmem %s7, 1152
      %v2230 = vld [vmem:[%s2229] sm:$0xff]
      %v2231 = vld [vmem:[%s2229 + $0x8] sm:$0xff]
      %v2232 = vld [vmem:[%s2229 + $0x10] sm:$0xff]
      %v2233 = vld [vmem:[%s2229 + $0x18] sm:$0xff]
      %v2234 = vld [vmem:[%s2229 + $0x20] sm:$0xff]
      %v2235 = vld [vmem:[%s2229 + $0x28] sm:$0xff]
      %v2236 = vld [vmem:[%s2229 + $0x30] sm:$0xff]
      %v2237 = vld [vmem:[%s2229 + $0x38] sm:$0xff]
      %v2238 = vld [vmem:[%s2229 + $0x40] sm:$0xff]
      %v2239 = vld [vmem:[%s2229 + $0x48] sm:$0xff]
      %v2240 = vld [vmem:[%s2229 + $0x50] sm:$0xff]
      %v2241 = vld [vmem:[%s2229 + $0x58] sm:$0xff]
      %v2242 = vld [vmem:[%s2229 + $0x60] sm:$0xff]
      %v2243 = vld [vmem:[%s2229 + $0x68] sm:$0xff]
      %v2244 = vld [vmem:[%s2229 + $0x70] sm:$0xff]
      %v2245 = vld [vmem:[%s2229 + $0x78] sm:$0xff]
      %v2246 = vld [vmem:[%s2229 + $0x80] sm:$0xff]
      %v2247 = vld [vmem:[%s2229 + $0x88] sm:$0xff]
      %v2248 = vld [vmem:[%s2229 + $0x90] sm:$0xff]
      %v2249 = vld [vmem:[%s2229 + $0x98] sm:$0xff]
      %v2250 = vld [vmem:[%s2229 + $0xa0] sm:$0xff]
      %v2251 = vld [vmem:[%s2229 + $0xa8] sm:$0xff]
      %v2252 = vld [vmem:[%s2229 + $0xb0] sm:$0xff]
      %v2253 = vld [vmem:[%s2229 + $0xb8] sm:$0xff]
      %v2254 = vld [vmem:[%s2229 + $0xc0] sm:$0xff]
      %v2255 = vld [vmem:[%s2229 + $0xc8] sm:$0xff]
      %v2256 = vld [vmem:[%s2229 + $0xd0] sm:$0xff]
      %v2257 = vld [vmem:[%s2229 + $0xd8] sm:$0xff]
      %v2258 = vld [vmem:[%s2229 + $0xe0] sm:$0xff]
      %v2259 = vld [vmem:[%s2229 + $0xe8] sm:$0xff]
      %v2260 = vld [vmem:[%s2229 + $0xf0] sm:$0xff]
      %v2261 = vld [vmem:[%s2229 + $0xf8] sm:$0xff]
      %v2262 = vld [vmem:[%s2229 + $0x100] sm:$0xff]
      %v2263 = vld [vmem:[%s2229 + $0x108] sm:$0xff]
      %v2264 = vld [vmem:[%s2229 + $0x110] sm:$0xff]
      %v2265 = vld [vmem:[%s2229 + $0x118] sm:$0xff]
      %v2266 = vld [vmem:[%s2229 + $0x120] sm:$0xff]
      %v2267 = vld [vmem:[%s2229 + $0x128] sm:$0xff]
      %v2268 = vld [vmem:[%s2229 + $0x130] sm:$0xff]
      %v2269 = vld [vmem:[%s2229 + $0x138] sm:$0xff]
      %v2270 = vld [vmem:[%s2229 + $0x140] sm:$0xff]
      %v2271 = vld [vmem:[%s2229 + $0x148] sm:$0xff]
      %v2272 = vld [vmem:[%s2229 + $0x150] sm:$0xff]
      %v2273 = vld [vmem:[%s2229 + $0x158] sm:$0xff]
      %v2274 = vld [vmem:[%s2229 + $0x160] sm:$0xff]
      %v2275 = vld [vmem:[%s2229 + $0x168] sm:$0xff]
      %v2276 = vld [vmem:[%s2229 + $0x170] sm:$0xff]
      %v2277 = vld [vmem:[%s2229 + $0x178] sm:$0xff]
      %v2278 = vld [vmem:[%s2229 + $0x180] sm:$0xff]
      %v2279 = vld [vmem:[%s2229 + $0x188] sm:$0xff]
      %v2280 = vld [vmem:[%s2229 + $0x190] sm:$0xff]
      %v2281 = vld [vmem:[%s2229 + $0x198] sm:$0xff]
      %v2282 = vld [vmem:[%s2229 + $0x1a0] sm:$0xff]
      %v2283 = vld [vmem:[%s2229 + $0x1a8] sm:$0xff]
      %v2284 = vld [vmem:[%s2229 + $0x1b0] sm:$0xff]
      %v2285 = vld [vmem:[%s2229 + $0x1b8] sm:$0xff]
      %v2286 = vld [vmem:[%s2229 + $0x1c0] sm:$0xff]
      %v2287 = vld [vmem:[%s2229 + $0x1c8] sm:$0xff]
      %v2288 = vld [vmem:[%s2229 + $0x1d0] sm:$0xff]
      %v2289 = vld [vmem:[%s2229 + $0x1d8] sm:$0xff]
      %v2290 = vld [vmem:[%s2229 + $0x1e0] sm:$0xff]
      %v2291 = vld [vmem:[%s2229 + $0x1e8] sm:$0xff]
      %v2292 = vld [vmem:[%s2229 + $0x1f0] sm:$0xff]
      %v2293 = vld [vmem:[%s2229 + $0x1f8] sm:$0xff]
      %v2294 = vld [vmem:[%s2229 + $0x200] sm:$0xff]
      %v2295 = vld [vmem:[%s2229 + $0x208] sm:$0xff]
      %v2296 = vld [vmem:[%s2229 + $0x210] sm:$0xff]
      %v2297 = vld [vmem:[%s2229 + $0x218] sm:$0xff]
      %v2298 = vld [vmem:[%s2229 + $0x220] sm:$0xff]
      %v2299 = vld [vmem:[%s2229 + $0x228] sm:$0xff]
      %v2300 = vld [vmem:[%s2229 + $0x230] sm:$0xff]
      %v2301 = vld [vmem:[%s2229 + $0x238] sm:$0xff]
      %v2302 = vld [vmem:[%s2229 + $0x240] sm:$0xff]
      %v2303 = vld [vmem:[%s2229 + $0x248] sm:$0xff]
      %v2304 = vld [vmem:[%s2229 + $0x250] sm:$0xff]
      %v2305 = vld [vmem:[%s2229 + $0x258] sm:$0xff]
      %v2306 = vld [vmem:[%s2229 + $0x260] sm:$0xff]
      %v2307 = vld [vmem:[%s2229 + $0x268] sm:$0xff]
      %v2308 = vld [vmem:[%s2229 + $0x270] sm:$0xff]
      %v2309 = vld [vmem:[%s2229 + $0x278] sm:$0xff]
      %v2310 = vld [vmem:[%s2229 + $0x280] sm:$0xff]
      %v2311 = vld [vmem:[%s2229 + $0x288] sm:$0xff]
      %v2312 = vld [vmem:[%s2229 + $0x290] sm:$0xff]
      %v2313 = vld [vmem:[%s2229 + $0x298] sm:$0xff]
      %v2314 = vld [vmem:[%s2229 + $0x2a0] sm:$0xff]
      %v2315 = vld [vmem:[%s2229 + $0x2a8] sm:$0xff]
      %v2316 = vld [vmem:[%s2229 + $0x2b0] sm:$0xff]
      %v2317 = vld [vmem:[%s2229 + $0x2b8] sm:$0xff]
      %v2318 = vld [vmem:[%s2229 + $0x2c0] sm:$0xff]
      %v2319 = vld [vmem:[%s2229 + $0x2c8] sm:$0xff]
      %v2320 = vld [vmem:[%s2229 + $0x2d0] sm:$0xff]
      %v2321 = vld [vmem:[%s2229 + $0x2d8] sm:$0xff]
      %v2322 = vld [vmem:[%s2229 + $0x2e0] sm:$0xff]
      %v2323 = vld [vmem:[%s2229 + $0x2e8] sm:$0xff]
      %v2324 = vld [vmem:[%s2229 + $0x2f0] sm:$0xff]
      %v2325 = vld [vmem:[%s2229 + $0x2f8] sm:$0xff]
      %v2326 = vld [vmem:[%s2229 + $0x300] sm:$0xff]
      %v2327 = vld [vmem:[%s2229 + $0x308] sm:$0xff]
      %v2328 = vld [vmem:[%s2229 + $0x310] sm:$0xff]
      %v2329 = vld [vmem:[%s2229 + $0x318] sm:$0xff]
      %v2330 = vld [vmem:[%s2229 + $0x320] sm:$0xff]
      %v2331 = vld [vmem:[%s2229 + $0x328] sm:$0xff]
      %v2332 = vld [vmem:[%s2229 + $0x330] sm:$0xff]
      %v2333 = vld [vmem:[%s2229 + $0x338] sm:$0xff]
      %v2334 = vld [vmem:[%s2229 + $0x340] sm:$0xff]
      %v2335 = vld [vmem:[%s2229 + $0x348] sm:$0xff]
      %v2336 = vld [vmem:[%s2229 + $0x350] sm:$0xff]
      %v2337 = vld [vmem:[%s2229 + $0x358] sm:$0xff]
      %v2338 = vld [vmem:[%s2229 + $0x360] sm:$0xff]
      %v2339 = vld [vmem:[%s2229 + $0x368] sm:$0xff]
      %v2340 = vld [vmem:[%s2229 + $0x370] sm:$0xff]
      %v2341 = vld [vmem:[%s2229 + $0x378] sm:$0xff]
      %v2342 = vld [vmem:[%s2229 + $0x380] sm:$0xff]
      %v2343 = vld [vmem:[%s2229 + $0x388] sm:$0xff]
      %v2344 = vld [vmem:[%s2229 + $0x390] sm:$0xff]
      %v2345 = vld [vmem:[%s2229 + $0x398] sm:$0xff]
      %v2346 = vld [vmem:[%s2229 + $0x3a0] sm:$0xff]
      %v2347 = vld [vmem:[%s2229 + $0x3a8] sm:$0xff]
      %v2348 = vld [vmem:[%s2229 + $0x3b0] sm:$0xff]
      %v2349 = vld [vmem:[%s2229 + $0x3b8] sm:$0xff]
      %v2350 = vld [vmem:[%s2229 + $0x3c0] sm:$0xff]
      %v2351 = vld [vmem:[%s2229 + $0x3c8] sm:$0xff]
      %v2352 = vld [vmem:[%s2229 + $0x3d0] sm:$0xff]
      %v2353 = vld [vmem:[%s2229 + $0x3d8] sm:$0xff]
      %v2354 = vld [vmem:[%s2229 + $0x3e0] sm:$0xff]
      %v2355 = vld [vmem:[%s2229 + $0x3e8] sm:$0xff]
      %v2356 = vld [vmem:[%s2229 + $0x3f0] sm:$0xff]
      %v2357 = vld [vmem:[%s2229 + $0x3f8] sm:$0xff]
      %v2358 = vld [vmem:[%s2229 + $0x400] sm:$0xff]
      %v2359 = vld [vmem:[%s2229 + $0x408] sm:$0xff]
      %v2360 = vld [vmem:[%s2229 + $0x410] sm:$0xff]
      %v2361 = vld [vmem:[%s2229 + $0x418] sm:$0xff]
      %v2362 = vld [vmem:[%s2229 + $0x420] sm:$0xff]
      %v2363 = vld [vmem:[%s2229 + $0x428] sm:$0xff]
      %v2364 = vld [vmem:[%s2229 + $0x430] sm:$0xff]
      %v2365 = vld [vmem:[%s2229 + $0x438] sm:$0xff]
      %v2366 = vld [vmem:[%s2229 + $0x440] sm:$0xff]
      %v2367 = vld [vmem:[%s2229 + $0x448] sm:$0xff]
      %v2368 = vld [vmem:[%s2229 + $0x450] sm:$0xff]
      %v2369 = vld [vmem:[%s2229 + $0x458] sm:$0xff]
      %v2370 = vld [vmem:[%s2229 + $0x460] sm:$0xff]
      %v2371 = vld [vmem:[%s2229 + $0x468] sm:$0xff]
      %v2372 = vld [vmem:[%s2229 + $0x470] sm:$0xff]
      %v2373 = vld [vmem:[%s2229 + $0x478] sm:$0xff]
      %2374 = vmatpush.msra.mxu0 %v2260
      %2375 = vmatpush.msra.mxu0 %v2258
      %2376 = vmatpush.msra.mxu0 %v2256
      %2377 = vmatpush.msra.mxu0 %v2254
      %2378 = vmatpush.msra.mxu0 %v2252
      %2379 = vmatpush.msra.mxu0 %v2250
      %2380 = vmatpush.msra.mxu0 %v2248
      %2381 = vmatpush.msra.mxu0 %v2246
      %2382 = vmatpush.msra.mxu0 %v2244
      %2383 = vmatpush.msra.mxu0 %v2242
      %2384 = vmatpush.msra.mxu0 %v2240
      %2385 = vmatpush.msra.mxu0 %v2238
      %2386 = vmatpush.msra.mxu0 %v2236
      %2387 = vmatpush.msra.mxu0 %v2234
      %2388 = vmatpush.msra.mxu0 %v2232
      %2389 = vmatpush.msra.mxu0 %v2230
      %2390 = vmatmul.f32.gmra.mxu0 %v1877
      %v2391 = vpop.f32.mrf.mxu0
      %v2392 = vadd.f32 0.0, %v2391
      %2393 = vdwg.mxu0
      %2394 = vmatpush.msra.mxu0 %v2292
      %2395 = vmatpush.msra.mxu0 %v2290
      %2396 = vmatpush.msra.mxu0 %v2288
      %2397 = vmatpush.msra.mxu0 %v2286
      %2398 = vmatpush.msra.mxu0 %v2284
      %2399 = vmatpush.msra.mxu0 %v2282
      %2400 = vmatpush.msra.mxu0 %v2280
      %2401 = vmatpush.msra.mxu0 %v2278
      %2402 = vmatpush.msra.mxu0 %v2276
      %2403 = vmatpush.msra.mxu0 %v2274
      %2404 = vmatpush.msra.mxu0 %v2272
      %2405 = vmatpush.msra.mxu0 %v2270
      %2406 = vmatpush.msra.mxu0 %v2268
      %2407 = vmatpush.msra.mxu0 %v2266
      %2408 = vmatpush.msra.mxu0 %v2264
      %2409 = vmatpush.msra.mxu0 %v2262
      %2410 = vmatmul.f32.gmra.mxu0 %v1878
      %v2411 = vpop.f32.mrf.mxu0
      %v2412 = vadd.f32 %v2392, %v2411
      %2413 = vdwg.mxu0
      %2414 = vmatpush.msra.mxu0 %v2324
      %2415 = vmatpush.msra.mxu0 %v2322
      %2416 = vmatpush.msra.mxu0 %v2320
      %2417 = vmatpush.msra.mxu0 %v2318
      %2418 = vmatpush.msra.mxu0 %v2316
      %2419 = vmatpush.msra.mxu0 %v2314
      %2420 = vmatpush.msra.mxu0 %v2312
      %2421 = vmatpush.msra.mxu0 %v2310
      %2422 = vmatpush.msra.mxu0 %v2308
      %2423 = vmatpush.msra.mxu0 %v2306
      %2424 = vmatpush.msra.mxu0 %v2304
      %2425 = vmatpush.msra.mxu0 %v2302
      %2426 = vmatpush.msra.mxu0 %v2300
      %2427 = vmatpush.msra.mxu0 %v2298
      %2428 = vmatpush.msra.mxu0 %v2296
      %2429 = vmatpush.msra.mxu0 %v2294
      %2430 = vmatmul.f32.gmra.mxu0 %v1879
      %v2431 = vpop.f32.mrf.mxu0
      %v2432 = vadd.f32 %v2412, %v2431
      %2433 = vdwg.mxu0
      %2434 = vmatpush.msra.mxu0 %v2356
      %2435 = vmatpush.msra.mxu0 %v2354
      %2436 = vmatpush.msra.mxu0 %v2352
      %2437 = vmatpush.msra.mxu0 %v2350
      %2438 = vmatpush.msra.mxu0 %v2348
      %2439 = vmatpush.msra.mxu0 %v2346
      %2440 = vmatpush.msra.mxu0 %v2344
      %2441 = vmatpush.msra.mxu0 %v2342
      %2442 = vmatpush.msra.mxu0 %v2340
      %2443 = vmatpush.msra.mxu0 %v2338
      %2444 = vmatpush.msra.mxu0 %v2336
      %2445 = vmatpush.msra.mxu0 %v2334
      %2446 = vmatpush.msra.mxu0 %v2332
      %2447 = vmatpush.msra.mxu0 %v2330
      %2448 = vmatpush.msra.mxu0 %v2328
      %2449 = vmatpush.msra.mxu0 %v2326
      %2450 = vmatmul.f32.gmra.mxu0 %v1880
      %v2451 = vpop.f32.mrf.mxu0
      %v2452 = vadd.f32 %v2432, %v2451
      %2453 = vdwg.mxu0
      %2454 = vmatpush.msra.mxu0 0.0
      %2455 = vmatpush.msra.mxu0 0.0
      %2456 = vmatpush.msra.mxu0 0.0
      %2457 = vmatpush.msra.mxu0 0.0
      %2458 = vmatpush.msra.mxu0 0.0
      %2459 = vmatpush.msra.mxu0 0.0
      %2460 = vmatpush.msra.mxu0 0.0
      %2461 = vmatpush.msra.mxu0 0.0
      %2462 = vmatpush.msra.mxu0 %v2372
      %2463 = vmatpush.msra.mxu0 %v2370
      %2464 = vmatpush.msra.mxu0 %v2368
      %2465 = vmatpush.msra.mxu0 %v2366
      %2466 = vmatpush.msra.mxu0 %v2364
      %2467 = vmatpush.msra.mxu0 %v2362
      %2468 = vmatpush.msra.mxu0 %v2360
      %2469 = vmatpush.msra.mxu0 %v2358
      %2470 = vmatmul.f32.gmra.mxu0 %v2027
      %v2471 = vpop.f32.mrf.mxu0
      %v2472 = vadd.f32 %v2452, %v2471
      %2473 = vdwg.mxu0
      %2474 = vmatpush.msra.mxu0 %v2261
      %2475 = vmatpush.msra.mxu0 %v2259
      %2476 = vmatpush.msra.mxu0 %v2257
      %2477 = vmatpush.msra.mxu0 %v2255
      %2478 = vmatpush.msra.mxu0 %v2253
      %2479 = vmatpush.msra.mxu0 %v2251
      %2480 = vmatpush.msra.mxu0 %v2249
      %2481 = vmatpush.msra.mxu0 %v2247
      %2482 = vmatpush.msra.mxu0 %v2245
      %2483 = vmatpush.msra.mxu0 %v2243
      %2484 = vmatpush.msra.mxu0 %v2241
      %2485 = vmatpush.msra.mxu0 %v2239
      %2486 = vmatpush.msra.mxu0 %v2237
      %2487 = vmatpush.msra.mxu0 %v2235
      %2488 = vmatpush.msra.mxu0 %v2233
      %2489 = vmatpush.msra.mxu0 %v2231
      %2490 = vmatmul.f32.gmra.mxu0 %v1877
      %v2491 = vpop.f32.mrf.mxu0
      %v2492 = vadd.f32 0.0, %v2491
      %2493 = vdwg.mxu0
      %2494 = vmatpush.msra.mxu0 %v2293
      %2495 = vmatpush.msra.mxu0 %v2291
      %2496 = vmatpush.msra.mxu0 %v2289
      %2497 = vmatpush.msra.mxu0 %v2287
      %2498 = vmatpush.msra.mxu0 %v2285
      %2499 = vmatpush.msra.mxu0 %v2283
      %2500 = vmatpush.msra.mxu0 %v2281
      %2501 = vmatpush.msra.mxu0 %v2279
      %2502 = vmatpush.msra.mxu0 %v2277
      %2503 = vmatpush.msra.mxu0 %v2275
      %2504 = vmatpush.msra.mxu0 %v2273
      %2505 = vmatpush.msra.mxu0 %v2271
      %2506 = vmatpush.msra.mxu0 %v2269
      %2507 = vmatpush.msra.mxu0 %v2267
      %2508 = vmatpush.msra.mxu0 %v2265
      %2509 = vmatpush.msra.mxu0 %v2263
      %2510 = vmatmul.f32.gmra.mxu0 %v1878
      %v2511 = vpop.f32.mrf.mxu0
      %v2512 = vadd.f32 %v2492, %v2511
      %2513 = vdwg.mxu0
      %2514 = vmatpush.msra.mxu0 %v2325
      %2515 = vmatpush.msra.mxu0 %v2323
      %2516 = vmatpush.msra.mxu0 %v2321
      %2517 = vmatpush.msra.mxu0 %v2319
      %2518 = vmatpush.msra.mxu0 %v2317
      %2519 = vmatpush.msra.mxu0 %v2315
      %2520 = vmatpush.msra.mxu0 %v2313
      %2521 = vmatpush.msra.mxu0 %v2311
      %2522 = vmatpush.msra.mxu0 %v2309
      %2523 = vmatpush.msra.mxu0 %v2307
      %2524 = vmatpush.msra.mxu0 %v2305
      %2525 = vmatpush.msra.mxu0 %v2303
      %2526 = vmatpush.msra.mxu0 %v2301
      %2527 = vmatpush.msra.mxu0 %v2299
      %2528 = vmatpush.msra.mxu0 %v2297
      %2529 = vmatpush.msra.mxu0 %v2295
      %2530 = vmatmul.f32.gmra.mxu0 %v1879
      %v2531 = vpop.f32.mrf.mxu0
      %v2532 = vadd.f32 %v2512, %v2531
      %2533 = vdwg.mxu0
      %2534 = vmatpush.msra.mxu0 %v2357
      %2535 = vmatpush.msra.mxu0 %v2355
      %2536 = vmatpush.msra.mxu0 %v2353
      %2537 = vmatpush.msra.mxu0 %v2351
      %2538 = vmatpush.msra.mxu0 %v2349
      %2539 = vmatpush.msra.mxu0 %v2347
      %2540 = vmatpush.msra.mxu0 %v2345
      %2541 = vmatpush.msra.mxu0 %v2343
      %2542 = vmatpush.msra.mxu0 %v2341
      %2543 = vmatpush.msra.mxu0 %v2339
      %2544 = vmatpush.msra.mxu0 %v2337
      %2545 = vmatpush.msra.mxu0 %v2335
      %2546 = vmatpush.msra.mxu0 %v2333
      %2547 = vmatpush.msra.mxu0 %v2331
      %2548 = vmatpush.msra.mxu0 %v2329
      %2549 = vmatpush.msra.mxu0 %v2327
      %2550 = vmatmul.f32.gmra.mxu0 %v1880
      %v2551 = vpop.f32.mrf.mxu0
      %v2552 = vadd.f32 %v2532, %v2551
      %2553 = vdwg.mxu0
      %2554 = vmatpush.msra.mxu0 0.0
      %2555 = vmatpush.msra.mxu0 0.0
      %2556 = vmatpush.msra.mxu0 0.0
      %2557 = vmatpush.msra.mxu0 0.0
      %2558 = vmatpush.msra.mxu0 0.0
      %2559 = vmatpush.msra.mxu0 0.0
      %2560 = vmatpush.msra.mxu0 0.0
      %2561 = vmatpush.msra.mxu0 0.0
      %2562 = vmatpush.msra.mxu0 %v2373
      %2563 = vmatpush.msra.mxu0 %v2371
      %2564 = vmatpush.msra.mxu0 %v2369
      %2565 = vmatpush.msra.mxu0 %v2367
      %2566 = vmatpush.msra.mxu0 %v2365
      %2567 = vmatpush.msra.mxu0 %v2363
      %2568 = vmatpush.msra.mxu0 %v2361
      %2569 = vmatpush.msra.mxu0 %v2359
      %2570 = vmatmul.f32.gmra.mxu0 %v2027
      %v2571 = vpop.f32.mrf.mxu0
      %v2572 = vadd.f32 %v2552, %v2571
      %2573 = vdwg.mxu0
      %v2574 = vmax.f32 %v2127, %v2472
      %v2575 = vmax.f32 %v2227, %v2572
      %s2576 = scalar_lea.vmem %s7, 2304
      %v2577 = vld [vmem:[%s2576] sm:$0xff]
      %v2578 = vld [vmem:[%s2576 + $0x8] sm:$0xff]
      %v2579 = vld [vmem:[%s2576 + $0x10] sm:$0xff]
      %v2580 = vld [vmem:[%s2576 + $0x18] sm:$0xff]
      %v2581 = vld [vmem:[%s2576 + $0x20] sm:$0xff]
      %v2582 = vld [vmem:[%s2576 + $0x28] sm:$0xff]
      %v2583 = vld [vmem:[%s2576 + $0x30] sm:$0xff]
      %v2584 = vld [vmem:[%s2576 + $0x38] sm:$0xff]
      %v2585 = vld [vmem:[%s2576 + $0x40] sm:$0xff]
      %v2586 = vld [vmem:[%s2576 + $0x48] sm:$0xff]
      %v2587 = vld [vmem:[%s2576 + $0x50] sm:$0xff]
      %v2588 = vld [vmem:[%s2576 + $0x58] sm:$0xff]
      %v2589 = vld [vmem:[%s2576 + $0x60] sm:$0xff]
      %v2590 = vld [vmem:[%s2576 + $0x68] sm:$0xff]
      %v2591 = vld [vmem:[%s2576 + $0x70] sm:$0xff]
      %v2592 = vld [vmem:[%s2576 + $0x78] sm:$0xff]
      %v2593 = vld [vmem:[%s2576 + $0x80] sm:$0xff]
      %v2594 = vld [vmem:[%s2576 + $0x88] sm:$0xff]
      %v2595 = vld [vmem:[%s2576 + $0x90] sm:$0xff]
      %v2596 = vld [vmem:[%s2576 + $0x98] sm:$0xff]
      %v2597 = vld [vmem:[%s2576 + $0xa0] sm:$0xff]
      %v2598 = vld [vmem:[%s2576 + $0xa8] sm:$0xff]
      %v2599 = vld [vmem:[%s2576 + $0xb0] sm:$0xff]
      %v2600 = vld [vmem:[%s2576 + $0xb8] sm:$0xff]
      %v2601 = vld [vmem:[%s2576 + $0xc0] sm:$0xff]
      %v2602 = vld [vmem:[%s2576 + $0xc8] sm:$0xff]
      %v2603 = vld [vmem:[%s2576 + $0xd0] sm:$0xff]
      %v2604 = vld [vmem:[%s2576 + $0xd8] sm:$0xff]
      %v2605 = vld [vmem:[%s2576 + $0xe0] sm:$0xff]
      %v2606 = vld [vmem:[%s2576 + $0xe8] sm:$0xff]
      %v2607 = vld [vmem:[%s2576 + $0xf0] sm:$0xff]
      %v2608 = vld [vmem:[%s2576 + $0xf8] sm:$0xff]
      %v2609 = vld [vmem:[%s2576 + $0x100] sm:$0xff]
      %v2610 = vld [vmem:[%s2576 + $0x108] sm:$0xff]
      %v2611 = vld [vmem:[%s2576 + $0x110] sm:$0xff]
      %v2612 = vld [vmem:[%s2576 + $0x118] sm:$0xff]
      %v2613 = vld [vmem:[%s2576 + $0x120] sm:$0xff]
      %v2614 = vld [vmem:[%s2576 + $0x128] sm:$0xff]
      %v2615 = vld [vmem:[%s2576 + $0x130] sm:$0xff]
      %v2616 = vld [vmem:[%s2576 + $0x138] sm:$0xff]
      %v2617 = vld [vmem:[%s2576 + $0x140] sm:$0xff]
      %v2618 = vld [vmem:[%s2576 + $0x148] sm:$0xff]
      %v2619 = vld [vmem:[%s2576 + $0x150] sm:$0xff]
      %v2620 = vld [vmem:[%s2576 + $0x158] sm:$0xff]
      %v2621 = vld [vmem:[%s2576 + $0x160] sm:$0xff]
      %v2622 = vld [vmem:[%s2576 + $0x168] sm:$0xff]
      %v2623 = vld [vmem:[%s2576 + $0x170] sm:$0xff]
      %v2624 = vld [vmem:[%s2576 + $0x178] sm:$0xff]
      %v2625 = vld [vmem:[%s2576 + $0x180] sm:$0xff]
      %v2626 = vld [vmem:[%s2576 + $0x188] sm:$0xff]
      %v2627 = vld [vmem:[%s2576 + $0x190] sm:$0xff]
      %v2628 = vld [vmem:[%s2576 + $0x198] sm:$0xff]
      %v2629 = vld [vmem:[%s2576 + $0x1a0] sm:$0xff]
      %v2630 = vld [vmem:[%s2576 + $0x1a8] sm:$0xff]
      %v2631 = vld [vmem:[%s2576 + $0x1b0] sm:$0xff]
      %v2632 = vld [vmem:[%s2576 + $0x1b8] sm:$0xff]
      %v2633 = vld [vmem:[%s2576 + $0x1c0] sm:$0xff]
      %v2634 = vld [vmem:[%s2576 + $0x1c8] sm:$0xff]
      %v2635 = vld [vmem:[%s2576 + $0x1d0] sm:$0xff]
      %v2636 = vld [vmem:[%s2576 + $0x1d8] sm:$0xff]
      %v2637 = vld [vmem:[%s2576 + $0x1e0] sm:$0xff]
      %v2638 = vld [vmem:[%s2576 + $0x1e8] sm:$0xff]
      %v2639 = vld [vmem:[%s2576 + $0x1f0] sm:$0xff]
      %v2640 = vld [vmem:[%s2576 + $0x1f8] sm:$0xff]
      %v2641 = vld [vmem:[%s2576 + $0x200] sm:$0xff]
      %v2642 = vld [vmem:[%s2576 + $0x208] sm:$0xff]
      %v2643 = vld [vmem:[%s2576 + $0x210] sm:$0xff]
      %v2644 = vld [vmem:[%s2576 + $0x218] sm:$0xff]
      %v2645 = vld [vmem:[%s2576 + $0x220] sm:$0xff]
      %v2646 = vld [vmem:[%s2576 + $0x228] sm:$0xff]
      %v2647 = vld [vmem:[%s2576 + $0x230] sm:$0xff]
      %v2648 = vld [vmem:[%s2576 + $0x238] sm:$0xff]
      %v2649 = vld [vmem:[%s2576 + $0x240] sm:$0xff]
      %v2650 = vld [vmem:[%s2576 + $0x248] sm:$0xff]
      %v2651 = vld [vmem:[%s2576 + $0x250] sm:$0xff]
      %v2652 = vld [vmem:[%s2576 + $0x258] sm:$0xff]
      %v2653 = vld [vmem:[%s2576 + $0x260] sm:$0xff]
      %v2654 = vld [vmem:[%s2576 + $0x268] sm:$0xff]
      %v2655 = vld [vmem:[%s2576 + $0x270] sm:$0xff]
      %v2656 = vld [vmem:[%s2576 + $0x278] sm:$0xff]
      %v2657 = vld [vmem:[%s2576 + $0x280] sm:$0xff]
      %v2658 = vld [vmem:[%s2576 + $0x288] sm:$0xff]
      %v2659 = vld [vmem:[%s2576 + $0x290] sm:$0xff]
      %v2660 = vld [vmem:[%s2576 + $0x298] sm:$0xff]
      %v2661 = vld [vmem:[%s2576 + $0x2a0] sm:$0xff]
      %v2662 = vld [vmem:[%s2576 + $0x2a8] sm:$0xff]
      %v2663 = vld [vmem:[%s2576 + $0x2b0] sm:$0xff]
      %v2664 = vld [vmem:[%s2576 + $0x2b8] sm:$0xff]
      %v2665 = vld [vmem:[%s2576 + $0x2c0] sm:$0xff]
      %v2666 = vld [vmem:[%s2576 + $0x2c8] sm:$0xff]
      %v2667 = vld [vmem:[%s2576 + $0x2d0] sm:$0xff]
      %v2668 = vld [vmem:[%s2576 + $0x2d8] sm:$0xff]
      %v2669 = vld [vmem:[%s2576 + $0x2e0] sm:$0xff]
      %v2670 = vld [vmem:[%s2576 + $0x2e8] sm:$0xff]
      %v2671 = vld [vmem:[%s2576 + $0x2f0] sm:$0xff]
      %v2672 = vld [vmem:[%s2576 + $0x2f8] sm:$0xff]
      %v2673 = vld [vmem:[%s2576 + $0x300] sm:$0xff]
      %v2674 = vld [vmem:[%s2576 + $0x308] sm:$0xff]
      %v2675 = vld [vmem:[%s2576 + $0x310] sm:$0xff]
      %v2676 = vld [vmem:[%s2576 + $0x318] sm:$0xff]
      %v2677 = vld [vmem:[%s2576 + $0x320] sm:$0xff]
      %v2678 = vld [vmem:[%s2576 + $0x328] sm:$0xff]
      %v2679 = vld [vmem:[%s2576 + $0x330] sm:$0xff]
      %v2680 = vld [vmem:[%s2576 + $0x338] sm:$0xff]
      %v2681 = vld [vmem:[%s2576 + $0x340] sm:$0xff]
      %v2682 = vld [vmem:[%s2576 + $0x348] sm:$0xff]
      %v2683 = vld [vmem:[%s2576 + $0x350] sm:$0xff]
      %v2684 = vld [vmem:[%s2576 + $0x358] sm:$0xff]
      %v2685 = vld [vmem:[%s2576 + $0x360] sm:$0xff]
      %v2686 = vld [vmem:[%s2576 + $0x368] sm:$0xff]
      %v2687 = vld [vmem:[%s2576 + $0x370] sm:$0xff]
      %v2688 = vld [vmem:[%s2576 + $0x378] sm:$0xff]
      %v2689 = vld [vmem:[%s2576 + $0x380] sm:$0xff]
      %v2690 = vld [vmem:[%s2576 + $0x388] sm:$0xff]
      %v2691 = vld [vmem:[%s2576 + $0x390] sm:$0xff]
      %v2692 = vld [vmem:[%s2576 + $0x398] sm:$0xff]
      %v2693 = vld [vmem:[%s2576 + $0x3a0] sm:$0xff]
      %v2694 = vld [vmem:[%s2576 + $0x3a8] sm:$0xff]
      %v2695 = vld [vmem:[%s2576 + $0x3b0] sm:$0xff]
      %v2696 = vld [vmem:[%s2576 + $0x3b8] sm:$0xff]
      %v2697 = vld [vmem:[%s2576 + $0x3c0] sm:$0xff]
      %v2698 = vld [vmem:[%s2576 + $0x3c8] sm:$0xff]
      %v2699 = vld [vmem:[%s2576 + $0x3d0] sm:$0xff]
      %v2700 = vld [vmem:[%s2576 + $0x3d8] sm:$0xff]
      %v2701 = vld [vmem:[%s2576 + $0x3e0] sm:$0xff]
      %v2702 = vld [vmem:[%s2576 + $0x3e8] sm:$0xff]
      %v2703 = vld [vmem:[%s2576 + $0x3f0] sm:$0xff]
      %v2704 = vld [vmem:[%s2576 + $0x3f8] sm:$0xff]
      %v2705 = vld [vmem:[%s2576 + $0x400] sm:$0xff]
      %v2706 = vld [vmem:[%s2576 + $0x408] sm:$0xff]
      %v2707 = vld [vmem:[%s2576 + $0x410] sm:$0xff]
      %v2708 = vld [vmem:[%s2576 + $0x418] sm:$0xff]
      %v2709 = vld [vmem:[%s2576 + $0x420] sm:$0xff]
      %v2710 = vld [vmem:[%s2576 + $0x428] sm:$0xff]
      %v2711 = vld [vmem:[%s2576 + $0x430] sm:$0xff]
      %v2712 = vld [vmem:[%s2576 + $0x438] sm:$0xff]
      %v2713 = vld [vmem:[%s2576 + $0x440] sm:$0xff]
      %v2714 = vld [vmem:[%s2576 + $0x448] sm:$0xff]
      %v2715 = vld [vmem:[%s2576 + $0x450] sm:$0xff]
      %v2716 = vld [vmem:[%s2576 + $0x458] sm:$0xff]
      %v2717 = vld [vmem:[%s2576 + $0x460] sm:$0xff]
      %v2718 = vld [vmem:[%s2576 + $0x468] sm:$0xff]
      %v2719 = vld [vmem:[%s2576 + $0x470] sm:$0xff]
      %v2720 = vld [vmem:[%s2576 + $0x478] sm:$0xff]
      %2721 = vmatpush.msra.mxu0 %v2607
      %2722 = vmatpush.msra.mxu0 %v2605
      %2723 = vmatpush.msra.mxu0 %v2603
      %2724 = vmatpush.msra.mxu0 %v2601
      %2725 = vmatpush.msra.mxu0 %v2599
      %2726 = vmatpush.msra.mxu0 %v2597
      %2727 = vmatpush.msra.mxu0 %v2595
      %2728 = vmatpush.msra.mxu0 %v2593
      %2729 = vmatpush.msra.mxu0 %v2591
      %2730 = vmatpush.msra.mxu0 %v2589
      %2731 = vmatpush.msra.mxu0 %v2587
      %2732 = vmatpush.msra.mxu0 %v2585
      %2733 = vmatpush.msra.mxu0 %v2583
      %2734 = vmatpush.msra.mxu0 %v2581
      %2735 = vmatpush.msra.mxu0 %v2579
      %2736 = vmatpush.msra.mxu0 %v2577
      %2737 = vmatmul.f32.gmra.mxu0 %v1877
      %v2738 = vpop.f32.mrf.mxu0
      %v2739 = vadd.f32 0.0, %v2738
      %2740 = vdwg.mxu0
      %2741 = vmatpush.msra.mxu0 %v2639
      %2742 = vmatpush.msra.mxu0 %v2637
      %2743 = vmatpush.msra.mxu0 %v2635
      %2744 = vmatpush.msra.mxu0 %v2633
      %2745 = vmatpush.msra.mxu0 %v2631
      %2746 = vmatpush.msra.mxu0 %v2629
      %2747 = vmatpush.msra.mxu0 %v2627
      %2748 = vmatpush.msra.mxu0 %v2625
      %2749 = vmatpush.msra.mxu0 %v2623
      %2750 = vmatpush.msra.mxu0 %v2621
      %2751 = vmatpush.msra.mxu0 %v2619
      %2752 = vmatpush.msra.mxu0 %v2617
      %2753 = vmatpush.msra.mxu0 %v2615
      %2754 = vmatpush.msra.mxu0 %v2613
      %2755 = vmatpush.msra.mxu0 %v2611
      %2756 = vmatpush.msra.mxu0 %v2609
      %2757 = vmatmul.f32.gmra.mxu0 %v1878
      %v2758 = vpop.f32.mrf.mxu0
      %v2759 = vadd.f32 %v2739, %v2758
      %2760 = vdwg.mxu0
      %2761 = vmatpush.msra.mxu0 %v2671
      %2762 = vmatpush.msra.mxu0 %v2669
      %2763 = vmatpush.msra.mxu0 %v2667
      %2764 = vmatpush.msra.mxu0 %v2665
      %2765 = vmatpush.msra.mxu0 %v2663
      %2766 = vmatpush.msra.mxu0 %v2661
      %2767 = vmatpush.msra.mxu0 %v2659
      %2768 = vmatpush.msra.mxu0 %v2657
      %2769 = vmatpush.msra.mxu0 %v2655
      %2770 = vmatpush.msra.mxu0 %v2653
      %2771 = vmatpush.msra.mxu0 %v2651
      %2772 = vmatpush.msra.mxu0 %v2649
      %2773 = vmatpush.msra.mxu0 %v2647
      %2774 = vmatpush.msra.mxu0 %v2645
      %2775 = vmatpush.msra.mxu0 %v2643
      %2776 = vmatpush.msra.mxu0 %v2641
      %2777 = vmatmul.f32.gmra.mxu0 %v1879
      %v2778 = vpop.f32.mrf.mxu0
      %v2779 = vadd.f32 %v2759, %v2778
      %2780 = vdwg.mxu0
      %2781 = vmatpush.msra.mxu0 %v2703
      %2782 = vmatpush.msra.mxu0 %v2701
      %2783 = vmatpush.msra.mxu0 %v2699
      %2784 = vmatpush.msra.mxu0 %v2697
      %2785 = vmatpush.msra.mxu0 %v2695
      %2786 = vmatpush.msra.mxu0 %v2693
      %2787 = vmatpush.msra.mxu0 %v2691
      %2788 = vmatpush.msra.mxu0 %v2689
      %2789 = vmatpush.msra.mxu0 %v2687
      %2790 = vmatpush.msra.mxu0 %v2685
      %2791 = vmatpush.msra.mxu0 %v2683
      %2792 = vmatpush.msra.mxu0 %v2681
      %2793 = vmatpush.msra.mxu0 %v2679
      %2794 = vmatpush.msra.mxu0 %v2677
      %2795 = vmatpush.msra.mxu0 %v2675
      %2796 = vmatpush.msra.mxu0 %v2673
      %2797 = vmatmul.f32.gmra.mxu0 %v1880
      %v2798 = vpop.f32.mrf.mxu0
      %v2799 = vadd.f32 %v2779, %v2798
      %2800 = vdwg.mxu0
      %2801 = vmatpush.msra.mxu0 0.0
      %2802 = vmatpush.msra.mxu0 0.0
      %2803 = vmatpush.msra.mxu0 0.0
      %2804 = vmatpush.msra.mxu0 0.0
      %2805 = vmatpush.msra.mxu0 0.0
      %2806 = vmatpush.msra.mxu0 0.0
      %2807 = vmatpush.msra.mxu0 0.0
      %2808 = vmatpush.msra.mxu0 0.0
      %2809 = vmatpush.msra.mxu0 %v2719
      %2810 = vmatpush.msra.mxu0 %v2717
      %2811 = vmatpush.msra.mxu0 %v2715
      %2812 = vmatpush.msra.mxu0 %v2713
      %2813 = vmatpush.msra.mxu0 %v2711
      %2814 = vmatpush.msra.mxu0 %v2709
      %2815 = vmatpush.msra.mxu0 %v2707
      %2816 = vmatpush.msra.mxu0 %v2705
      %2817 = vmatmul.f32.gmra.mxu0 %v2027
      %v2818 = vpop.f32.mrf.mxu0
      %v2819 = vadd.f32 %v2799, %v2818
      %2820 = vdwg.mxu0
      %2821 = vmatpush.msra.mxu0 %v2608
      %2822 = vmatpush.msra.mxu0 %v2606
      %2823 = vmatpush.msra.mxu0 %v2604
      %2824 = vmatpush.msra.mxu0 %v2602
      %2825 = vmatpush.msra.mxu0 %v2600
      %2826 = vmatpush.msra.mxu0 %v2598
      %2827 = vmatpush.msra.mxu0 %v2596
      %2828 = vmatpush.msra.mxu0 %v2594
      %2829 = vmatpush.msra.mxu0 %v2592
      %2830 = vmatpush.msra.mxu0 %v2590
      %2831 = vmatpush.msra.mxu0 %v2588
      %2832 = vmatpush.msra.mxu0 %v2586
      %2833 = vmatpush.msra.mxu0 %v2584
      %2834 = vmatpush.msra.mxu0 %v2582
      %2835 = vmatpush.msra.mxu0 %v2580
      %2836 = vmatpush.msra.mxu0 %v2578
      %2837 = vmatmul.f32.gmra.mxu0 %v1877
      %v2838 = vpop.f32.mrf.mxu0
      %v2839 = vadd.f32 0.0, %v2838
      %2840 = vdwg.mxu0
      %2841 = vmatpush.msra.mxu0 %v2640
      %2842 = vmatpush.msra.mxu0 %v2638
      %2843 = vmatpush.msra.mxu0 %v2636
      %2844 = vmatpush.msra.mxu0 %v2634
      %2845 = vmatpush.msra.mxu0 %v2632
      %2846 = vmatpush.msra.mxu0 %v2630
      %2847 = vmatpush.msra.mxu0 %v2628
      %2848 = vmatpush.msra.mxu0 %v2626
      %2849 = vmatpush.msra.mxu0 %v2624
      %2850 = vmatpush.msra.mxu0 %v2622
      %2851 = vmatpush.msra.mxu0 %v2620
      %2852 = vmatpush.msra.mxu0 %v2618
      %2853 = vmatpush.msra.mxu0 %v2616
      %2854 = vmatpush.msra.mxu0 %v2614
      %2855 = vmatpush.msra.mxu0 %v2612
      %2856 = vmatpush.msra.mxu0 %v2610
      %2857 = vmatmul.f32.gmra.mxu0 %v1878
      %v2858 = vpop.f32.mrf.mxu0
      %v2859 = vadd.f32 %v2839, %v2858
      %2860 = vdwg.mxu0
      %2861 = vmatpush.msra.mxu0 %v2672
      %2862 = vmatpush.msra.mxu0 %v2670
      %2863 = vmatpush.msra.mxu0 %v2668
      %2864 = vmatpush.msra.mxu0 %v2666
      %2865 = vmatpush.msra.mxu0 %v2664
      %2866 = vmatpush.msra.mxu0 %v2662
      %2867 = vmatpush.msra.mxu0 %v2660
      %2868 = vmatpush.msra.mxu0 %v2658
      %2869 = vmatpush.msra.mxu0 %v2656
      %2870 = vmatpush.msra.mxu0 %v2654
      %2871 = vmatpush.msra.mxu0 %v2652
      %2872 = vmatpush.msra.mxu0 %v2650
      %2873 = vmatpush.msra.mxu0 %v2648
      %2874 = vmatpush.msra.mxu0 %v2646
      %2875 = vmatpush.msra.mxu0 %v2644
      %2876 = vmatpush.msra.mxu0 %v2642
      %2877 = vmatmul.f32.gmra.mxu0 %v1879
      %v2878 = vpop.f32.mrf.mxu0
      %v2879 = vadd.f32 %v2859, %v2878
      %2880 = vdwg.mxu0
      %2881 = vmatpush.msra.mxu0 %v2704
      %2882 = vmatpush.msra.mxu0 %v2702
      %2883 = vmatpush.msra.mxu0 %v2700
      %2884 = vmatpush.msra.mxu0 %v2698
      %2885 = vmatpush.msra.mxu0 %v2696
      %2886 = vmatpush.msra.mxu0 %v2694
      %2887 = vmatpush.msra.mxu0 %v2692
      %2888 = vmatpush.msra.mxu0 %v2690
      %2889 = vmatpush.msra.mxu0 %v2688
      %2890 = vmatpush.msra.mxu0 %v2686
      %2891 = vmatpush.msra.mxu0 %v2684
      %2892 = vmatpush.msra.mxu0 %v2682
      %2893 = vmatpush.msra.mxu0 %v2680
      %2894 = vmatpush.msra.mxu0 %v2678
      %2895 = vmatpush.msra.mxu0 %v2676
      %2896 = vmatpush.msra.mxu0 %v2674
      %2897 = vmatmul.f32.gmra.mxu0 %v1880
      %v2898 = vpop.f32.mrf.mxu0
      %v2899 = vadd.f32 %v2879, %v2898
      %2900 = vdwg.mxu0
      %2901 = vmatpush.msra.mxu0 0.0
      %2902 = vmatpush.msra.mxu0 0.0
      %2903 = vmatpush.msra.mxu0 0.0
      %2904 = vmatpush.msra.mxu0 0.0
      %2905 = vmatpush.msra.mxu0 0.0
      %2906 = vmatpush.msra.mxu0 0.0
      %2907 = vmatpush.msra.mxu0 0.0
      %2908 = vmatpush.msra.mxu0 0.0
      %2909 = vmatpush.msra.mxu0 %v2720
      %2910 = vmatpush.msra.mxu0 %v2718
      %2911 = vmatpush.msra.mxu0 %v2716
      %2912 = vmatpush.msra.mxu0 %v2714
      %2913 = vmatpush.msra.mxu0 %v2712
      %2914 = vmatpush.msra.mxu0 %v2710
      %2915 = vmatpush.msra.mxu0 %v2708
      %2916 = vmatpush.msra.mxu0 %v2706
      %2917 = vmatmul.f32.gmra.mxu0 %v2027
      %v2918 = vpop.f32.mrf.mxu0
      %v2919 = vadd.f32 %v2899, %v2918
      %2920 = vdwg.mxu0
      %v2921 = vmax.f32 %v2574, %v2819
      %v2922 = vmax.f32 %v2575, %v2919
      %v2923 = vmax.f32 %v2921, 0.0
      %v2924 = vmax.f32 %v2922, 0.0
      %2925 = vst [vmem:[%s305] sm:$0xff] %v2923
      %2926 = vst [vmem:[%s305 + $0x8] sm:$0xff] %v2924
      %p2927 = scmp.lt.s32.totalorder %s19, 1
      %s2928 = scalar_select %p2927, %s19, 1
      %s2929 = smul.addr %s2928, 2
      %s2930 = smul.addr %s2929, 8
      %s2931 = scalar_lea.vmem %s8, %s2930
      // Predicated region
      $region53: #{based_module_1_forward.1} parent=51 // pred_check
        %p2932 = pneg %p210
      $region54: #{based_module_1_forward.1} parent=51 // pred_check_branch
        %2934 = sbr.rel (%p2932) target = $region56
      $region55: #{based_module_1_forward.1} parent=51 // pred_region
        _
      $region56: #{based_module_1_forward.1} parent=51 // pred_fallthru
        _
    $region52: #{based_module_1_forward.1} parent=5 // pred_fallthru
      _
    %p2935 = scmp.le.s32.totalorder 2, %s14
    // Predicated region
    $region57: #{based_module_1_forward.1} parent=5 // pred_check
      %p2936 = pneg %p2935
    $region58: #{based_module_1_forward.1} parent=5 // pred_check_branch
      %2938 = sbr.rel (%p2936) target = $region60
    $region59: #{based_module_1_forward.1} parent=5 // pred_region
      %s2939 = ssub.s32 %s14, 2
      // Predicated region
      $region61: #{based_module_1_forward.1} parent=59 // pred_check
        %p2940 = pneg %p216
      $region62: #{based_module_1_forward.1} parent=59 // pred_check_branch
        %2942 = sbr.rel (%p2940) target = $region64
      $region63: #{based_module_1_forward.1} parent=59 // pred_region
        %p2943 = scmp.lt.s32.totalorder %s20, 1
        %s2944 = scalar_select %p2943, %s20, 1
        %s2945 = smul.addr %s2944, 2
        %s2946 = smul.addr %s2945, 8
        %s2947 = scalar_lea.vmem %s8, %s2946
      $region64: #{based_module_1_forward.1} parent=59 // pred_fallthru
        _
    $region60: #{based_module_1_forward.1} parent=5 // pred_fallthru
      _
  $region6: #{based_module_1_forward.1} parent=0 // loop_footer
    %s18 = sadd.s32 1, %s14
  $region7: #{based_module_1_forward.1} parent=0 // loop_footer_branch
    %13 = sbr.rel target = $region3
  $region8: #{based_module_1_forward.1} parent=0 // loop_exit
    _

</llo_original>
